<compile_context>
chip_gen: v6e
topology: v6e:2x2x1
jax: 0.10.0
libtpu: 0.0.40
codegen_flags: <defaults>
</compile_context>

<pallas_src>
import math

import jax
import jax.numpy as jnp
from jax.experimental import pallas as pl
from jax.experimental.pallas import tpu as pltpu

# ---------------- synthetic small config (mirrors the module's config fields) -----
B = 2                      # batch
IN_CH = 3                  # Embeddings default in_channels=3
IMG = 16                   # img_size
PATCH = 4                  # config.patches['size']
HIDDEN = 32                # config.hidden_size
NUM_HEADS = 4              # config.transformer['num_heads']
HEAD_DIM = HIDDEN // NUM_HEADS
MLP_DIM = 64               # config.transformer['mlp_dim']
NUM_LAYERS = 2             # config.transformer['num_layers']
N_PATCHES = (IMG // PATCH) * (IMG // PATCH)   # 16
PATCH_K = IN_CH * PATCH * PATCH               # 48
BS = B * N_PATCHES                            # batch folded into M: 32 rows
EPS = 1e-6                                    # LayerNorm eps
NEG_INF = -1e30                               # cross-batch attention mask value


# ---------------- shared math (pure jnp: used both inside kernel and in reference) ----
def _layer_norm(x, scale, bias):
    mu = jnp.mean(x, axis=-1, keepdims=True)
    var = jnp.mean(jnp.square(x - mu), axis=-1, keepdims=True)
    return (x - mu) * jax.lax.rsqrt(var + EPS) * scale + bias


def _gelu(x):
    # exact erf GELU (torch.nn.functional.gelu default)
    return 0.5 * x * (1.0 + jax.lax.erf(x * (1.0 / math.sqrt(2.0))))


# ---------------- single fused Pallas kernel -------------------------------------
def fused_transformer_kernel(patches_ref, mask_ref,
                             patch_w_ref, emb_bias_ref,
                             ln1s_ref, ln1b_ref,
                             wqkv_ref, bqkv_ref, wo_ref, bo_ref,
                             ln2s_ref, ln2b_ref,
                             w1_ref, b1_ref, w2_ref, b2_ref,
                             encs_ref, encb_ref,
                             out_ref, ctx_scratch):
    # patches_ref : [BS, PATCH_K]            mask_ref : [BS, BS] (0 / -1e30 block-diagonal)
    # patch_w_ref : [PATCH_K, HIDDEN]        emb_bias_ref : [BS, HIDDEN] (conv bias + pos emb)
    # per-layer stacks have leading NUM_LAYERS axis; ctx_scratch : VMEM [BS, HIDDEN]
    # NOTE: the 1/sqrt(head_dim) attention scale is pre-folded into the Q part of wqkv/bqkv.

    # --- Embeddings: Conv2d(k=s=PATCH) as patch-matmul + (bias + position embedding) ---
    x = jnp.dot(patches_ref[...], patch_w_ref[...],
                preferred_element_type=jnp.float32)
    x = x + emb_bias_ref[...]                           # [BS, HIDDEN]
    mask = mask_ref[...]                                # [BS, BS], hoisted once

    for l in range(NUM_LAYERS):                         # static (unrolled) layer loop
        # ---------------- attention branch ----------------
        h = x
        xn = _layer_norm(x, ln1s_ref[l], ln1b_ref[l])
        # fused QKV projection: one [BS,H] x [H,3H] matmul (Q already pre-scaled)
        qkv = jnp.dot(xn, wqkv_ref[l],
                      preferred_element_type=jnp.float32) + bqkv_ref[l]

        for hh in range(NUM_HEADS):                     # static per-head loop
            a = hh * HEAD_DIM
            q_h = qkv[:, a:a + HEAD_DIM]
            k_h = qkv[:, HIDDEN + a:HIDDEN + a + HEAD_DIM]
            v_h = qkv[:, 2 * HIDDEN + a:2 * HIDDEN + a + HEAD_DIM]
            # both batches in one score matmul; cross-batch entries masked out
            s = jnp.dot(q_h, k_h.T, preferred_element_type=jnp.float32) + mask
            s = s - jnp.max(s, axis=-1, keepdims=True)
            p = jnp.exp(s)
            inv = pl.reciprocal(jnp.sum(p, axis=-1, keepdims=True), approx=True)
            p = p * inv
            # place this head's context at its lane offset (assembles concat(ctx_heads))
            ctx_scratch[:, a:a + HEAD_DIM] = jnp.dot(
                p, v_h, preferred_element_type=jnp.float32)

        # single K=HIDDEN output projection (== concat(ctx_heads) @ Wo)
        attn = jnp.dot(ctx_scratch[...], wo_ref[l],
                       preferred_element_type=jnp.float32) + bo_ref[l]
        x = attn + h

        # ---------------- MLP branch ----------------
        h = x
        xn = _layer_norm(x, ln2s_ref[l], ln2b_ref[l])
        y = jnp.dot(xn, w1_ref[l], preferred_element_type=jnp.float32) + b1_ref[l]
        y = _gelu(y)
        y = jnp.dot(y, w2_ref[l], preferred_element_type=jnp.float32) + b2_ref[l]
        x = y + h

    # --- final encoder LayerNorm ---
    out_ref[...] = _layer_norm(x, encs_ref[...], encb_ref[...])


# ---------------- glue (plain JAX) ------------------------------------------------
def extract_patches(x):
    # x: [B, C, H, W] NCHW -> [B, n_patches, C*p*p] with (c, kh, kw) flattening
    b, c, hh, ww = x.shape
    hp, wp = hh // PATCH, ww // PATCH
    x = x.reshape(b, c, hp, PATCH, wp, PATCH)
    x = x.transpose(0, 2, 4, 1, 3, 5)            # [B, Hp, Wp, C, p, p]
    return x.reshape(b, hp * wp, c * PATCH * PATCH)


def _stack(layers, key_):
    return jnp.stack([lp[key_] for lp in layers], axis=0)


def transformer_forward(x, params):
    """Returns (encoded, attn_weights, features) like Transformer.forward."""
    # --- Embeddings prep (cheap reshapes; batch folded into the row dimension) ---
    patches = extract_patches(x).reshape(BS, PATCH_K)
    # conv bias + position embedding pre-summed into one [BS, HIDDEN] additive term
    emb_bias = params['patch_b'] + jnp.tile(params['pos'], (B, 1))      # [BS, HIDDEN]
    row_b = jnp.arange(BS, dtype=jnp.int32) // N_PATCHES
    mask = jnp.where(row_b[:, None] == row_b[None, :],
                     0.0, NEG_INF).astype(jnp.float32)                  # block-diag per batch

    L = params['layers']
    scale = jnp.float32(1.0 / math.sqrt(HEAD_DIM))
    # fold the attention score scale into the Q projection (weights + bias)
    wqkv = jnp.stack([jnp.concatenate([lp['wq'] * scale, lp['wk'], lp['wv']], axis=-1)
                      for lp in L])                                     # [L, H, 3H]
    bqkv = jnp.stack([jnp.concatenate([lp['bq'] * scale, lp['bk'], lp['bv']], axis=-1)
                      for lp in L])                                     # [L, 1, 3H]

    out = pl.pallas_call(
        fused_transformer_kernel,
        out_shape=jax.ShapeDtypeStruct((BS, HIDDEN), jnp.float32),
        scratch_shapes=[pltpu.VMEM((BS, HIDDEN), jnp.float32)],
    )(patches, mask,
      params['patch_w'], emb_bias,
      _stack(L, 'ln1_s'), _stack(L, 'ln1_b'),
      wqkv, bqkv, _stack(L, 'wo'), _stack(L, 'bo'),
      _stack(L, 'ln2_s'), _stack(L, 'ln2_b'),
      _stack(L, 'w1'), _stack(L, 'b1'), _stack(L, 'w2'), _stack(L, 'b2'),
      params['enc_s'], params['enc_b'])

    encoded = out.reshape(B, N_PATCHES, HIDDEN)
    # TODO(synk): DANetHead (DAblock1) source not provided -> identity.
    # Dropout: inference mode -> identity.  vis=False -> [].  hybrid=False -> None.
    return encoded, [], None


# ---------------- pure-JAX reference (for a sanity check) --------------------------
def forward_reference(x, params):
    patches = extract_patches(x)
    h = jnp.einsum('bnk,kh->bnh', patches, params['patch_w']) + params['patch_b'] + params['pos']
    for lp in params['layers']:
        r = h
        xn = _layer_norm(h, lp['ln1_s'], lp['ln1_b'])
        q = xn @ lp['wq'] + lp['bq']
        k = xn @ lp['wk'] + lp['bk']
        v = xn @ lp['wv'] + lp['bv']
        split = lambda t: t.reshape(B, N_PATCHES, NUM_HEADS, HEAD_DIM).transpose(0, 2, 1, 3)
        qh, kh, vh = split(q), split(k), split(v)
        s = jnp.einsum('bhqd,bhkd->bhqk', qh, kh) / math.sqrt(HEAD_DIM)
        p = jax.nn.softmax(s, axis=-1)
        ctx = jnp.einsum('bhqk,bhkd->bhqd', p, vh).transpose(0, 2, 1, 3).reshape(B, N_PATCHES, HIDDEN)
        h = ctx @ lp['wo'] + lp['bo'] + r
        r = h
        xn = _layer_norm(h, lp['ln2_s'], lp['ln2_b'])
        y = _gelu(xn @ lp['w1'] + lp['b1'])
        h = y @ lp['w2'] + lp['b2'] + r
    return _layer_norm(h, params['enc_s'], params['enc_b'])


# ---------------- deterministic parameter init -------------------------------------
def init_params(key):
    keys = iter(jax.random.split(key, 64))

    def rnd(shape, scale=0.05):
        return scale * jax.random.normal(next(keys), shape, dtype=jnp.float32)

    params = {
        # flattened Conv2d(in=IN_CH, out=HIDDEN, k=s=PATCH) weight, stored as [K, HIDDEN]
        'patch_w': rnd((PATCH_K, HIDDEN)),
        'patch_b': rnd((1, HIDDEN)),
        'pos': rnd((N_PATCHES, HIDDEN)),
        'enc_s': 1.0 + rnd((1, HIDDEN), 0.1),
        'enc_b': rnd((1, HIDDEN), 0.1),
        'layers': [],
    }
    for _ in range(NUM_LAYERS):
        lp = {
            'ln1_s': 1.0 + rnd((1, HIDDEN), 0.1), 'ln1_b': rnd((1, HIDDEN), 0.1),
            'wq': rnd((HIDDEN, HIDDEN)), 'bq': rnd((1, HIDDEN)),
            'wk': rnd((HIDDEN, HIDDEN)), 'bk': rnd((1, HIDDEN)),
            'wv': rnd((HIDDEN, HIDDEN)), 'bv': rnd((1, HIDDEN)),
            'wo': rnd((HIDDEN, HIDDEN)), 'bo': rnd((1, HIDDEN)),
            'ln2_s': 1.0 + rnd((1, HIDDEN), 0.1), 'ln2_b': rnd((1, HIDDEN), 0.1),
            'w1': rnd((HIDDEN, MLP_DIM)), 'b1': rnd((1, MLP_DIM)),
            'w2': rnd((MLP_DIM, HIDDEN)), 'b2': rnd((1, HIDDEN)),
        }
        params['layers'].append(lp)
    return params


# ---------------- main --------------------------------------------------------------
if __name__ == "__main__":
    key = jax.random.PRNGKey(0)
    k_x, k_p = jax.random.split(key)
    x = jax.random.normal(k_x, (B, IN_CH, IMG, IMG), dtype=jnp.float32)
    params = init_params(k_p)

    fwd = jax.jit(transformer_forward)
    encoded, attn_weights, features = fwd(x, params)
    encoded = jax.block_until_ready(encoded)

    # sanity check vs pure-JAX reference
    ref = jax.block_until_ready(forward_reference(x, params))
    max_err = float(jnp.max(jnp.abs(encoded - ref)))
    assert encoded.shape == (B, N_PATCHES, HIDDEN), encoded.shape
    assert attn_weights == [] and features is None
    assert max_err < 2e-3, f"mismatch vs reference: {max_err}"

    print("KERNEL_OK")
</pallas_src>

<mosaic_0001>
module attributes {stable_mosaic.version = 11 : i64} {
  func.func @fused_transformer_kernel(%arg0: memref<32x48xf32, #tpu.memory_space<vmem>>, %arg1: memref<32x32xf32, #tpu.memory_space<vmem>>, %arg2: memref<48x32xf32, #tpu.memory_space<vmem>>, %arg3: memref<32x32xf32, #tpu.memory_space<vmem>>, %arg4: memref<2x1x32xf32, #tpu.memory_space<vmem>>, %arg5: memref<2x1x32xf32, #tpu.memory_space<vmem>>, %arg6: memref<2x32x96xf32, #tpu.memory_space<vmem>>, %arg7: memref<2x1x96xf32, #tpu.memory_space<vmem>>, %arg8: memref<2x32x32xf32, #tpu.memory_space<vmem>>, %arg9: memref<2x1x32xf32, #tpu.memory_space<vmem>>, %arg10: memref<2x1x32xf32, #tpu.memory_space<vmem>>, %arg11: memref<2x1x32xf32, #tpu.memory_space<vmem>>, %arg12: memref<2x32x64xf32, #tpu.memory_space<vmem>>, %arg13: memref<2x1x64xf32, #tpu.memory_space<vmem>>, %arg14: memref<2x64x32xf32, #tpu.memory_space<vmem>>, %arg15: memref<2x1x32xf32, #tpu.memory_space<vmem>>, %arg16: memref<1x32xf32, #tpu.memory_space<vmem>>, %arg17: memref<1x32xf32, #tpu.memory_space<vmem>>, %arg18: memref<32x32xf32, #tpu.memory_space<vmem>>, %arg19: memref<32x32xf32, #tpu.memory_space<vmem>>) attributes {dimension_semantics = [], scalar_prefetch = 0 : i64, scratch_operands = 1 : i64, tpu.core_type = #tpu.core_type<tc>} {
    %c0 = arith.constant 0 : index
    %c0_0 = arith.constant 0 : index
    %0 = vector.load %arg0[%c0, %c0_0] : memref<32x48xf32, #tpu.memory_space<vmem>>, vector<32x48xf32>
    %c0_1 = arith.constant 0 : index
    %c0_2 = arith.constant 0 : index
    %1 = vector.load %arg2[%c0_1, %c0_2] : memref<48x32xf32, #tpu.memory_space<vmem>>, vector<48x32xf32>
    %cst = arith.constant dense<0.000000e+00> : vector<32x32xf32>
    %2 = tpu.matmul %0, %1, %cst {dimension_numbers = #tpu.dot_dimension_numbers<[1], [0], [0], [1], [0, 0, 1, 1], [], []>} : vector<32x48xf32>, vector<48x32xf32>, vector<32x32xf32> -> vector<32x32xf32>
    %c0_3 = arith.constant 0 : index
    %c0_4 = arith.constant 0 : index
    %3 = vector.load %arg3[%c0_3, %c0_4] : memref<32x32xf32, #tpu.memory_space<vmem>>, vector<32x32xf32>
    %4 = arith.addf %2, %3 : vector<32x32xf32>
    %c0_5 = arith.constant 0 : index
    %c0_6 = arith.constant 0 : index
    %5 = vector.load %arg1[%c0_5, %c0_6] : memref<32x32xf32, #tpu.memory_space<vmem>>, vector<32x32xf32>
    %c0_7 = arith.constant 0 : index
    %c0_8 = arith.constant 0 : index
    %c0_9 = arith.constant 0 : index
    %6 = vector.load %arg4[%c0_7, %c0_8, %c0_9] : memref<2x1x32xf32, #tpu.memory_space<vmem>>, vector<1x1x32xf32>
    %7 = vector.shape_cast %6 : vector<1x1x32xf32> to vector<1x32xf32>
    %c0_10 = arith.constant 0 : index
    %c0_11 = arith.constant 0 : index
    %c0_12 = arith.constant 0 : index
    %8 = vector.load %arg5[%c0_10, %c0_11, %c0_12] : memref<2x1x32xf32, #tpu.memory_space<vmem>>, vector<1x1x32xf32>
    %9 = vector.shape_cast %8 : vector<1x1x32xf32> to vector<1x32xf32>
    %cst_13 = arith.constant dense<0.000000e+00> : vector<32xf32>
    %10 = vector.multi_reduction <add>, %4, %cst_13 [1] : vector<32x32xf32> to vector<32xf32>
    %11 = vector.shape_cast %10 : vector<32xf32> to vector<32x1xf32>
    %cst_14 = arith.constant 3.200000e+01 : f32
    %12 = vector.broadcast %cst_14 : f32 to vector<32x1xf32>
    %13 = arith.divf %11, %12 : vector<32x1xf32>
    %14 = vector.broadcast %13 : vector<32x1xf32> to vector<32x32xf32>
    %15 = arith.subf %4, %14 : vector<32x32xf32>
    %16 = arith.mulf %15, %15 : vector<32x32xf32>
    %cst_15 = arith.constant dense<0.000000e+00> : vector<32xf32>
    %17 = vector.multi_reduction <add>, %16, %cst_15 [1] : vector<32x32xf32> to vector<32xf32>
    %18 = vector.shape_cast %17 : vector<32xf32> to vector<32x1xf32>
    %cst_16 = arith.constant 3.200000e+01 : f32
    %19 = vector.broadcast %cst_16 : f32 to vector<32x1xf32>
    %20 = arith.divf %18, %19 : vector<32x1xf32>
    %21 = vector.broadcast %13 : vector<32x1xf32> to vector<32x32xf32>
    %22 = arith.subf %4, %21 : vector<32x32xf32>
    %cst_17 = arith.constant 9.99999997E-7 : f32
    %23 = vector.broadcast %cst_17 : f32 to vector<32x1xf32>
    %24 = arith.addf %20, %23 : vector<32x1xf32>
    %25 = math.rsqrt %24 : vector<32x1xf32>
    %26 = vector.broadcast %25 : vector<32x1xf32> to vector<32x32xf32>
    %27 = arith.mulf %22, %26 : vector<32x32xf32>
    %28 = vector.broadcast %7 : vector<1x32xf32> to vector<32x32xf32>
    %29 = arith.mulf %27, %28 : vector<32x32xf32>
    %30 = vector.broadcast %9 : vector<1x32xf32> to vector<32x32xf32>
    %31 = arith.addf %29, %30 : vector<32x32xf32>
    %c0_18 = arith.constant 0 : index
    %c0_19 = arith.constant 0 : index
    %c0_20 = arith.constant 0 : index
    %32 = vector.load %arg6[%c0_18, %c0_19, %c0_20] : memref<2x32x96xf32, #tpu.memory_space<vmem>>, vector<1x32x96xf32>
    %33 = vector.shape_cast %32 : vector<1x32x96xf32> to vector<32x96xf32>
    %cst_21 = arith.constant dense<0.000000e+00> : vector<32x96xf32>
    %34 = tpu.matmul %31, %33, %cst_21 {dimension_numbers = #tpu.dot_dimension_numbers<[1], [0], [0], [1], [0, 0, 1, 1], [], []>} : vector<32x32xf32>, vector<32x96xf32>, vector<32x96xf32> -> vector<32x96xf32>
    %c0_22 = arith.constant 0 : index
    %c0_23 = arith.constant 0 : index
    %c0_24 = arith.constant 0 : index
    %35 = vector.load %arg7[%c0_22, %c0_23, %c0_24] : memref<2x1x96xf32, #tpu.memory_space<vmem>>, vector<1x1x96xf32>
    %36 = vector.shape_cast %35 : vector<1x1x96xf32> to vector<1x96xf32>
    %37 = vector.broadcast %36 : vector<1x96xf32> to vector<32x96xf32>
    %38 = arith.addf %34, %37 : vector<32x96xf32>
    %39 = vector.extract_strided_slice %38 {offsets = [0, 0], sizes = [32, 8], strides = [1, 1]} : vector<32x96xf32> to vector<32x8xf32>
    %40 = vector.extract_strided_slice %38 {offsets = [0, 32], sizes = [32, 8], strides = [1, 1]} : vector<32x96xf32> to vector<32x8xf32>
    %41 = vector.extract_strided_slice %38 {offsets = [0, 64], sizes = [32, 8], strides = [1, 1]} : vector<32x96xf32> to vector<32x8xf32>
    %42 = tpu.transpose %40, [1, 0] : vector<32x8xf32> -> vector<8x32xf32>
    %cst_25 = arith.constant dense<0.000000e+00> : vector<32x32xf32>
    %43 = tpu.matmul %39, %42, %cst_25 {dimension_numbers = #tpu.dot_dimension_numbers<[1], [0], [0], [1], [0, 0, 1, 1], [], []>} : vector<32x8xf32>, vector<8x32xf32>, vector<32x32xf32> -> vector<32x32xf32>
    %44 = arith.addf %43, %5 : vector<32x32xf32>
    %cst_26 = arith.constant dense<0xFF800000> : vector<32xf32>
    %45 = vector.multi_reduction <maximumf>, %44, %cst_26 [1] : vector<32x32xf32> to vector<32xf32>
    %46 = vector.shape_cast %45 : vector<32xf32> to vector<32x1xf32>
    %47 = vector.broadcast %46 : vector<32x1xf32> to vector<32x32xf32>
    %48 = arith.subf %44, %47 : vector<32x32xf32>
    %49 = math.exp %48 : vector<32x32xf32>
    %cst_27 = arith.constant dense<0.000000e+00> : vector<32xf32>
    %50 = vector.multi_reduction <add>, %49, %cst_27 [1] : vector<32x32xf32> to vector<32xf32>
    %51 = vector.shape_cast %50 : vector<32xf32> to vector<32x1xf32>
    %52 = tpu.reciprocal %51 {approx = true} : vector<32x1xf32> -> vector<32x1xf32>
    %53 = vector.broadcast %52 : vector<32x1xf32> to vector<32x32xf32>
    %54 = arith.mulf %49, %53 : vector<32x32xf32>
    %cst_28 = arith.constant dense<0.000000e+00> : vector<32x8xf32>
    %55 = tpu.matmul %54, %41, %cst_28 {dimension_numbers = #tpu.dot_dimension_numbers<[1], [0], [0], [1], [0, 0, 1, 1], [], []>} : vector<32x32xf32>, vector<32x8xf32>, vector<32x8xf32> -> vector<32x8xf32>
    %c0_29 = arith.constant 0 : index
    %c0_30 = arith.constant 0 : index
    %56 = vector.load %arg19[%c0_29, %c0_30] : memref<32x32xf32, #tpu.memory_space<vmem>>, vector<32x8xf32>
    tpu.vector_store %arg19[%c0_29, %c0_30], %55 {strides = array<i32>} : memref<32x32xf32, #tpu.memory_space<vmem>>, vector<32x8xf32>,
    %57 = vector.extract_strided_slice %38 {offsets = [0, 8], sizes = [32, 8], strides = [1, 1]} : vector<32x96xf32> to vector<32x8xf32>
    %58 = vector.extract_strided_slice %38 {offsets = [0, 40], sizes = [32, 8], strides = [1, 1]} : vector<32x96xf32> to vector<32x8xf32>
    %59 = vector.extract_strided_slice %38 {offsets = [0, 72], sizes = [32, 8], strides = [1, 1]} : vector<32x96xf32> to vector<32x8xf32>
    %60 = tpu.transpose %58, [1, 0] : vector<32x8xf32> -> vector<8x32xf32>
    %cst_31 = arith.constant dense<0.000000e+00> : vector<32x32xf32>
    %61 = tpu.matmul %57, %60, %cst_31 {dimension_numbers = #tpu.dot_dimension_numbers<[1], [0], [0], [1], [0, 0, 1, 1], [], []>} : vector<32x8xf32>, vector<8x32xf32>, vector<32x32xf32> -> vector<32x32xf32>
    %62 = arith.addf %61, %5 : vector<32x32xf32>
    %cst_32 = arith.constant dense<0xFF800000> : vector<32xf32>
    %63 = vector.multi_reduction <maximumf>, %62, %cst_32 [1] : vector<32x32xf32> to vector<32xf32>
    %64 = vector.shape_cast %63 : vector<32xf32> to vector<32x1xf32>
    %65 = vector.broadcast %64 : vector<32x1xf32> to vector<32x32xf32>
    %66 = arith.subf %62, %65 : vector<32x32xf32>
    %67 = math.exp %66 : vector<32x32xf32>
    %cst_33 = arith.constant dense<0.000000e+00> : vector<32xf32>
    %68 = vector.multi_reduction <add>, %67, %cst_33 [1] : vector<32x32xf32> to vector<32xf32>
    %69 = vector.shape_cast %68 : vector<32xf32> to vector<32x1xf32>
    %70 = tpu.reciprocal %69 {approx = true} : vector<32x1xf32> -> vector<32x1xf32>
    %71 = vector.broadcast %70 : vector<32x1xf32> to vector<32x32xf32>
    %72 = arith.mulf %67, %71 : vector<32x32xf32>
    %cst_34 = arith.constant dense<0.000000e+00> : vector<32x8xf32>
    %73 = tpu.matmul %72, %59, %cst_34 {dimension_numbers = #tpu.dot_dimension_numbers<[1], [0], [0], [1], [0, 0, 1, 1], [], []>} : vector<32x32xf32>, vector<32x8xf32>, vector<32x8xf32> -> vector<32x8xf32>
    %c0_35 = arith.constant 0 : index
    %c8 = arith.constant 8 : index
    %74 = vector.load %arg19[%c0_35, %c8] : memref<32x32xf32, #tpu.memory_space<vmem>>, vector<32x8xf32>
    tpu.vector_store %arg19[%c0_35, %c8], %73 {strides = array<i32>} : memref<32x32xf32, #tpu.memory_space<vmem>>, vector<32x8xf32>,
    %75 = vector.extract_strided_slice %38 {offsets = [0, 16], sizes = [32, 8], strides = [1, 1]} : vector<32x96xf32> to vector<32x8xf32>
    %76 = vector.extract_strided_slice %38 {offsets = [0, 48], sizes = [32, 8], strides = [1, 1]} : vector<32x96xf32> to vector<32x8xf32>
    %77 = vector.extract_strided_slice %38 {offsets = [0, 80], sizes = [32, 8], strides = [1, 1]} : vector<32x96xf32> to vector<32x8xf32>
    %78 = tpu.transpose %76, [1, 0] : vector<32x8xf32> -> vector<8x32xf32>
    %cst_36 = arith.constant dense<0.000000e+00> : vector<32x32xf32>
    %79 = tpu.matmul %75, %78, %cst_36 {dimension_numbers = #tpu.dot_dimension_numbers<[1], [0], [0], [1], [0, 0, 1, 1], [], []>} : vector<32x8xf32>, vector<8x32xf32>, vector<32x32xf32> -> vector<32x32xf32>
    %80 = arith.addf %79, %5 : vector<32x32xf32>
    %cst_37 = arith.constant dense<0xFF800000> : vector<32xf32>
    %81 = vector.multi_reduction <maximumf>, %80, %cst_37 [1] : vector<32x32xf32> to vector<32xf32>
    %82 = vector.shape_cast %81 : vector<32xf32> to vector<32x1xf32>
    %83 = vector.broadcast %82 : vector<32x1xf32> to vector<32x32xf32>
    %84 = arith.subf %80, %83 : vector<32x32xf32>
    %85 = math.exp %84 : vector<32x32xf32>
    %cst_38 = arith.constant dense<0.000000e+00> : vector<32xf32>
    %86 = vector.multi_reduction <add>, %85, %cst_38 [1] : vector<32x32xf32> to vector<32xf32>
    %87 = vector.shape_cast %86 : vector<32xf32> to vector<32x1xf32>
    %88 = tpu.reciprocal %87 {approx = true} : vector<32x1xf32> -> vector<32x1xf32>
    %89 = vector.broadcast %88 : vector<32x1xf32> to vector<32x32xf32>
    %90 = arith.mulf %85, %89 : vector<32x32xf32>
    %cst_39 = arith.constant dense<0.000000e+00> : vector<32x8xf32>
    %91 = tpu.matmul %90, %77, %cst_39 {dimension_numbers = #tpu.dot_dimension_numbers<[1], [0], [0], [1], [0, 0, 1, 1], [], []>} : vector<32x32xf32>, vector<32x8xf32>, vector<32x8xf32> -> vector<32x8xf32>
    %c0_40 = arith.constant 0 : index
    %c16 = arith.constant 16 : index
    %92 = vector.load %arg19[%c0_40, %c16] : memref<32x32xf32, #tpu.memory_space<vmem>>, vector<32x8xf32>
    tpu.vector_store %arg19[%c0_40, %c16], %91 {strides = array<i32>} : memref<32x32xf32, #tpu.memory_space<vmem>>, vector<32x8xf32>,
    %93 = vector.extract_strided_slice %38 {offsets = [0, 24], sizes = [32, 8], strides = [1, 1]} : vector<32x96xf32> to vector<32x8xf32>
    %94 = vector.extract_strided_slice %38 {offsets = [0, 56], sizes = [32, 8], strides = [1, 1]} : vector<32x96xf32> to vector<32x8xf32>
    %95 = vector.extract_strided_slice %38 {offsets = [0, 88], sizes = [32, 8], strides = [1, 1]} : vector<32x96xf32> to vector<32x8xf32>
    %96 = tpu.transpose %94, [1, 0] : vector<32x8xf32> -> vector<8x32xf32>
    %cst_41 = arith.constant dense<0.000000e+00> : vector<32x32xf32>
    %97 = tpu.matmul %93, %96, %cst_41 {dimension_numbers = #tpu.dot_dimension_numbers<[1], [0], [0], [1], [0, 0, 1, 1], [], []>} : vector<32x8xf32>, vector<8x32xf32>, vector<32x32xf32> -> vector<32x32xf32>
    %98 = arith.addf %97, %5 : vector<32x32xf32>
    %cst_42 = arith.constant dense<0xFF800000> : vector<32xf32>
    %99 = vector.multi_reduction <maximumf>, %98, %cst_42 [1] : vector<32x32xf32> to vector<32xf32>
    %100 = vector.shape_cast %99 : vector<32xf32> to vector<32x1xf32>
    %101 = vector.broadcast %100 : vector<32x1xf32> to vector<32x32xf32>
    %102 = arith.subf %98, %101 : vector<32x32xf32>
    %103 = math.exp %102 : vector<32x32xf32>
    %cst_43 = arith.constant dense<0.000000e+00> : vector<32xf32>
    %104 = vector.multi_reduction <add>, %103, %cst_43 [1] : vector<32x32xf32> to vector<32xf32>
    %105 = vector.shape_cast %104 : vector<32xf32> to vector<32x1xf32>
    %106 = tpu.reciprocal %105 {approx = true} : vector<32x1xf32> -> vector<32x1xf32>
    %107 = vector.broadcast %106 : vector<32x1xf32> to vector<32x32xf32>
    %108 = arith.mulf %103, %107 : vector<32x32xf32>
    %cst_44 = arith.constant dense<0.000000e+00> : vector<32x8xf32>
    %109 = tpu.matmul %108, %95, %cst_44 {dimension_numbers = #tpu.dot_dimension_numbers<[1], [0], [0], [1], [0, 0, 1, 1], [], []>} : vector<32x32xf32>, vector<32x8xf32>, vector<32x8xf32> -> vector<32x8xf32>
    %c0_45 = arith.constant 0 : index
    %c24 = arith.constant 24 : index
    %110 = vector.load %arg19[%c0_45, %c24] : memref<32x32xf32, #tpu.memory_space<vmem>>, vector<32x8xf32>
    tpu.vector_store %arg19[%c0_45, %c24], %109 {strides = array<i32>} : memref<32x32xf32, #tpu.memory_space<vmem>>, vector<32x8xf32>,
    %c0_46 = arith.constant 0 : index
    %c0_47 = arith.constant 0 : index
    %111 = vector.load %arg19[%c0_46, %c0_47] : memref<32x32xf32, #tpu.memory_space<vmem>>, vector<32x32xf32>
    %c0_48 = arith.constant 0 : index
    %c0_49 = arith.constant 0 : index
    %c0_50 = arith.constant 0 : index
    %112 = vector.load %arg8[%c0_48, %c0_49, %c0_50] : memref<2x32x32xf32, #tpu.memory_space<vmem>>, vector<1x32x32xf32>
    %113 = vector.shape_cast %112 : vector<1x32x32xf32> to vector<32x32xf32>
    %cst_51 = arith.constant dense<0.000000e+00> : vector<32x32xf32>
    %114 = tpu.matmul %111, %113, %cst_51 {dimension_numbers = #tpu.dot_dimension_numbers<[1], [0], [0], [1], [0, 0, 1, 1], [], []>} : vector<32x32xf32>, vector<32x32xf32>, vector<32x32xf32> -> vector<32x32xf32>
    %c0_52 = arith.constant 0 : index
    %c0_53 = arith.constant 0 : index
    %c0_54 = arith.constant 0 : index
    %115 = vector.load %arg9[%c0_52, %c0_53, %c0_54] : memref<2x1x32xf32, #tpu.memory_space<vmem>>, vector<1x1x32xf32>
    %116 = vector.shape_cast %115 : vector<1x1x32xf32> to vector<1x32xf32>
    %117 = vector.broadcast %116 : vector<1x32xf32> to vector<32x32xf32>
    %118 = arith.addf %114, %117 : vector<32x32xf32>
    %119 = arith.addf %118, %4 : vector<32x32xf32>
    %c0_55 = arith.constant 0 : index
    %c0_56 = arith.constant 0 : index
    %c0_57 = arith.constant 0 : index
    %120 = vector.load %arg10[%c0_55, %c0_56, %c0_57] : memref<2x1x32xf32, #tpu.memory_space<vmem>>, vector<1x1x32xf32>
    %121 = vector.shape_cast %120 : vector<1x1x32xf32> to vector<1x32xf32>
    %c0_58 = arith.constant 0 : index
    %c0_59 = arith.constant 0 : index
    %c0_60 = arith.constant 0 : index
    %122 = vector.load %arg11[%c0_58, %c0_59, %c0_60] : memref<2x1x32xf32, #tpu.memory_space<vmem>>, vector<1x1x32xf32>
    %123 = vector.shape_cast %122 : vector<1x1x32xf32> to vector<1x32xf32>
    %cst_61 = arith.constant dense<0.000000e+00> : vector<32xf32>
    %124 = vector.multi_reduction <add>, %119, %cst_61 [1] : vector<32x32xf32> to vector<32xf32>
    %125 = vector.shape_cast %124 : vector<32xf32> to vector<32x1xf32>
    %cst_62 = arith.constant 3.200000e+01 : f32
    %126 = vector.broadcast %cst_62 : f32 to vector<32x1xf32>
    %127 = arith.divf %125, %126 : vector<32x1xf32>
    %128 = vector.broadcast %127 : vector<32x1xf32> to vector<32x32xf32>
    %129 = arith.subf %119, %128 : vector<32x32xf32>
    %130 = arith.mulf %129, %129 : vector<32x32xf32>
    %cst_63 = arith.constant dense<0.000000e+00> : vector<32xf32>
    %131 = vector.multi_reduction <add>, %130, %cst_63 [1] : vector<32x32xf32> to vector<32xf32>
    %132 = vector.shape_cast %131 : vector<32xf32> to vector<32x1xf32>
    %cst_64 = arith.constant 3.200000e+01 : f32
    %133 = vector.broadcast %cst_64 : f32 to vector<32x1xf32>
    %134 = arith.divf %132, %133 : vector<32x1xf32>
    %135 = vector.broadcast %127 : vector<32x1xf32> to vector<32x32xf32>
    %136 = arith.subf %119, %135 : vector<32x32xf32>
    %cst_65 = arith.constant 9.99999997E-7 : f32
    %137 = vector.broadcast %cst_65 : f32 to vector<32x1xf32>
    %138 = arith.addf %134, %137 : vector<32x1xf32>
    %139 = math.rsqrt %138 : vector<32x1xf32>
    %140 = vector.broadcast %139 : vector<32x1xf32> to vector<32x32xf32>
    %141 = arith.mulf %136, %140 : vector<32x32xf32>
    %142 = vector.broadcast %121 : vector<1x32xf32> to vector<32x32xf32>
    %143 = arith.mulf %141, %142 : vector<32x32xf32>
    %144 = vector.broadcast %123 : vector<1x32xf32> to vector<32x32xf32>
    %145 = arith.addf %143, %144 : vector<32x32xf32>
    %c0_66 = arith.constant 0 : index
    %c0_67 = arith.constant 0 : index
    %c0_68 = arith.constant 0 : index
    %146 = vector.load %arg12[%c0_66, %c0_67, %c0_68] : memref<2x32x64xf32, #tpu.memory_space<vmem>>, vector<1x32x64xf32>
    %147 = vector.shape_cast %146 : vector<1x32x64xf32> to vector<32x64xf32>
    %cst_69 = arith.constant dense<0.000000e+00> : vector<32x64xf32>
    %148 = tpu.matmul %145, %147, %cst_69 {dimension_numbers = #tpu.dot_dimension_numbers<[1], [0], [0], [1], [0, 0, 1, 1], [], []>} : vector<32x32xf32>, vector<32x64xf32>, vector<32x64xf32> -> vector<32x64xf32>
    %c0_70 = arith.constant 0 : index
    %c0_71 = arith.constant 0 : index
    %c0_72 = arith.constant 0 : index
    %149 = vector.load %arg13[%c0_70, %c0_71, %c0_72] : memref<2x1x64xf32, #tpu.memory_space<vmem>>, vector<1x1x64xf32>
    %150 = vector.shape_cast %149 : vector<1x1x64xf32> to vector<1x64xf32>
    %151 = vector.broadcast %150 : vector<1x64xf32> to vector<32x64xf32>
    %152 = arith.addf %148, %151 : vector<32x64xf32>
    %cst_73 = arith.constant 5.000000e-01 : f32
    %153 = vector.broadcast %cst_73 : f32 to vector<32x64xf32>
    %154 = arith.mulf %153, %152 : vector<32x64xf32>
    %cst_74 = arith.constant 0.707106769 : f32
    %155 = vector.broadcast %cst_74 : f32 to vector<32x64xf32>
    %156 = arith.mulf %152, %155 : vector<32x64xf32>
    %157 = math.erf %156 : vector<32x64xf32>
    %cst_75 = arith.constant 1.000000e+00 : f32
    %158 = vector.broadcast %cst_75 : f32 to vector<32x64xf32>
    %159 = arith.addf %158, %157 : vector<32x64xf32>
    %160 = arith.mulf %154, %159 : vector<32x64xf32>
    %c0_76 = arith.constant 0 : index
    %c0_77 = arith.constant 0 : index
    %c0_78 = arith.constant 0 : index
    %161 = vector.load %arg14[%c0_76, %c0_77, %c0_78] : memref<2x64x32xf32, #tpu.memory_space<vmem>>, vector<1x64x32xf32>
    %162 = vector.shape_cast %161 : vector<1x64x32xf32> to vector<64x32xf32>
    %cst_79 = arith.constant dense<0.000000e+00> : vector<32x32xf32>
    %163 = tpu.matmul %160, %162, %cst_79 {dimension_numbers = #tpu.dot_dimension_numbers<[1], [0], [0], [1], [0, 0, 1, 1], [], []>} : vector<32x64xf32>, vector<64x32xf32>, vector<32x32xf32> -> vector<32x32xf32>
    %c0_80 = arith.constant 0 : index
    %c0_81 = arith.constant 0 : index
    %c0_82 = arith.constant 0 : index
    %164 = vector.load %arg15[%c0_80, %c0_81, %c0_82] : memref<2x1x32xf32, #tpu.memory_space<vmem>>, vector<1x1x32xf32>
    %165 = vector.shape_cast %164 : vector<1x1x32xf32> to vector<1x32xf32>
    %166 = vector.broadcast %165 : vector<1x32xf32> to vector<32x32xf32>
    %167 = arith.addf %163, %166 : vector<32x32xf32>
    %168 = arith.addf %167, %119 : vector<32x32xf32>
    %c1 = arith.constant 1 : index
    %c0_83 = arith.constant 0 : index
    %c0_84 = arith.constant 0 : index
    %169 = vector.load %arg4[%c1, %c0_83, %c0_84] : memref<2x1x32xf32, #tpu.memory_space<vmem>>, vector<1x1x32xf32>
    %170 = vector.shape_cast %169 : vector<1x1x32xf32> to vector<1x32xf32>
    %c1_85 = arith.constant 1 : index
    %c0_86 = arith.constant 0 : index
    %c0_87 = arith.constant 0 : index
    %171 = vector.load %arg5[%c1_85, %c0_86, %c0_87] : memref<2x1x32xf32, #tpu.memory_space<vmem>>, vector<1x1x32xf32>
    %172 = vector.shape_cast %171 : vector<1x1x32xf32> to vector<1x32xf32>
    %cst_88 = arith.constant dense<0.000000e+00> : vector<32xf32>
    %173 = vector.multi_reduction <add>, %168, %cst_88 [1] : vector<32x32xf32> to vector<32xf32>
    %174 = vector.shape_cast %173 : vector<32xf32> to vector<32x1xf32>
    %cst_89 = arith.constant 3.200000e+01 : f32
    %175 = vector.broadcast %cst_89 : f32 to vector<32x1xf32>
    %176 = arith.divf %174, %175 : vector<32x1xf32>
    %177 = vector.broadcast %176 : vector<32x1xf32> to vector<32x32xf32>
    %178 = arith.subf %168, %177 : vector<32x32xf32>
    %179 = arith.mulf %178, %178 : vector<32x32xf32>
    %cst_90 = arith.constant dense<0.000000e+00> : vector<32xf32>
    %180 = vector.multi_reduction <add>, %179, %cst_90 [1] : vector<32x32xf32> to vector<32xf32>
    %181 = vector.shape_cast %180 : vector<32xf32> to vector<32x1xf32>
    %cst_91 = arith.constant 3.200000e+01 : f32
    %182 = vector.broadcast %cst_91 : f32 to vector<32x1xf32>
    %183 = arith.divf %181, %182 : vector<32x1xf32>
    %184 = vector.broadcast %176 : vector<32x1xf32> to vector<32x32xf32>
    %185 = arith.subf %168, %184 : vector<32x32xf32>
    %cst_92 = arith.constant 9.99999997E-7 : f32
    %186 = vector.broadcast %cst_92 : f32 to vector<32x1xf32>
    %187 = arith.addf %183, %186 : vector<32x1xf32>
    %188 = math.rsqrt %187 : vector<32x1xf32>
    %189 = vector.broadcast %188 : vector<32x1xf32> to vector<32x32xf32>
    %190 = arith.mulf %185, %189 : vector<32x32xf32>
    %191 = vector.broadcast %170 : vector<1x32xf32> to vector<32x32xf32>
    %192 = arith.mulf %190, %191 : vector<32x32xf32>
    %193 = vector.broadcast %172 : vector<1x32xf32> to vector<32x32xf32>
    %194 = arith.addf %192, %193 : vector<32x32xf32>
    %c1_93 = arith.constant 1 : index
    %c0_94 = arith.constant 0 : index
    %c0_95 = arith.constant 0 : index
    %195 = vector.load %arg6[%c1_93, %c0_94, %c0_95] : memref<2x32x96xf32, #tpu.memory_space<vmem>>, vector<1x32x96xf32>
    %196 = vector.shape_cast %195 : vector<1x32x96xf32> to vector<32x96xf32>
    %cst_96 = arith.constant dense<0.000000e+00> : vector<32x96xf32>
    %197 = tpu.matmul %194, %196, %cst_96 {dimension_numbers = #tpu.dot_dimension_numbers<[1], [0], [0], [1], [0, 0, 1, 1], [], []>} : vector<32x32xf32>, vector<32x96xf32>, vector<32x96xf32> -> vector<32x96xf32>
    %c1_97 = arith.constant 1 : index
    %c0_98 = arith.constant 0 : index
    %c0_99 = arith.constant 0 : index
    %198 = vector.load %arg7[%c1_97, %c0_98, %c0_99] : memref<2x1x96xf32, #tpu.memory_space<vmem>>, vector<1x1x96xf32>
    %199 = vector.shape_cast %198 : vector<1x1x96xf32> to vector<1x96xf32>
    %200 = vector.broadcast %199 : vector<1x96xf32> to vector<32x96xf32>
    %201 = arith.addf %197, %200 : vector<32x96xf32>
    %202 = vector.extract_strided_slice %201 {offsets = [0, 0], sizes = [32, 8], strides = [1, 1]} : vector<32x96xf32> to vector<32x8xf32>
    %203 = vector.extract_strided_slice %201 {offsets = [0, 32], sizes = [32, 8], strides = [1, 1]} : vector<32x96xf32> to vector<32x8xf32>
    %204 = vector.extract_strided_slice %201 {offsets = [0, 64], sizes = [32, 8], strides = [1, 1]} : vector<32x96xf32> to vector<32x8xf32>
    %205 = tpu.transpose %203, [1, 0] : vector<32x8xf32> -> vector<8x32xf32>
    %cst_100 = arith.constant dense<0.000000e+00> : vector<32x32xf32>
    %206 = tpu.matmul %202, %205, %cst_100 {dimension_numbers = #tpu.dot_dimension_numbers<[1], [0], [0], [1], [0, 0, 1, 1], [], []>} : vector<32x8xf32>, vector<8x32xf32>, vector<32x32xf32> -> vector<32x32xf32>
    %207 = arith.addf %206, %5 : vector<32x32xf32>
    %cst_101 = arith.constant dense<0xFF800000> : vector<32xf32>
    %208 = vector.multi_reduction <maximumf>, %207, %cst_101 [1] : vector<32x32xf32> to vector<32xf32>
    %209 = vector.shape_cast %208 : vector<32xf32> to vector<32x1xf32>
    %210 = vector.broadcast %209 : vector<32x1xf32> to vector<32x32xf32>
    %211 = arith.subf %207, %210 : vector<32x32xf32>
    %212 = math.exp %211 : vector<32x32xf32>
    %cst_102 = arith.constant dense<0.000000e+00> : vector<32xf32>
    %213 = vector.multi_reduction <add>, %212, %cst_102 [1] : vector<32x32xf32> to vector<32xf32>
    %214 = vector.shape_cast %213 : vector<32xf32> to vector<32x1xf32>
    %215 = tpu.reciprocal %214 {approx = true} : vector<32x1xf32> -> vector<32x1xf32>
    %216 = vector.broadcast %215 : vector<32x1xf32> to vector<32x32xf32>
    %217 = arith.mulf %212, %216 : vector<32x32xf32>
    %cst_103 = arith.constant dense<0.000000e+00> : vector<32x8xf32>
    %218 = tpu.matmul %217, %204, %cst_103 {dimension_numbers = #tpu.dot_dimension_numbers<[1], [0], [0], [1], [0, 0, 1, 1], [], []>} : vector<32x32xf32>, vector<32x8xf32>, vector<32x8xf32> -> vector<32x8xf32>
    %c0_104 = arith.constant 0 : index
    %c0_105 = arith.constant 0 : index
    %219 = vector.load %arg19[%c0_104, %c0_105] : memref<32x32xf32, #tpu.memory_space<vmem>>, vector<32x8xf32>
    tpu.vector_store %arg19[%c0_104, %c0_105], %218 {strides = array<i32>} : memref<32x32xf32, #tpu.memory_space<vmem>>, vector<32x8xf32>,
    %220 = vector.extract_strided_slice %201 {offsets = [0, 8], sizes = [32, 8], strides = [1, 1]} : vector<32x96xf32> to vector<32x8xf32>
    %221 = vector.extract_strided_slice %201 {offsets = [0, 40], sizes = [32, 8], strides = [1, 1]} : vector<32x96xf32> to vector<32x8xf32>
    %222 = vector.extract_strided_slice %201 {offsets = [0, 72], sizes = [32, 8], strides = [1, 1]} : vector<32x96xf32> to vector<32x8xf32>
    %223 = tpu.transpose %221, [1, 0] : vector<32x8xf32> -> vector<8x32xf32>
    %cst_106 = arith.constant dense<0.000000e+00> : vector<32x32xf32>
    %224 = tpu.matmul %220, %223, %cst_106 {dimension_numbers = #tpu.dot_dimension_numbers<[1], [0], [0], [1], [0, 0, 1, 1], [], []>} : vector<32x8xf32>, vector<8x32xf32>, vector<32x32xf32> -> vector<32x32xf32>
    %225 = arith.addf %224, %5 : vector<32x32xf32>
    %cst_107 = arith.constant dense<0xFF800000> : vector<32xf32>
    %226 = vector.multi_reduction <maximumf>, %225, %cst_107 [1] : vector<32x32xf32> to vector<32xf32>
    %227 = vector.shape_cast %226 : vector<32xf32> to vector<32x1xf32>
    %228 = vector.broadcast %227 : vector<32x1xf32> to vector<32x32xf32>
    %229 = arith.subf %225, %228 : vector<32x32xf32>
    %230 = math.exp %229 : vector<32x32xf32>
    %cst_108 = arith.constant dense<0.000000e+00> : vector<32xf32>
    %231 = vector.multi_reduction <add>, %230, %cst_108 [1] : vector<32x32xf32> to vector<32xf32>
    %232 = vector.shape_cast %231 : vector<32xf32> to vector<32x1xf32>
    %233 = tpu.reciprocal %232 {approx = true} : vector<32x1xf32> -> vector<32x1xf32>
    %234 = vector.broadcast %233 : vector<32x1xf32> to vector<32x32xf32>
    %235 = arith.mulf %230, %234 : vector<32x32xf32>
    %cst_109 = arith.constant dense<0.000000e+00> : vector<32x8xf32>
    %236 = tpu.matmul %235, %222, %cst_109 {dimension_numbers = #tpu.dot_dimension_numbers<[1], [0], [0], [1], [0, 0, 1, 1], [], []>} : vector<32x32xf32>, vector<32x8xf32>, vector<32x8xf32> -> vector<32x8xf32>
    %c0_110 = arith.constant 0 : index
    %c8_111 = arith.constant 8 : index
    %237 = vector.load %arg19[%c0_110, %c8_111] : memref<32x32xf32, #tpu.memory_space<vmem>>, vector<32x8xf32>
    tpu.vector_store %arg19[%c0_110, %c8_111], %236 {strides = array<i32>} : memref<32x32xf32, #tpu.memory_space<vmem>>, vector<32x8xf32>,
    %238 = vector.extract_strided_slice %201 {offsets = [0, 16], sizes = [32, 8], strides = [1, 1]} : vector<32x96xf32> to vector<32x8xf32>
    %239 = vector.extract_strided_slice %201 {offsets = [0, 48], sizes = [32, 8], strides = [1, 1]} : vector<32x96xf32> to vector<32x8xf32>
    %240 = vector.extract_strided_slice %201 {offsets = [0, 80], sizes = [32, 8], strides = [1, 1]} : vector<32x96xf32> to vector<32x8xf32>
    %241 = tpu.transpose %239, [1, 0] : vector<32x8xf32> -> vector<8x32xf32>
    %cst_112 = arith.constant dense<0.000000e+00> : vector<32x32xf32>
    %242 = tpu.matmul %238, %241, %cst_112 {dimension_numbers = #tpu.dot_dimension_numbers<[1], [0], [0], [1], [0, 0, 1, 1], [], []>} : vector<32x8xf32>, vector<8x32xf32>, vector<32x32xf32> -> vector<32x32xf32>
    %243 = arith.addf %242, %5 : vector<32x32xf32>
    %cst_113 = arith.constant dense<0xFF800000> : vector<32xf32>
    %244 = vector.multi_reduction <maximumf>, %243, %cst_113 [1] : vector<32x32xf32> to vector<32xf32>
    %245 = vector.shape_cast %244 : vector<32xf32> to vector<32x1xf32>
    %246 = vector.broadcast %245 : vector<32x1xf32> to vector<32x32xf32>
    %247 = arith.subf %243, %246 : vector<32x32xf32>
    %248 = math.exp %247 : vector<32x32xf32>
    %cst_114 = arith.constant dense<0.000000e+00> : vector<32xf32>
    %249 = vector.multi_reduction <add>, %248, %cst_114 [1] : vector<32x32xf32> to vector<32xf32>
    %250 = vector.shape_cast %249 : vector<32xf32> to vector<32x1xf32>
    %251 = tpu.reciprocal %250 {approx = true} : vector<32x1xf32> -> vector<32x1xf32>
    %252 = vector.broadcast %251 : vector<32x1xf32> to vector<32x32xf32>
    %253 = arith.mulf %248, %252 : vector<32x32xf32>
    %cst_115 = arith.constant dense<0.000000e+00> : vector<32x8xf32>
    %254 = tpu.matmul %253, %240, %cst_115 {dimension_numbers = #tpu.dot_dimension_numbers<[1], [0], [0], [1], [0, 0, 1, 1], [], []>} : vector<32x32xf32>, vector<32x8xf32>, vector<32x8xf32> -> vector<32x8xf32>
    %c0_116 = arith.constant 0 : index
    %c16_117 = arith.constant 16 : index
    %255 = vector.load %arg19[%c0_116, %c16_117] : memref<32x32xf32, #tpu.memory_space<vmem>>, vector<32x8xf32>
    tpu.vector_store %arg19[%c0_116, %c16_117], %254 {strides = array<i32>} : memref<32x32xf32, #tpu.memory_space<vmem>>, vector<32x8xf32>,
    %256 = vector.extract_strided_slice %201 {offsets = [0, 24], sizes = [32, 8], strides = [1, 1]} : vector<32x96xf32> to vector<32x8xf32>
    %257 = vector.extract_strided_slice %201 {offsets = [0, 56], sizes = [32, 8], strides = [1, 1]} : vector<32x96xf32> to vector<32x8xf32>
    %258 = vector.extract_strided_slice %201 {offsets = [0, 88], sizes = [32, 8], strides = [1, 1]} : vector<32x96xf32> to vector<32x8xf32>
    %259 = tpu.transpose %257, [1, 0] : vector<32x8xf32> -> vector<8x32xf32>
    %cst_118 = arith.constant dense<0.000000e+00> : vector<32x32xf32>
    %260 = tpu.matmul %256, %259, %cst_118 {dimension_numbers = #tpu.dot_dimension_numbers<[1], [0], [0], [1], [0, 0, 1, 1], [], []>} : vector<32x8xf32>, vector<8x32xf32>, vector<32x32xf32> -> vector<32x32xf32>
    %261 = arith.addf %260, %5 : vector<32x32xf32>
    %cst_119 = arith.constant dense<0xFF800000> : vector<32xf32>
    %262 = vector.multi_reduction <maximumf>, %261, %cst_119 [1] : vector<32x32xf32> to vector<32xf32>
    %263 = vector.shape_cast %262 : vector<32xf32> to vector<32x1xf32>
    %264 = vector.broadcast %263 : vector<32x1xf32> to vector<32x32xf32>
    %265 = arith.subf %261, %264 : vector<32x32xf32>
    %266 = math.exp %265 : vector<32x32xf32>
    %cst_120 = arith.constant dense<0.000000e+00> : vector<32xf32>
    %267 = vector.multi_reduction <add>, %266, %cst_120 [1] : vector<32x32xf32> to vector<32xf32>
    %268 = vector.shape_cast %267 : vector<32xf32> to vector<32x1xf32>
    %269 = tpu.reciprocal %268 {approx = true} : vector<32x1xf32> -> vector<32x1xf32>
    %270 = vector.broadcast %269 : vector<32x1xf32> to vector<32x32xf32>
    %271 = arith.mulf %266, %270 : vector<32x32xf32>
    %cst_121 = arith.constant dense<0.000000e+00> : vector<32x8xf32>
    %272 = tpu.matmul %271, %258, %cst_121 {dimension_numbers = #tpu.dot_dimension_numbers<[1], [0], [0], [1], [0, 0, 1, 1], [], []>} : vector<32x32xf32>, vector<32x8xf32>, vector<32x8xf32> -> vector<32x8xf32>
    %c0_122 = arith.constant 0 : index
    %c24_123 = arith.constant 24 : index
    %273 = vector.load %arg19[%c0_122, %c24_123] : memref<32x32xf32, #tpu.memory_space<vmem>>, vector<32x8xf32>
    tpu.vector_store %arg19[%c0_122, %c24_123], %272 {strides = array<i32>} : memref<32x32xf32, #tpu.memory_space<vmem>>, vector<32x8xf32>,
    %c0_124 = arith.constant 0 : index
    %c0_125 = arith.constant 0 : index
    %274 = vector.load %arg19[%c0_124, %c0_125] : memref<32x32xf32, #tpu.memory_space<vmem>>, vector<32x32xf32>
    %c1_126 = arith.constant 1 : index
    %c0_127 = arith.constant 0 : index
    %c0_128 = arith.constant 0 : index
    %275 = vector.load %arg8[%c1_126, %c0_127, %c0_128] : memref<2x32x32xf32, #tpu.memory_space<vmem>>, vector<1x32x32xf32>
    %276 = vector.shape_cast %275 : vector<1x32x32xf32> to vector<32x32xf32>
    %cst_129 = arith.constant dense<0.000000e+00> : vector<32x32xf32>
    %277 = tpu.matmul %274, %276, %cst_129 {dimension_numbers = #tpu.dot_dimension_numbers<[1], [0], [0], [1], [0, 0, 1, 1], [], []>} : vector<32x32xf32>, vector<32x32xf32>, vector<32x32xf32> -> vector<32x32xf32>
    %c1_130 = arith.constant 1 : index
    %c0_131 = arith.constant 0 : index
    %c0_132 = arith.constant 0 : index
    %278 = vector.load %arg9[%c1_130, %c0_131, %c0_132] : memref<2x1x32xf32, #tpu.memory_space<vmem>>, vector<1x1x32xf32>
    %279 = vector.shape_cast %278 : vector<1x1x32xf32> to vector<1x32xf32>
    %280 = vector.broadcast %279 : vector<1x32xf32> to vector<32x32xf32>
    %281 = arith.addf %277, %280 : vector<32x32xf32>
    %282 = arith.addf %281, %168 : vector<32x32xf32>
    %c1_133 = arith.constant 1 : index
    %c0_134 = arith.constant 0 : index
    %c0_135 = arith.constant 0 : index
    %283 = vector.load %arg10[%c1_133, %c0_134, %c0_135] : memref<2x1x32xf32, #tpu.memory_space<vmem>>, vector<1x1x32xf32>
    %284 = vector.shape_cast %283 : vector<1x1x32xf32> to vector<1x32xf32>
    %c1_136 = arith.constant 1 : index
    %c0_137 = arith.constant 0 : index
    %c0_138 = arith.constant 0 : index
    %285 = vector.load %arg11[%c1_136, %c0_137, %c0_138] : memref<2x1x32xf32, #tpu.memory_space<vmem>>, vector<1x1x32xf32>
    %286 = vector.shape_cast %285 : vector<1x1x32xf32> to vector<1x32xf32>
    %cst_139 = arith.constant dense<0.000000e+00> : vector<32xf32>
    %287 = vector.multi_reduction <add>, %282, %cst_139 [1] : vector<32x32xf32> to vector<32xf32>
    %288 = vector.shape_cast %287 : vector<32xf32> to vector<32x1xf32>
    %cst_140 = arith.constant 3.200000e+01 : f32
    %289 = vector.broadcast %cst_140 : f32 to vector<32x1xf32>
    %290 = arith.divf %288, %289 : vector<32x1xf32>
    %291 = vector.broadcast %290 : vector<32x1xf32> to vector<32x32xf32>
    %292 = arith.subf %282, %291 : vector<32x32xf32>
    %293 = arith.mulf %292, %292 : vector<32x32xf32>
    %cst_141 = arith.constant dense<0.000000e+00> : vector<32xf32>
    %294 = vector.multi_reduction <add>, %293, %cst_141 [1] : vector<32x32xf32> to vector<32xf32>
    %295 = vector.shape_cast %294 : vector<32xf32> to vector<32x1xf32>
    %cst_142 = arith.constant 3.200000e+01 : f32
    %296 = vector.broadcast %cst_142 : f32 to vector<32x1xf32>
    %297 = arith.divf %295, %296 : vector<32x1xf32>
    %298 = vector.broadcast %290 : vector<32x1xf32> to vector<32x32xf32>
    %299 = arith.subf %282, %298 : vector<32x32xf32>
    %cst_143 = arith.constant 9.99999997E-7 : f32
    %300 = vector.broadcast %cst_143 : f32 to vector<32x1xf32>
    %301 = arith.addf %297, %300 : vector<32x1xf32>
    %302 = math.rsqrt %301 : vector<32x1xf32>
    %303 = vector.broadcast %302 : vector<32x1xf32> to vector<32x32xf32>
    %304 = arith.mulf %299, %303 : vector<32x32xf32>
    %305 = vector.broadcast %284 : vector<1x32xf32> to vector<32x32xf32>
    %306 = arith.mulf %304, %305 : vector<32x32xf32>
    %307 = vector.broadcast %286 : vector<1x32xf32> to vector<32x32xf32>
    %308 = arith.addf %306, %307 : vector<32x32xf32>
    %c1_144 = arith.constant 1 : index
    %c0_145 = arith.constant 0 : index
    %c0_146 = arith.constant 0 : index
    %309 = vector.load %arg12[%c1_144, %c0_145, %c0_146] : memref<2x32x64xf32, #tpu.memory_space<vmem>>, vector<1x32x64xf32>
    %310 = vector.shape_cast %309 : vector<1x32x64xf32> to vector<32x64xf32>
    %cst_147 = arith.constant dense<0.000000e+00> : vector<32x64xf32>
    %311 = tpu.matmul %308, %310, %cst_147 {dimension_numbers = #tpu.dot_dimension_numbers<[1], [0], [0], [1], [0, 0, 1, 1], [], []>} : vector<32x32xf32>, vector<32x64xf32>, vector<32x64xf32> -> vector<32x64xf32>
    %c1_148 = arith.constant 1 : index
    %c0_149 = arith.constant 0 : index
    %c0_150 = arith.constant 0 : index
    %312 = vector.load %arg13[%c1_148, %c0_149, %c0_150] : memref<2x1x64xf32, #tpu.memory_space<vmem>>, vector<1x1x64xf32>
    %313 = vector.shape_cast %312 : vector<1x1x64xf32> to vector<1x64xf32>
    %314 = vector.broadcast %313 : vector<1x64xf32> to vector<32x64xf32>
    %315 = arith.addf %311, %314 : vector<32x64xf32>
    %cst_151 = arith.constant 5.000000e-01 : f32
    %316 = vector.broadcast %cst_151 : f32 to vector<32x64xf32>
    %317 = arith.mulf %316, %315 : vector<32x64xf32>
    %cst_152 = arith.constant 0.707106769 : f32
    %318 = vector.broadcast %cst_152 : f32 to vector<32x64xf32>
    %319 = arith.mulf %315, %318 : vector<32x64xf32>
    %320 = math.erf %319 : vector<32x64xf32>
    %cst_153 = arith.constant 1.000000e+00 : f32
    %321 = vector.broadcast %cst_153 : f32 to vector<32x64xf32>
    %322 = arith.addf %321, %320 : vector<32x64xf32>
    %323 = arith.mulf %317, %322 : vector<32x64xf32>
    %c1_154 = arith.constant 1 : index
    %c0_155 = arith.constant 0 : index
    %c0_156 = arith.constant 0 : index
    %324 = vector.load %arg14[%c1_154, %c0_155, %c0_156] : memref<2x64x32xf32, #tpu.memory_space<vmem>>, vector<1x64x32xf32>
    %325 = vector.shape_cast %324 : vector<1x64x32xf32> to vector<64x32xf32>
    %cst_157 = arith.constant dense<0.000000e+00> : vector<32x32xf32>
    %326 = tpu.matmul %323, %325, %cst_157 {dimension_numbers = #tpu.dot_dimension_numbers<[1], [0], [0], [1], [0, 0, 1, 1], [], []>} : vector<32x64xf32>, vector<64x32xf32>, vector<32x32xf32> -> vector<32x32xf32>
    %c1_158 = arith.constant 1 : index
    %c0_159 = arith.constant 0 : index
    %c0_160 = arith.constant 0 : index
    %327 = vector.load %arg15[%c1_158, %c0_159, %c0_160] : memref<2x1x32xf32, #tpu.memory_space<vmem>>, vector<1x1x32xf32>
    %328 = vector.shape_cast %327 : vector<1x1x32xf32> to vector<1x32xf32>
    %329 = vector.broadcast %328 : vector<1x32xf32> to vector<32x32xf32>
    %330 = arith.addf %326, %329 : vector<32x32xf32>
    %331 = arith.addf %330, %282 : vector<32x32xf32>
    %c0_161 = arith.constant 0 : index
    %c0_162 = arith.constant 0 : index
    %332 = vector.load %arg16[%c0_161, %c0_162] : memref<1x32xf32, #tpu.memory_space<vmem>>, vector<1x32xf32>
    %c0_163 = arith.constant 0 : index
    %c0_164 = arith.constant 0 : index
    %333 = vector.load %arg17[%c0_163, %c0_164] : memref<1x32xf32, #tpu.memory_space<vmem>>, vector<1x32xf32>
    %cst_165 = arith.constant dense<0.000000e+00> : vector<32xf32>
    %334 = vector.multi_reduction <add>, %331, %cst_165 [1] : vector<32x32xf32> to vector<32xf32>
    %335 = vector.shape_cast %334 : vector<32xf32> to vector<32x1xf32>
    %cst_166 = arith.constant 3.200000e+01 : f32
    %336 = vector.broadcast %cst_166 : f32 to vector<32x1xf32>
    %337 = arith.divf %335, %336 : vector<32x1xf32>
    %338 = vector.broadcast %337 : vector<32x1xf32> to vector<32x32xf32>
    %339 = arith.subf %331, %338 : vector<32x32xf32>
    %340 = arith.mulf %339, %339 : vector<32x32xf32>
    %cst_167 = arith.constant dense<0.000000e+00> : vector<32xf32>
    %341 = vector.multi_reduction <add>, %340, %cst_167 [1] : vector<32x32xf32> to vector<32xf32>
    %342 = vector.shape_cast %341 : vector<32xf32> to vector<32x1xf32>
    %cst_168 = arith.constant 3.200000e+01 : f32
    %343 = vector.broadcast %cst_168 : f32 to vector<32x1xf32>
    %344 = arith.divf %342, %343 : vector<32x1xf32>
    %345 = vector.broadcast %337 : vector<32x1xf32> to vector<32x32xf32>
    %346 = arith.subf %331, %345 : vector<32x32xf32>
    %cst_169 = arith.constant 9.99999997E-7 : f32
    %347 = vector.broadcast %cst_169 : f32 to vector<32x1xf32>
    %348 = arith.addf %344, %347 : vector<32x1xf32>
    %349 = math.rsqrt %348 : vector<32x1xf32>
    %350 = vector.broadcast %349 : vector<32x1xf32> to vector<32x32xf32>
    %351 = arith.mulf %346, %350 : vector<32x32xf32>
    %352 = vector.broadcast %332 : vector<1x32xf32> to vector<32x32xf32>
    %353 = arith.mulf %351, %352 : vector<32x32xf32>
    %354 = vector.broadcast %333 : vector<1x32xf32> to vector<32x32xf32>
    %355 = arith.addf %353, %354 : vector<32x32xf32>
    %c0_170 = arith.constant 0 : index
    %c0_171 = arith.constant 0 : index
    %356 = vector.load %arg18[%c0_170, %c0_171] : memref<32x32xf32, #tpu.memory_space<vmem>>, vector<32x32xf32>
    tpu.vector_store %arg18[%c0_170, %c0_171], %355 {strides = array<i32>} : memref<32x32xf32, #tpu.memory_space<vmem>>, vector<32x32xf32>,
    return
  }
}

</mosaic_0001>

<llo_original>
// kernel: transformer_forward.1
$region0: #{transformer_forward.1}
  #allocation0 [shape = 'u32[]', space=smem, size = 0x4, offset = 0x4, fixed_abs, tag = 'smem constant byte address 0x4 - core index']
  #allocation1 [shape = 'u32[144,128]{1,0:T(1,128)}', space=vmem, size = 0x12000, scoped, tag = 'internal scratch']
  #allocation2 [shape = 'f32[32,32]{1,0:T(8,128)}', space=vmem, size = 0x4000, scoped, tag = 'scratch operand']
  %s0 = inlined_call_operand.vmem [shape: f32[32,48], index: 0, kind: input, shape index: {}]
  %s1 = inlined_call_operand.vmem [shape: f32[32,32], index: 1, kind: input, shape index: {}]
  %s2 = inlined_call_operand.vmem [shape: f32[48,32], index: 2, kind: input, shape index: {}]
  %s3 = inlined_call_operand.vmem [shape: f32[32,32], index: 3, kind: input, shape index: {}]
  %s4 = inlined_call_operand.vmem [shape: f32[2,1,32], index: 4, kind: input, shape index: {}]
  %s5 = inlined_call_operand.vmem [shape: f32[2,1,32], index: 5, kind: input, shape index: {}]
  %s6 = inlined_call_operand.vmem [shape: f32[2,32,96], index: 6, kind: input, shape index: {}]
  %s7 = inlined_call_operand.vmem [shape: f32[2,1,96], index: 7, kind: input, shape index: {}]
  %s8 = inlined_call_operand.vmem [shape: f32[2,32,32], index: 8, kind: input, shape index: {}]
  %s9 = inlined_call_operand.vmem [shape: f32[2,1,32], index: 9, kind: input, shape index: {}]
  %s10 = inlined_call_operand.vmem [shape: f32[2,1,32], index: 10, kind: input, shape index: {}]
  %s11 = inlined_call_operand.vmem [shape: f32[2,1,32], index: 11, kind: input, shape index: {}]
  %s12 = inlined_call_operand.vmem [shape: f32[2,32,64], index: 12, kind: input, shape index: {}]
  %s13 = inlined_call_operand.vmem [shape: f32[2,1,64], index: 13, kind: input, shape index: {}]
  %s14 = inlined_call_operand.vmem [shape: f32[2,64,32], index: 14, kind: input, shape index: {}]
  %s15 = inlined_call_operand.vmem [shape: f32[2,1,32], index: 15, kind: input, shape index: {}]
  %s16 = inlined_call_operand.vmem [shape: f32[1,32], index: 16, kind: input, shape index: {}]
  %s17 = inlined_call_operand.vmem [shape: f32[1,32], index: 17, kind: input, shape index: {}]
  %s18 = inlined_call_operand.hbm [shape: f32[32,32], index: 18, kind: output, shape index: {}]
  %s19 = sld [smem:[#allocation0]]
  $region82: #{transformer_forward.1} parent=0
    _
  %s21 = ssub.s32 1, %s19
  %s22 = scalar_select 0, %s21, %s19
  $region1: #{transformer_forward.1} parent=0
    #allocation3 [shape = 'u8[16384]{0}', space=vmem, size = 0x4000, scoped, tag = 'output window, operand 0, single buffered']
    #allocation4 [shape = 's32[1]{0}', space=sflag, size = 0x4, scoped, tag = 'scoped memory for transformer_forward.1']
    %23 = vsyncpa [#allocation4], 0
    // Predicated region
    $region2: #{transformer_forward.1} parent=1 // pred_check
      _
    $region3: #{transformer_forward.1} parent=1 // pred_check_branch
      %25 = sbr.rel (0) target = $region5
    $region4: #{transformer_forward.1} parent=1 // pred_region
      _
    $region5: #{transformer_forward.1} parent=1 // pred_fallthru
      _
    // Predicated region
    $region6: #{transformer_forward.1} parent=1 // pred_check
      _
    $region7: #{transformer_forward.1} parent=1 // pred_check_branch
      %27 = sbr.rel (0) target = $region9
    $region8: #{transformer_forward.1} parent=1 // pred_region
      _
    $region9: #{transformer_forward.1} parent=1 // pred_fallthru
      _
    // Predicated region
    $region10: #{transformer_forward.1} parent=1 // pred_check
      _
    $region11: #{transformer_forward.1} parent=1 // pred_check_branch
      %29 = sbr.rel (0) target = $region13
    $region12: #{transformer_forward.1} parent=1 // pred_region
      _
    $region13: #{transformer_forward.1} parent=1 // pred_fallthru
      _
    // Predicated region
    $region14: #{transformer_forward.1} parent=1 // pred_check
      _
    $region15: #{transformer_forward.1} parent=1 // pred_check_branch
      %31 = sbr.rel (0) target = $region17
    $region16: #{transformer_forward.1} parent=1 // pred_region
      _
    $region17: #{transformer_forward.1} parent=1 // pred_fallthru
      _
    // Predicated region
    $region18: #{transformer_forward.1} parent=1 // pred_check
      _
    $region19: #{transformer_forward.1} parent=1 // pred_check_branch
      %33 = sbr.rel (0) target = $region21
    $region20: #{transformer_forward.1} parent=1 // pred_region
      _
    $region21: #{transformer_forward.1} parent=1 // pred_fallthru
      _
    // Predicated region
    $region22: #{transformer_forward.1} parent=1 // pred_check
      _
    $region23: #{transformer_forward.1} parent=1 // pred_check_branch
      %35 = sbr.rel (0) target = $region25
    $region24: #{transformer_forward.1} parent=1 // pred_region
      _
    $region25: #{transformer_forward.1} parent=1 // pred_fallthru
      _
    // Predicated region
    $region26: #{transformer_forward.1} parent=1 // pred_check
      _
    $region27: #{transformer_forward.1} parent=1 // pred_check_branch
      %37 = sbr.rel (0) target = $region29
    $region28: #{transformer_forward.1} parent=1 // pred_region
      _
    $region29: #{transformer_forward.1} parent=1 // pred_fallthru
      _
    // Predicated region
    $region30: #{transformer_forward.1} parent=1 // pred_check
      _
    $region31: #{transformer_forward.1} parent=1 // pred_check_branch
      %39 = sbr.rel (0) target = $region33
    $region32: #{transformer_forward.1} parent=1 // pred_region
      _
    $region33: #{transformer_forward.1} parent=1 // pred_fallthru
      _
    // Predicated region
    $region34: #{transformer_forward.1} parent=1 // pred_check
      _
    $region35: #{transformer_forward.1} parent=1 // pred_check_branch
      %41 = sbr.rel (0) target = $region37
    $region36: #{transformer_forward.1} parent=1 // pred_region
      _
    $region37: #{transformer_forward.1} parent=1 // pred_fallthru
      _
    // Predicated region
    $region38: #{transformer_forward.1} parent=1 // pred_check
      _
    $region39: #{transformer_forward.1} parent=1 // pred_check_branch
      %43 = sbr.rel (0) target = $region41
    $region40: #{transformer_forward.1} parent=1 // pred_region
      _
    $region41: #{transformer_forward.1} parent=1 // pred_fallthru
      _
    // Predicated region
    $region42: #{transformer_forward.1} parent=1 // pred_check
      _
    $region43: #{transformer_forward.1} parent=1 // pred_check_branch
      %45 = sbr.rel (0) target = $region45
    $region44: #{transformer_forward.1} parent=1 // pred_region
      _
    $region45: #{transformer_forward.1} parent=1 // pred_fallthru
      _
    // Predicated region
    $region46: #{transformer_forward.1} parent=1 // pred_check
      _
    $region47: #{transformer_forward.1} parent=1 // pred_check_branch
      %47 = sbr.rel (0) target = $region49
    $region48: #{transformer_forward.1} parent=1 // pred_region
      _
    $region49: #{transformer_forward.1} parent=1 // pred_fallthru
      _
    // Predicated region
    $region50: #{transformer_forward.1} parent=1 // pred_check
      _
    $region51: #{transformer_forward.1} parent=1 // pred_check_branch
      %49 = sbr.rel (0) target = $region53
    $region52: #{transformer_forward.1} parent=1 // pred_region
      _
    $region53: #{transformer_forward.1} parent=1 // pred_fallthru
      _
    // Predicated region
    $region54: #{transformer_forward.1} parent=1 // pred_check
      _
    $region55: #{transformer_forward.1} parent=1 // pred_check_branch
      %51 = sbr.rel (0) target = $region57
    $region56: #{transformer_forward.1} parent=1 // pred_region
      _
    $region57: #{transformer_forward.1} parent=1 // pred_fallthru
      _
    // Predicated region
    $region58: #{transformer_forward.1} parent=1 // pred_check
      _
    $region59: #{transformer_forward.1} parent=1 // pred_check_branch
      %53 = sbr.rel (0) target = $region61
    $region60: #{transformer_forward.1} parent=1 // pred_region
      _
    $region61: #{transformer_forward.1} parent=1 // pred_fallthru
      _
    // Predicated region
    $region62: #{transformer_forward.1} parent=1 // pred_check
      _
    $region63: #{transformer_forward.1} parent=1 // pred_check_branch
      %55 = sbr.rel (0) target = $region65
    $region64: #{transformer_forward.1} parent=1 // pred_region
      _
    $region65: #{transformer_forward.1} parent=1 // pred_fallthru
      _
    // Predicated region
    $region66: #{transformer_forward.1} parent=1 // pred_check
      _
    $region67: #{transformer_forward.1} parent=1 // pred_check_branch
      %57 = sbr.rel (0) target = $region69
    $region68: #{transformer_forward.1} parent=1 // pred_region
      _
    $region69: #{transformer_forward.1} parent=1 // pred_fallthru
      _
    // Predicated region
    $region70: #{transformer_forward.1} parent=1 // pred_check
      _
    $region71: #{transformer_forward.1} parent=1 // pred_check_branch
      %59 = sbr.rel (0) target = $region73
    $region72: #{transformer_forward.1} parent=1 // pred_region
      _
    $region73: #{transformer_forward.1} parent=1 // pred_fallthru
      _
    %v60 = vld [vmem:[%s0] sm:$0xff]
    %v61 = vld [vmem:[%s0 + $0x8] sm:$0xff]
    %v62 = vld [vmem:[%s0 + $0x10] sm:$0xff]
    %v63 = vld [vmem:[%s0 + $0x18] sm:$0xff]
    %v64 = vld [vmem:[%s2] sm:$0xff]
    %v65 = vld [vmem:[%s2 + $0x8] sm:$0xff]
    %v66 = vld [vmem:[%s2 + $0x10] sm:$0xff]
    %v67 = vld [vmem:[%s2 + $0x18] sm:$0xff]
    %v68 = vld [vmem:[%s2 + $0x20] sm:$0xff]
    %v69 = vld [vmem:[%s2 + $0x28] sm:$0xff]
    %v70 = vld [vmem:[%s3] sm:$0xff]
    %v71 = vld [vmem:[%s3 + $0x8] sm:$0xff]
    %v72 = vld [vmem:[%s3 + $0x10] sm:$0xff]
    %v73 = vld [vmem:[%s3 + $0x18] sm:$0xff]
    %vm74 = vcmask 392192
    %v76 = vsel %vm74, %v60, 0
    %v79 = vsel %vm74, %v61, 0
    %v82 = vsel %vm74, %v62, 0
    %v85 = vsel %vm74, %v63, 0
    %87 = vmatprep.subr.mxu0 0.0
    %88 = vmatpush1.msra.mxu0 0.0
    %89 = vmatprep.subr.mxu0 0.0
    %90 = vmatpush1.msra.mxu0 0.0
    %91 = vmatprep.subr.mxu0 0.0
    %92 = vmatpush1.msra.mxu0 0.0
    %93 = vmatprep.subr.mxu0 0.0
    %94 = vmatpush1.msra.mxu0 0.0
    %95 = vmatprep.subr.mxu0 0.0
    %96 = vmatpush1.msra.mxu0 0.0
    %97 = vmatprep.subr.mxu0 0.0
    %98 = vmatpush1.msra.mxu0 0.0
    %99 = vmatprep.subr.mxu0 0.0
    %100 = vmatpush1.msra.mxu0 0.0
    %101 = vmatprep.subr.mxu0 0.0
    %102 = vmatpush1.msra.mxu0 0.0
    %103 = vmatprep.subr.mxu0 0.0
    %104 = vmatpush1.msra.mxu0 0.0
    %105 = vmatprep.subr.mxu0 0.0
    %106 = vmatpush1.msra.mxu0 0.0
    %107 = vmatprep.subr.mxu0 0.0
    %108 = vmatpush1.msra.mxu0 %v69
    %109 = vmatprep.subr.mxu0 0.0
    %110 = vmatpush1.msra.mxu0 %v68
    %111 = vmatprep.subr.mxu0 0.0
    %112 = vmatpush1.msra.mxu0 %v67
    %113 = vmatprep.subr.mxu0 0.0
    %114 = vmatpush1.msra.mxu0 %v66
    %115 = vmatprep.subr.mxu0 0.0
    %116 = vmatpush1.msra.mxu0 %v65
    %117 = vmatprep.subr.mxu0 0.0
    %118 = vmatpush1.msra.mxu0 %v64
    %119 = vmatprep.subr.mxu0 0.0
    %120 = vmatpush2.msra.mxu0 0.0
    %121 = vmatprep.subr.mxu0 0.0
    %122 = vmatpush2.msra.mxu0 0.0
    %123 = vmatprep.subr.mxu0 0.0
    %124 = vmatpush2.msra.mxu0 0.0
    %125 = vmatprep.subr.mxu0 0.0
    %126 = vmatpush2.msra.mxu0 0.0
    %127 = vmatprep.subr.mxu0 0.0
    %128 = vmatpush2.msra.mxu0 0.0
    %129 = vmatprep.subr.mxu0 0.0
    %130 = vmatpush2.msra.mxu0 0.0
    %131 = vmatprep.subr.mxu0 0.0
    %132 = vmatpush2.msra.mxu0 0.0
    %133 = vmatprep.subr.mxu0 0.0
    %134 = vmatpush2.msra.mxu0 0.0
    %135 = vmatprep.subr.mxu0 0.0
    %136 = vmatpush2.msra.mxu0 0.0
    %137 = vmatprep.subr.mxu0 0.0
    %138 = vmatpush2.msra.mxu0 0.0
    %139 = vmatprep.subr.mxu0 0.0
    %140 = vmatpush2.msra.mxu0 0.0
    %141 = vmatprep.subr.mxu0 0.0
    %142 = vmatpush2.msra.mxu0 0.0
    %143 = vmatprep.subr.mxu0 0.0
    %144 = vmatpush2.msra.mxu0 0.0
    %145 = vmatprep.subr.mxu0 0.0
    %146 = vmatpush2.msra.mxu0 0.0
    %147 = vmatprep.subr.mxu0 0.0
    %148 = vmatpush2.msra.mxu0 0.0
    %149 = vmatprep.subr.mxu0 0.0
    %150 = vmatpush2.msra.mxu0 0.0
    %151 = vmatprep.mubr.f32.mxu0 0.0
    %152 = vmatmul.mubr.f32.gmra.mxu0 %v76
    %v153 = vpop.f32.mrf.mxu0
    %v154 = vadd.f32 %v70, %v153
    %v155 = vpop.f32.mrf.mxu0
    %156 = vmatprep.mubr.f32.mxu0 0.0
    %157 = vmatmul.mubr.f32.gmra.mxu0 %v79
    %v158 = vpop.f32.mrf.mxu0
    %v159 = vadd.f32 %v71, %v158
    %v160 = vpop.f32.mrf.mxu0
    %161 = vmatprep.mubr.f32.mxu0 0.0
    %162 = vmatmul.mubr.f32.gmra.mxu0 %v82
    %v163 = vpop.f32.mrf.mxu0
    %v164 = vadd.f32 %v72, %v163
    %v165 = vpop.f32.mrf.mxu0
    %166 = vmatprep.mubr.f32.mxu0 0.0
    %167 = vmatmul.mubr.f32.gmra.mxu0 %v85
    %v168 = vpop.f32.mrf.mxu0
    %v169 = vadd.f32 %v73, %v168
    %v170 = vpop.f32.mrf.mxu0
    %171 = vdwg.mxu0
    %v172 = vld [vmem:[%s1] sm:$0xff]
    %v173 = vld [vmem:[%s1 + $0x8] sm:$0xff]
    %v174 = vld [vmem:[%s1 + $0x10] sm:$0xff]
    %v175 = vld [vmem:[%s1 + $0x18] sm:$0xff]
    %v176 = vld [vmem:[%s4] sm:$0x1]
    %v177 = vld [vmem:[%s5] sm:$0x1]
    %vm178 = vcmask 261120
    %v179 = vsel %vm178, %v154, 0.0
    %180 = vadd.xlane.f32.xlu0 %v179
    %v181 = vpop.xlane.xlu0 %180
    %v182 = vsel %vm178, %v159, 0.0
    %183 = vadd.xlane.f32.xlu0 %v182
    %v184 = vpop.xlane.xlu0 %183
    %v185 = vsel %vm178, %v164, 0.0
    %186 = vadd.xlane.f32.xlu0 %v185
    %v187 = vpop.xlane.xlu0 %186
    %v188 = vsel %vm178, %v169, 0.0
    %189 = vadd.xlane.f32.xlu0 %v188
    %v190 = vpop.xlane.xlu0 %189
    %v191 = vrcp.pop 32.0
    %v192 = vmul.f32 %v181, %v191
    %v193 = vmul.f32 %v184, %v191
    %v194 = vmul.f32 %v187, %v191
    %v195 = vmul.f32 %v190, %v191
    %v196 = vsub.f32 %v154, %v192
    %v197 = vsub.f32 %v159, %v193
    %v198 = vsub.f32 %v164, %v194
    %v199 = vsub.f32 %v169, %v195
    %v200 = vmul.f32 %v196, %v196
    %v201 = vmul.f32 %v197, %v197
    %v202 = vmul.f32 %v198, %v198
    %v203 = vmul.f32 %v199, %v199
    %v204 = vsel %vm178, %v200, 0.0
    %205 = vadd.xlane.f32.xlu0 %v204
    %v206 = vpop.xlane.xlu0 %205
    %v207 = vsel %vm178, %v201, 0.0
    %208 = vadd.xlane.f32.xlu0 %v207
    %v209 = vpop.xlane.xlu0 %208
    %v210 = vsel %vm178, %v202, 0.0
    %211 = vadd.xlane.f32.xlu0 %v210
    %v212 = vpop.xlane.xlu0 %211
    %v213 = vsel %vm178, %v203, 0.0
    %214 = vadd.xlane.f32.xlu0 %v213
    %v215 = vpop.xlane.xlu0 %214
    %v216 = vmul.f32 %v206, %v191
    %v217 = vmul.f32 %v209, %v191
    %v218 = vmul.f32 %v212, %v191
    %v219 = vmul.f32 %v215, %v191
    %v220 = vadd.f32 %v216, 1e-06
    %v221 = vadd.f32 %v217, 1e-06
    %v222 = vadd.f32 %v218, 1e-06
    %v223 = vadd.f32 %v219, 1e-06
    %v224 = vrsqrt.pop %v220
    %v225 = vrsqrt.pop %v221
    %v226 = vrsqrt.pop %v222
    %v227 = vrsqrt.pop %v223
    %v228 = vmul.f32 %v196, %v224
    %v229 = vmul.f32 %v197, %v225
    %v230 = vmul.f32 %v198, %v226
    %v231 = vmul.f32 %v199, %v227
    %v233 = vlaneseq
    %v234 = vshrl.u32 %v233, 7
    %v235 = vsub.s32 0, %v234
    %v236 = vrot.slane %v176, %v235
    %v238 = vmul.f32 %v228, %v236
    %v239 = vmul.f32 %v229, %v236
    %v240 = vmul.f32 %v230, %v236
    %v241 = vmul.f32 %v231, %v236
    %v243 = vlaneseq
    %v244 = vshrl.u32 %v243, 7
    %v245 = vsub.s32 0, %v244
    %v246 = vrot.slane %v177, %v245
    %v248 = vadd.f32 %v238, %v246
    %v249 = vadd.f32 %v239, %v246
    %v250 = vadd.f32 %v240, %v246
    %v251 = vadd.f32 %v241, %v246
    %v252 = vld [vmem:[%s6] sm:$0xff]
    %v253 = vld [vmem:[%s6 + $0x8] sm:$0xff]
    %v254 = vld [vmem:[%s6 + $0x10] sm:$0xff]
    %v255 = vld [vmem:[%s6 + $0x18] sm:$0xff]
    %v256 = vld [vmem:[%s7] sm:$0x1]
    %v258 = vlaneseq
    %v259 = vshrl.u32 %v258, 7
    %v260 = vsub.s32 0, %v259
    %v261 = vrot.slane %v256, %v260
    %v264 = vsel %vm178, %v248, 0
    %v267 = vsel %vm178, %v249, 0
    %v270 = vsel %vm178, %v250, 0
    %v273 = vsel %vm178, %v251, 0
    %275 = vmatprep.subr.mxu0 0.0
    %276 = vmatpush1.msra.mxu0 0.0
    %277 = vmatprep.subr.mxu0 0.0
    %278 = vmatpush1.msra.mxu0 0.0
    %279 = vmatprep.subr.mxu0 0.0
    %280 = vmatpush1.msra.mxu0 0.0
    %281 = vmatprep.subr.mxu0 0.0
    %282 = vmatpush1.msra.mxu0 0.0
    %283 = vmatprep.subr.mxu0 0.0
    %284 = vmatpush1.msra.mxu0 0.0
    %285 = vmatprep.subr.mxu0 0.0
    %286 = vmatpush1.msra.mxu0 0.0
    %287 = vmatprep.subr.mxu0 0.0
    %288 = vmatpush1.msra.mxu0 0.0
    %289 = vmatprep.subr.mxu0 0.0
    %290 = vmatpush1.msra.mxu0 0.0
    %291 = vmatprep.subr.mxu0 0.0
    %292 = vmatpush1.msra.mxu0 0.0
    %293 = vmatprep.subr.mxu0 0.0
    %294 = vmatpush1.msra.mxu0 0.0
    %295 = vmatprep.subr.mxu0 0.0
    %296 = vmatpush1.msra.mxu0 0.0
    %297 = vmatprep.subr.mxu0 0.0
    %298 = vmatpush1.msra.mxu0 0.0
    %299 = vmatprep.subr.mxu0 0.0
    %300 = vmatpush1.msra.mxu0 %v255
    %301 = vmatprep.subr.mxu0 0.0
    %302 = vmatpush1.msra.mxu0 %v254
    %303 = vmatprep.subr.mxu0 0.0
    %304 = vmatpush1.msra.mxu0 %v253
    %305 = vmatprep.subr.mxu0 0.0
    %306 = vmatpush1.msra.mxu0 %v252
    %307 = vmatprep.subr.mxu0 0.0
    %308 = vmatpush2.msra.mxu0 0.0
    %309 = vmatprep.subr.mxu0 0.0
    %310 = vmatpush2.msra.mxu0 0.0
    %311 = vmatprep.subr.mxu0 0.0
    %312 = vmatpush2.msra.mxu0 0.0
    %313 = vmatprep.subr.mxu0 0.0
    %314 = vmatpush2.msra.mxu0 0.0
    %315 = vmatprep.subr.mxu0 0.0
    %316 = vmatpush2.msra.mxu0 0.0
    %317 = vmatprep.subr.mxu0 0.0
    %318 = vmatpush2.msra.mxu0 0.0
    %319 = vmatprep.subr.mxu0 0.0
    %320 = vmatpush2.msra.mxu0 0.0
    %321 = vmatprep.subr.mxu0 0.0
    %322 = vmatpush2.msra.mxu0 0.0
    %323 = vmatprep.subr.mxu0 0.0
    %324 = vmatpush2.msra.mxu0 0.0
    %325 = vmatprep.subr.mxu0 0.0
    %326 = vmatpush2.msra.mxu0 0.0
    %327 = vmatprep.subr.mxu0 0.0
    %328 = vmatpush2.msra.mxu0 0.0
    %329 = vmatprep.subr.mxu0 0.0
    %330 = vmatpush2.msra.mxu0 0.0
    %331 = vmatprep.subr.mxu0 0.0
    %332 = vmatpush2.msra.mxu0 0.0
    %333 = vmatprep.subr.mxu0 0.0
    %334 = vmatpush2.msra.mxu0 0.0
    %335 = vmatprep.subr.mxu0 0.0
    %336 = vmatpush2.msra.mxu0 0.0
    %337 = vmatprep.subr.mxu0 0.0
    %338 = vmatpush2.msra.mxu0 0.0
    %339 = vmatprep.mubr.f32.mxu0 0.0
    %340 = vmatmul.mubr.f32.gmra.mxu0 %v264
    %v341 = vpop.f32.mrf.mxu0
    %v342 = vadd.f32 %v261, %v341
    %v343 = vpop.f32.mrf.mxu0
    %344 = vmatprep.mubr.f32.mxu0 0.0
    %345 = vmatmul.mubr.f32.gmra.mxu0 %v267
    %v346 = vpop.f32.mrf.mxu0
    %v347 = vadd.f32 %v261, %v346
    %v348 = vpop.f32.mrf.mxu0
    %349 = vmatprep.mubr.f32.mxu0 0.0
    %350 = vmatmul.mubr.f32.gmra.mxu0 %v270
    %v351 = vpop.f32.mrf.mxu0
    %v352 = vadd.f32 %v261, %v351
    %v353 = vpop.f32.mrf.mxu0
    %354 = vmatprep.mubr.f32.mxu0 0.0
    %355 = vmatmul.mubr.f32.gmra.mxu0 %v273
    %v356 = vpop.f32.mrf.mxu0
    %v357 = vadd.f32 %v261, %v356
    %v358 = vpop.f32.mrf.mxu0
    %359 = vdwg.mxu0
    %364 = vrot.lane.b32.xlu0 %v342, 96
    %v365 = vpop.permute.xlu0 %364
    %366 = vrot.lane.b32.xlu0 %v347, 96
    %v367 = vpop.permute.xlu0 %366
    %368 = vrot.lane.b32.xlu0 %v352, 96
    %v369 = vpop.permute.xlu0 %368
    %370 = vrot.lane.b32.xlu0 %v357, 96
    %v371 = vpop.permute.xlu0 %370
    %vm372 = vcmask 64512
    %v373 = vsel %vm372, %v342, 0
    %v375 = vsel %vm372, %v347, 0
    %v377 = vsel %vm372, %v352, 0
    %v379 = vsel %vm372, %v357, 0
    %v381 = vsel %vm372, %v365, 0
    %v383 = vsel %vm372, %v367, 0
    %v385 = vsel %vm372, %v369, 0
    %v387 = vsel %vm372, %v371, 0
    %389 = vmatprep.subr.mxu0 0.0
    %390 = vmatpush1.xpose.msra.mxu0 0.0
    %391 = vmatprep.subr.mxu0 0.0
    %392 = vmatpush1.xpose.msra.mxu0 0.0
    %393 = vmatprep.subr.mxu0 0.0
    %394 = vmatpush1.xpose.msra.mxu0 0.0
    %395 = vmatprep.subr.mxu0 0.0
    %396 = vmatpush1.xpose.msra.mxu0 0.0
    %397 = vmatprep.subr.mxu0 0.0
    %398 = vmatpush1.xpose.msra.mxu0 0.0
    %399 = vmatprep.subr.mxu0 0.0
    %400 = vmatpush1.xpose.msra.mxu0 0.0
    %401 = vmatprep.subr.mxu0 0.0
    %402 = vmatpush1.xpose.msra.mxu0 0.0
    %403 = vmatprep.subr.mxu0 0.0
    %404 = vmatpush1.xpose.msra.mxu0 0.0
    %405 = vmatprep.subr.mxu0 0.0
    %406 = vmatpush1.xpose.msra.mxu0 0.0
    %407 = vmatprep.subr.mxu0 0.0
    %408 = vmatpush1.xpose.msra.mxu0 0.0
    %409 = vmatprep.subr.mxu0 0.0
    %410 = vmatpush1.xpose.msra.mxu0 0.0
    %411 = vmatprep.subr.mxu0 0.0
    %412 = vmatpush1.xpose.msra.mxu0 0.0
    %413 = vmatprep.subr.mxu0 0.0
    %414 = vmatpush1.xpose.msra.mxu0 %v387
    %415 = vmatprep.subr.mxu0 0.0
    %416 = vmatpush1.xpose.msra.mxu0 %v385
    %417 = vmatprep.subr.mxu0 0.0
    %418 = vmatpush1.xpose.msra.mxu0 %v383
    %419 = vmatprep.subr.mxu0 0.0
    %420 = vmatpush1.xpose.msra.mxu0 %v381
    %421 = vmatprep.subr.mxu0 0.0
    %422 = vmatpush2.xpose.msra.mxu0 0.0
    %423 = vmatprep.subr.mxu0 0.0
    %424 = vmatpush2.xpose.msra.mxu0 0.0
    %425 = vmatprep.subr.mxu0 0.0
    %426 = vmatpush2.xpose.msra.mxu0 0.0
    %427 = vmatprep.subr.mxu0 0.0
    %428 = vmatpush2.xpose.msra.mxu0 0.0
    %429 = vmatprep.subr.mxu0 0.0
    %430 = vmatpush2.xpose.msra.mxu0 0.0
    %431 = vmatprep.subr.mxu0 0.0
    %432 = vmatpush2.xpose.msra.mxu0 0.0
    %433 = vmatprep.subr.mxu0 0.0
    %434 = vmatpush2.xpose.msra.mxu0 0.0
    %435 = vmatprep.subr.mxu0 0.0
    %436 = vmatpush2.xpose.msra.mxu0 0.0
    %437 = vmatprep.subr.mxu0 0.0
    %438 = vmatpush2.xpose.msra.mxu0 0.0
    %439 = vmatprep.subr.mxu0 0.0
    %440 = vmatpush2.xpose.msra.mxu0 0.0
    %441 = vmatprep.subr.mxu0 0.0
    %442 = vmatpush2.xpose.msra.mxu0 0.0
    %443 = vmatprep.subr.mxu0 0.0
    %444 = vmatpush2.xpose.msra.mxu0 0.0
    %445 = vmatprep.subr.mxu0 0.0
    %446 = vmatpush2.xpose.msra.mxu0 0.0
    %447 = vmatprep.subr.mxu0 0.0
    %448 = vmatpush2.xpose.msra.mxu0 0.0
    %449 = vmatprep.subr.mxu0 0.0
    %450 = vmatpush2.xpose.msra.mxu0 0.0
    %451 = vmatprep.subr.mxu0 0.0
    %452 = vmatpush2.xpose.msra.mxu0 0.0
    %453 = vmatprep.mubr.f32.mxu0 0.0
    %454 = vmatmul.mubr.f32.gmra.mxu0 %v373
    %v455 = vpop.f32.mrf.mxu0
    %v456 = vadd.f32 %v172, %v455
    %v457 = vpop.f32.mrf.mxu0
    %458 = vmatprep.mubr.f32.mxu0 0.0
    %459 = vmatmul.mubr.f32.gmra.mxu0 %v375
    %v460 = vpop.f32.mrf.mxu0
    %v461 = vadd.f32 %v173, %v460
    %v462 = vpop.f32.mrf.mxu0
    %463 = vmatprep.mubr.f32.mxu0 0.0
    %464 = vmatmul.mubr.f32.gmra.mxu0 %v377
    %v465 = vpop.f32.mrf.mxu0
    %v466 = vadd.f32 %v174, %v465
    %v467 = vpop.f32.mrf.mxu0
    %468 = vmatprep.mubr.f32.mxu0 0.0
    %469 = vmatmul.mubr.f32.gmra.mxu0 %v379
    %v470 = vpop.f32.mrf.mxu0
    %v471 = vadd.f32 %v175, %v470
    %v472 = vpop.f32.mrf.mxu0
    %473 = vdwg.mxu0
    %v474 = vsel %vm178, %v456, -inf
    %475 = vmax.xlane.f32.xlu0 %v474
    %v476 = vpop.xlane.xlu0 %475
    %v477 = vsel %vm178, %v461, -inf
    %478 = vmax.xlane.f32.xlu0 %v477
    %v479 = vpop.xlane.xlu0 %478
    %v480 = vsel %vm178, %v466, -inf
    %481 = vmax.xlane.f32.xlu0 %v480
    %v482 = vpop.xlane.xlu0 %481
    %v483 = vsel %vm178, %v471, -inf
    %484 = vmax.xlane.f32.xlu0 %v483
    %v485 = vpop.xlane.xlu0 %484
    %v486 = vsub.f32 %v456, %v476
    %v487 = vsub.f32 %v461, %v479
    %v488 = vsub.f32 %v466, %v482
    %v489 = vsub.f32 %v471, %v485
    %v490 = vmul.f32 %v486, 1.442695
    %v491 = vpow.pop %v490
    %v492 = vmul.f32 %v487, 1.442695
    %v493 = vpow.pop %v492
    %v494 = vmul.f32 %v488, 1.442695
    %v495 = vpow.pop %v494
    %v496 = vmul.f32 %v489, 1.442695
    %v497 = vpow.pop %v496
    %v498 = vsel %vm178, %v491, 0.0
    %499 = vadd.xlane.f32.xlu0 %v498
    %v500 = vpop.xlane.xlu0 %499
    %v501 = vsel %vm178, %v493, 0.0
    %502 = vadd.xlane.f32.xlu0 %v501
    %v503 = vpop.xlane.xlu0 %502
    %v504 = vsel %vm178, %v495, 0.0
    %505 = vadd.xlane.f32.xlu0 %v504
    %v506 = vpop.xlane.xlu0 %505
    %v507 = vsel %vm178, %v497, 0.0
    %508 = vadd.xlane.f32.xlu0 %v507
    %v509 = vpop.xlane.xlu0 %508
    %v510 = vrcp.pop %v500
    %v511 = vrcp.pop %v503
    %v512 = vrcp.pop %v506
    %v513 = vrcp.pop %v509
    %v514 = vmul.f32 %v491, %v510
    %v515 = vmul.f32 %v493, %v511
    %v516 = vmul.f32 %v495, %v512
    %v517 = vmul.f32 %v497, %v513
    %518 = vrot.lane.b32.xlu0 %v342, 64
    %v519 = vpop.permute.xlu0 %518
    %520 = vrot.lane.b32.xlu0 %v347, 64
    %v521 = vpop.permute.xlu0 %520
    %522 = vrot.lane.b32.xlu0 %v352, 64
    %v523 = vpop.permute.xlu0 %522
    %524 = vrot.lane.b32.xlu0 %v357, 64
    %v525 = vpop.permute.xlu0 %524
    %v531 = vsel %vm178, %v514, 0
    %v534 = vsel %vm178, %v515, 0
    %v537 = vsel %vm178, %v516, 0
    %v540 = vsel %vm178, %v517, 0
    %542 = vmatprep.subr.mxu0 0.0
    %543 = vmatpush1.msra.mxu0 0.0
    %544 = vmatprep.subr.mxu0 0.0
    %545 = vmatpush1.msra.mxu0 0.0
    %546 = vmatprep.subr.mxu0 0.0
    %547 = vmatpush1.msra.mxu0 0.0
    %548 = vmatprep.subr.mxu0 0.0
    %549 = vmatpush1.msra.mxu0 0.0
    %550 = vmatprep.subr.mxu0 0.0
    %551 = vmatpush1.msra.mxu0 0.0
    %552 = vmatprep.subr.mxu0 0.0
    %553 = vmatpush1.msra.mxu0 0.0
    %554 = vmatprep.subr.mxu0 0.0
    %555 = vmatpush1.msra.mxu0 0.0
    %556 = vmatprep.subr.mxu0 0.0
    %557 = vmatpush1.msra.mxu0 0.0
    %558 = vmatprep.subr.mxu0 0.0
    %559 = vmatpush1.msra.mxu0 0.0
    %560 = vmatprep.subr.mxu0 0.0
    %561 = vmatpush1.msra.mxu0 0.0
    %562 = vmatprep.subr.mxu0 0.0
    %563 = vmatpush1.msra.mxu0 0.0
    %564 = vmatprep.subr.mxu0 0.0
    %565 = vmatpush1.msra.mxu0 0.0
    %566 = vmatprep.subr.mxu0 0.0
    %567 = vmatpush1.msra.mxu0 %v525
    %568 = vmatprep.subr.mxu0 0.0
    %569 = vmatpush1.msra.mxu0 %v523
    %570 = vmatprep.subr.mxu0 0.0
    %571 = vmatpush1.msra.mxu0 %v521
    %572 = vmatprep.subr.mxu0 0.0
    %573 = vmatpush1.msra.mxu0 %v519
    %574 = vmatprep.subr.mxu0 0.0
    %575 = vmatpush2.msra.mxu0 0.0
    %576 = vmatprep.subr.mxu0 0.0
    %577 = vmatpush2.msra.mxu0 0.0
    %578 = vmatprep.subr.mxu0 0.0
    %579 = vmatpush2.msra.mxu0 0.0
    %580 = vmatprep.subr.mxu0 0.0
    %581 = vmatpush2.msra.mxu0 0.0
    %582 = vmatprep.subr.mxu0 0.0
    %583 = vmatpush2.msra.mxu0 0.0
    %584 = vmatprep.subr.mxu0 0.0
    %585 = vmatpush2.msra.mxu0 0.0
    %586 = vmatprep.subr.mxu0 0.0
    %587 = vmatpush2.msra.mxu0 0.0
    %588 = vmatprep.subr.mxu0 0.0
    %589 = vmatpush2.msra.mxu0 0.0
    %590 = vmatprep.subr.mxu0 0.0
    %591 = vmatpush2.msra.mxu0 0.0
    %592 = vmatprep.subr.mxu0 0.0
    %593 = vmatpush2.msra.mxu0 0.0
    %594 = vmatprep.subr.mxu0 0.0
    %595 = vmatpush2.msra.mxu0 0.0
    %596 = vmatprep.subr.mxu0 0.0
    %597 = vmatpush2.msra.mxu0 0.0
    %598 = vmatprep.subr.mxu0 0.0
    %599 = vmatpush2.msra.mxu0 0.0
    %600 = vmatprep.subr.mxu0 0.0
    %601 = vmatpush2.msra.mxu0 0.0
    %602 = vmatprep.subr.mxu0 0.0
    %603 = vmatpush2.msra.mxu0 0.0
    %604 = vmatprep.subr.mxu0 0.0
    %605 = vmatpush2.msra.mxu0 0.0
    %606 = vmatprep.mubr.f32.mxu0 0.0
    %607 = vmatmul.mubr.f32.gmra.mxu0 %v531
    %v608 = vpop.f32.mrf.mxu0
    %v609 = vadd.f32 0.0, %v608
    %v610 = vpop.f32.mrf.mxu0
    %611 = vmatprep.mubr.f32.mxu0 0.0
    %612 = vmatmul.mubr.f32.gmra.mxu0 %v534
    %v613 = vpop.f32.mrf.mxu0
    %v614 = vadd.f32 0.0, %v613
    %v615 = vpop.f32.mrf.mxu0
    %616 = vmatprep.mubr.f32.mxu0 0.0
    %617 = vmatmul.mubr.f32.gmra.mxu0 %v537
    %v618 = vpop.f32.mrf.mxu0
    %v619 = vadd.f32 0.0, %v618
    %v620 = vpop.f32.mrf.mxu0
    %621 = vmatprep.mubr.f32.mxu0 0.0
    %622 = vmatmul.mubr.f32.gmra.mxu0 %v540
    %v623 = vpop.f32.mrf.mxu0
    %v624 = vadd.f32 0.0, %v623
    %v625 = vpop.f32.mrf.mxu0
    %626 = vdwg.mxu0
    %627 = vst.msk [vmem:[#allocation2] sm:$0xff] %vm372, %v609
    %628 = vst.msk [vmem:[#allocation2 + $0x8] sm:$0xff] %vm372, %v614
    %629 = vst.msk [vmem:[#allocation2 + $0x10] sm:$0xff] %vm372, %v619
    %630 = vst.msk [vmem:[#allocation2 + $0x18] sm:$0xff] %vm372, %v624
    %631 = vrot.lane.b32.xlu0 %v342, 120
    %v632 = vpop.permute.xlu0 %631
    %633 = vrot.lane.b32.xlu0 %v347, 120
    %v634 = vpop.permute.xlu0 %633
    %635 = vrot.lane.b32.xlu0 %v352, 120
    %v636 = vpop.permute.xlu0 %635
    %637 = vrot.lane.b32.xlu0 %v357, 120
    %v638 = vpop.permute.xlu0 %637
    %639 = vrot.lane.b32.xlu0 %v342, 88
    %v640 = vpop.permute.xlu0 %639
    %641 = vrot.lane.b32.xlu0 %v347, 88
    %v642 = vpop.permute.xlu0 %641
    %643 = vrot.lane.b32.xlu0 %v352, 88
    %v644 = vpop.permute.xlu0 %643
    %645 = vrot.lane.b32.xlu0 %v357, 88
    %v646 = vpop.permute.xlu0 %645
    %v647 = vsel %vm372, %v632, 0
    %v649 = vsel %vm372, %v634, 0
    %v651 = vsel %vm372, %v636, 0
    %v653 = vsel %vm372, %v638, 0
    %v655 = vsel %vm372, %v640, 0
    %v657 = vsel %vm372, %v642, 0
    %v659 = vsel %vm372, %v644, 0
    %v661 = vsel %vm372, %v646, 0
    %663 = vmatprep.subr.mxu0 0.0
    %664 = vmatpush1.xpose.msra.mxu0 0.0
    %665 = vmatprep.subr.mxu0 0.0
    %666 = vmatpush1.xpose.msra.mxu0 0.0
    %667 = vmatprep.subr.mxu0 0.0
    %668 = vmatpush1.xpose.msra.mxu0 0.0
    %669 = vmatprep.subr.mxu0 0.0
    %670 = vmatpush1.xpose.msra.mxu0 0.0
    %671 = vmatprep.subr.mxu0 0.0
    %672 = vmatpush1.xpose.msra.mxu0 0.0
    %673 = vmatprep.subr.mxu0 0.0
    %674 = vmatpush1.xpose.msra.mxu0 0.0
    %675 = vmatprep.subr.mxu0 0.0
    %676 = vmatpush1.xpose.msra.mxu0 0.0
    %677 = vmatprep.subr.mxu0 0.0
    %678 = vmatpush1.xpose.msra.mxu0 0.0
    %679 = vmatprep.subr.mxu0 0.0
    %680 = vmatpush1.xpose.msra.mxu0 0.0
    %681 = vmatprep.subr.mxu0 0.0
    %682 = vmatpush1.xpose.msra.mxu0 0.0
    %683 = vmatprep.subr.mxu0 0.0
    %684 = vmatpush1.xpose.msra.mxu0 0.0
    %685 = vmatprep.subr.mxu0 0.0
    %686 = vmatpush1.xpose.msra.mxu0 0.0
    %687 = vmatprep.subr.mxu0 0.0
    %688 = vmatpush1.xpose.msra.mxu0 %v661
    %689 = vmatprep.subr.mxu0 0.0
    %690 = vmatpush1.xpose.msra.mxu0 %v659
    %691 = vmatprep.subr.mxu0 0.0
    %692 = vmatpush1.xpose.msra.mxu0 %v657
    %693 = vmatprep.subr.mxu0 0.0
    %694 = vmatpush1.xpose.msra.mxu0 %v655
    %695 = vmatprep.subr.mxu0 0.0
    %696 = vmatpush2.xpose.msra.mxu0 0.0
    %697 = vmatprep.subr.mxu0 0.0
    %698 = vmatpush2.xpose.msra.mxu0 0.0
    %699 = vmatprep.subr.mxu0 0.0
    %700 = vmatpush2.xpose.msra.mxu0 0.0
    %701 = vmatprep.subr.mxu0 0.0
    %702 = vmatpush2.xpose.msra.mxu0 0.0
    %703 = vmatprep.subr.mxu0 0.0
    %704 = vmatpush2.xpose.msra.mxu0 0.0
    %705 = vmatprep.subr.mxu0 0.0
    %706 = vmatpush2.xpose.msra.mxu0 0.0
    %707 = vmatprep.subr.mxu0 0.0
    %708 = vmatpush2.xpose.msra.mxu0 0.0
    %709 = vmatprep.subr.mxu0 0.0
    %710 = vmatpush2.xpose.msra.mxu0 0.0
    %711 = vmatprep.subr.mxu0 0.0
    %712 = vmatpush2.xpose.msra.mxu0 0.0
    %713 = vmatprep.subr.mxu0 0.0
    %714 = vmatpush2.xpose.msra.mxu0 0.0
    %715 = vmatprep.subr.mxu0 0.0
    %716 = vmatpush2.xpose.msra.mxu0 0.0
    %717 = vmatprep.subr.mxu0 0.0
    %718 = vmatpush2.xpose.msra.mxu0 0.0
    %719 = vmatprep.subr.mxu0 0.0
    %720 = vmatpush2.xpose.msra.mxu0 0.0
    %721 = vmatprep.subr.mxu0 0.0
    %722 = vmatpush2.xpose.msra.mxu0 0.0
    %723 = vmatprep.subr.mxu0 0.0
    %724 = vmatpush2.xpose.msra.mxu0 0.0
    %725 = vmatprep.subr.mxu0 0.0
    %726 = vmatpush2.xpose.msra.mxu0 0.0
    %727 = vmatprep.mubr.f32.mxu0 0.0
    %728 = vmatmul.mubr.f32.gmra.mxu0 %v647
    %v729 = vpop.f32.mrf.mxu0
    %v730 = vadd.f32 %v172, %v729
    %v731 = vpop.f32.mrf.mxu0
    %732 = vmatprep.mubr.f32.mxu0 0.0
    %733 = vmatmul.mubr.f32.gmra.mxu0 %v649
    %v734 = vpop.f32.mrf.mxu0
    %v735 = vadd.f32 %v173, %v734
    %v736 = vpop.f32.mrf.mxu0
    %737 = vmatprep.mubr.f32.mxu0 0.0
    %738 = vmatmul.mubr.f32.gmra.mxu0 %v651
    %v739 = vpop.f32.mrf.mxu0
    %v740 = vadd.f32 %v174, %v739
    %v741 = vpop.f32.mrf.mxu0
    %742 = vmatprep.mubr.f32.mxu0 0.0
    %743 = vmatmul.mubr.f32.gmra.mxu0 %v653
    %v744 = vpop.f32.mrf.mxu0
    %v745 = vadd.f32 %v175, %v744
    %v746 = vpop.f32.mrf.mxu0
    %747 = vdwg.mxu0
    %v748 = vsel %vm178, %v730, -inf
    %749 = vmax.xlane.f32.xlu0 %v748
    %v750 = vpop.xlane.xlu0 %749
    %v751 = vsel %vm178, %v735, -inf
    %752 = vmax.xlane.f32.xlu0 %v751
    %v753 = vpop.xlane.xlu0 %752
    %v754 = vsel %vm178, %v740, -inf
    %755 = vmax.xlane.f32.xlu0 %v754
    %v756 = vpop.xlane.xlu0 %755
    %v757 = vsel %vm178, %v745, -inf
    %758 = vmax.xlane.f32.xlu0 %v757
    %v759 = vpop.xlane.xlu0 %758
    %v760 = vsub.f32 %v730, %v750
    %v761 = vsub.f32 %v735, %v753
    %v762 = vsub.f32 %v740, %v756
    %v763 = vsub.f32 %v745, %v759
    %v764 = vmul.f32 %v760, 1.442695
    %v765 = vpow.pop %v764
    %v766 = vmul.f32 %v761, 1.442695
    %v767 = vpow.pop %v766
    %v768 = vmul.f32 %v762, 1.442695
    %v769 = vpow.pop %v768
    %v770 = vmul.f32 %v763, 1.442695
    %v771 = vpow.pop %v770
    %v772 = vsel %vm178, %v765, 0.0
    %773 = vadd.xlane.f32.xlu0 %v772
    %v774 = vpop.xlane.xlu0 %773
    %v775 = vsel %vm178, %v767, 0.0
    %776 = vadd.xlane.f32.xlu0 %v775
    %v777 = vpop.xlane.xlu0 %776
    %v778 = vsel %vm178, %v769, 0.0
    %779 = vadd.xlane.f32.xlu0 %v778
    %v780 = vpop.xlane.xlu0 %779
    %v781 = vsel %vm178, %v771, 0.0
    %782 = vadd.xlane.f32.xlu0 %v781
    %v783 = vpop.xlane.xlu0 %782
    %v784 = vrcp.pop %v774
    %v785 = vrcp.pop %v777
    %v786 = vrcp.pop %v780
    %v787 = vrcp.pop %v783
    %v788 = vmul.f32 %v765, %v784
    %v789 = vmul.f32 %v767, %v785
    %v790 = vmul.f32 %v769, %v786
    %v791 = vmul.f32 %v771, %v787
    %792 = vrot.lane.b32.xlu0 %v342, 56
    %v793 = vpop.permute.xlu0 %792
    %794 = vrot.lane.b32.xlu0 %v347, 56
    %v795 = vpop.permute.xlu0 %794
    %796 = vrot.lane.b32.xlu0 %v352, 56
    %v797 = vpop.permute.xlu0 %796
    %798 = vrot.lane.b32.xlu0 %v357, 56
    %v799 = vpop.permute.xlu0 %798
    %v805 = vsel %vm178, %v788, 0
    %v808 = vsel %vm178, %v789, 0
    %v811 = vsel %vm178, %v790, 0
    %v814 = vsel %vm178, %v791, 0
    %816 = vmatprep.subr.mxu0 0.0
    %817 = vmatpush1.msra.mxu0 0.0
    %818 = vmatprep.subr.mxu0 0.0
    %819 = vmatpush1.msra.mxu0 0.0
    %820 = vmatprep.subr.mxu0 0.0
    %821 = vmatpush1.msra.mxu0 0.0
    %822 = vmatprep.subr.mxu0 0.0
    %823 = vmatpush1.msra.mxu0 0.0
    %824 = vmatprep.subr.mxu0 0.0
    %825 = vmatpush1.msra.mxu0 0.0
    %826 = vmatprep.subr.mxu0 0.0
    %827 = vmatpush1.msra.mxu0 0.0
    %828 = vmatprep.subr.mxu0 0.0
    %829 = vmatpush1.msra.mxu0 0.0
    %830 = vmatprep.subr.mxu0 0.0
    %831 = vmatpush1.msra.mxu0 0.0
    %832 = vmatprep.subr.mxu0 0.0
    %833 = vmatpush1.msra.mxu0 0.0
    %834 = vmatprep.subr.mxu0 0.0
    %835 = vmatpush1.msra.mxu0 0.0
    %836 = vmatprep.subr.mxu0 0.0
    %837 = vmatpush1.msra.mxu0 0.0
    %838 = vmatprep.subr.mxu0 0.0
    %839 = vmatpush1.msra.mxu0 0.0
    %840 = vmatprep.subr.mxu0 0.0
    %841 = vmatpush1.msra.mxu0 %v799
    %842 = vmatprep.subr.mxu0 0.0
    %843 = vmatpush1.msra.mxu0 %v797
    %844 = vmatprep.subr.mxu0 0.0
    %845 = vmatpush1.msra.mxu0 %v795
    %846 = vmatprep.subr.mxu0 0.0
    %847 = vmatpush1.msra.mxu0 %v793
    %848 = vmatprep.subr.mxu0 0.0
    %849 = vmatpush2.msra.mxu0 0.0
    %850 = vmatprep.subr.mxu0 0.0
    %851 = vmatpush2.msra.mxu0 0.0
    %852 = vmatprep.subr.mxu0 0.0
    %853 = vmatpush2.msra.mxu0 0.0
    %854 = vmatprep.subr.mxu0 0.0
    %855 = vmatpush2.msra.mxu0 0.0
    %856 = vmatprep.subr.mxu0 0.0
    %857 = vmatpush2.msra.mxu0 0.0
    %858 = vmatprep.subr.mxu0 0.0
    %859 = vmatpush2.msra.mxu0 0.0
    %860 = vmatprep.subr.mxu0 0.0
    %861 = vmatpush2.msra.mxu0 0.0
    %862 = vmatprep.subr.mxu0 0.0
    %863 = vmatpush2.msra.mxu0 0.0
    %864 = vmatprep.subr.mxu0 0.0
    %865 = vmatpush2.msra.mxu0 0.0
    %866 = vmatprep.subr.mxu0 0.0
    %867 = vmatpush2.msra.mxu0 0.0
    %868 = vmatprep.subr.mxu0 0.0
    %869 = vmatpush2.msra.mxu0 0.0
    %870 = vmatprep.subr.mxu0 0.0
    %871 = vmatpush2.msra.mxu0 0.0
    %872 = vmatprep.subr.mxu0 0.0
    %873 = vmatpush2.msra.mxu0 0.0
    %874 = vmatprep.subr.mxu0 0.0
    %875 = vmatpush2.msra.mxu0 0.0
    %876 = vmatprep.subr.mxu0 0.0
    %877 = vmatpush2.msra.mxu0 0.0
    %878 = vmatprep.subr.mxu0 0.0
    %879 = vmatpush2.msra.mxu0 0.0
    %880 = vmatprep.mubr.f32.mxu0 0.0
    %881 = vmatmul.mubr.f32.gmra.mxu0 %v805
    %v882 = vpop.f32.mrf.mxu0
    %v883 = vadd.f32 0.0, %v882
    %v884 = vpop.f32.mrf.mxu0
    %885 = vmatprep.mubr.f32.mxu0 0.0
    %886 = vmatmul.mubr.f32.gmra.mxu0 %v808
    %v887 = vpop.f32.mrf.mxu0
    %v888 = vadd.f32 0.0, %v887
    %v889 = vpop.f32.mrf.mxu0
    %890 = vmatprep.mubr.f32.mxu0 0.0
    %891 = vmatmul.mubr.f32.gmra.mxu0 %v811
    %v892 = vpop.f32.mrf.mxu0
    %v893 = vadd.f32 0.0, %v892
    %v894 = vpop.f32.mrf.mxu0
    %895 = vmatprep.mubr.f32.mxu0 0.0
    %896 = vmatmul.mubr.f32.gmra.mxu0 %v814
    %v897 = vpop.f32.mrf.mxu0
    %v898 = vadd.f32 0.0, %v897
    %v899 = vpop.f32.mrf.mxu0
    %900 = vdwg.mxu0
    %905 = vrot.lane.b32.xlu0 %v883, 8
    %v906 = vpop.permute.xlu0 %905
    %907 = vrot.lane.b32.xlu0 %v888, 8
    %v908 = vpop.permute.xlu0 %907
    %909 = vrot.lane.b32.xlu0 %v893, 8
    %v910 = vpop.permute.xlu0 %909
    %911 = vrot.lane.b32.xlu0 %v898, 8
    %v912 = vpop.permute.xlu0 %911
    %vm917 = vcmask 130112
    %918 = vst.msk [vmem:[#allocation2] sm:$0xff] %vm917, %v906
    %919 = vst.msk [vmem:[#allocation2 + $0x8] sm:$0xff] %vm917, %v908
    %920 = vst.msk [vmem:[#allocation2 + $0x10] sm:$0xff] %vm917, %v910
    %921 = vst.msk [vmem:[#allocation2 + $0x18] sm:$0xff] %vm917, %v912
    %922 = vrot.lane.b32.xlu0 %v342, 112
    %v923 = vpop.permute.xlu0 %922
    %924 = vrot.lane.b32.xlu0 %v347, 112
    %v925 = vpop.permute.xlu0 %924
    %926 = vrot.lane.b32.xlu0 %v352, 112
    %v927 = vpop.permute.xlu0 %926
    %928 = vrot.lane.b32.xlu0 %v357, 112
    %v929 = vpop.permute.xlu0 %928
    %930 = vrot.lane.b32.xlu0 %v342, 80
    %v931 = vpop.permute.xlu0 %930
    %932 = vrot.lane.b32.xlu0 %v347, 80
    %v933 = vpop.permute.xlu0 %932
    %934 = vrot.lane.b32.xlu0 %v352, 80
    %v935 = vpop.permute.xlu0 %934
    %936 = vrot.lane.b32.xlu0 %v357, 80
    %v937 = vpop.permute.xlu0 %936
    %v938 = vsel %vm372, %v923, 0
    %v940 = vsel %vm372, %v925, 0
    %v942 = vsel %vm372, %v927, 0
    %v944 = vsel %vm372, %v929, 0
    %v946 = vsel %vm372, %v931, 0
    %v948 = vsel %vm372, %v933, 0
    %v950 = vsel %vm372, %v935, 0
    %v952 = vsel %vm372, %v937, 0
    %954 = vmatprep.subr.mxu0 0.0
    %955 = vmatpush1.xpose.msra.mxu0 0.0
    %956 = vmatprep.subr.mxu0 0.0
    %957 = vmatpush1.xpose.msra.mxu0 0.0
    %958 = vmatprep.subr.mxu0 0.0
    %959 = vmatpush1.xpose.msra.mxu0 0.0
    %960 = vmatprep.subr.mxu0 0.0
    %961 = vmatpush1.xpose.msra.mxu0 0.0
    %962 = vmatprep.subr.mxu0 0.0
    %963 = vmatpush1.xpose.msra.mxu0 0.0
    %964 = vmatprep.subr.mxu0 0.0
    %965 = vmatpush1.xpose.msra.mxu0 0.0
    %966 = vmatprep.subr.mxu0 0.0
    %967 = vmatpush1.xpose.msra.mxu0 0.0
    %968 = vmatprep.subr.mxu0 0.0
    %969 = vmatpush1.xpose.msra.mxu0 0.0
    %970 = vmatprep.subr.mxu0 0.0
    %971 = vmatpush1.xpose.msra.mxu0 0.0
    %972 = vmatprep.subr.mxu0 0.0
    %973 = vmatpush1.xpose.msra.mxu0 0.0
    %974 = vmatprep.subr.mxu0 0.0
    %975 = vmatpush1.xpose.msra.mxu0 0.0
    %976 = vmatprep.subr.mxu0 0.0
    %977 = vmatpush1.xpose.msra.mxu0 0.0
    %978 = vmatprep.subr.mxu0 0.0
    %979 = vmatpush1.xpose.msra.mxu0 %v952
    %980 = vmatprep.subr.mxu0 0.0
    %981 = vmatpush1.xpose.msra.mxu0 %v950
    %982 = vmatprep.subr.mxu0 0.0
    %983 = vmatpush1.xpose.msra.mxu0 %v948
    %984 = vmatprep.subr.mxu0 0.0
    %985 = vmatpush1.xpose.msra.mxu0 %v946
    %986 = vmatprep.subr.mxu0 0.0
    %987 = vmatpush2.xpose.msra.mxu0 0.0
    %988 = vmatprep.subr.mxu0 0.0
    %989 = vmatpush2.xpose.msra.mxu0 0.0
    %990 = vmatprep.subr.mxu0 0.0
    %991 = vmatpush2.xpose.msra.mxu0 0.0
    %992 = vmatprep.subr.mxu0 0.0
    %993 = vmatpush2.xpose.msra.mxu0 0.0
    %994 = vmatprep.subr.mxu0 0.0
    %995 = vmatpush2.xpose.msra.mxu0 0.0
    %996 = vmatprep.subr.mxu0 0.0
    %997 = vmatpush2.xpose.msra.mxu0 0.0
    %998 = vmatprep.subr.mxu0 0.0
    %999 = vmatpush2.xpose.msra.mxu0 0.0
    %1000 = vmatprep.subr.mxu0 0.0
    %1001 = vmatpush2.xpose.msra.mxu0 0.0
    %1002 = vmatprep.subr.mxu0 0.0
    %1003 = vmatpush2.xpose.msra.mxu0 0.0
    %1004 = vmatprep.subr.mxu0 0.0
    %1005 = vmatpush2.xpose.msra.mxu0 0.0
    %1006 = vmatprep.subr.mxu0 0.0
    %1007 = vmatpush2.xpose.msra.mxu0 0.0
    %1008 = vmatprep.subr.mxu0 0.0
    %1009 = vmatpush2.xpose.msra.mxu0 0.0
    %1010 = vmatprep.subr.mxu0 0.0
    %1011 = vmatpush2.xpose.msra.mxu0 0.0
    %1012 = vmatprep.subr.mxu0 0.0
    %1013 = vmatpush2.xpose.msra.mxu0 0.0
    %1014 = vmatprep.subr.mxu0 0.0
    %1015 = vmatpush2.xpose.msra.mxu0 0.0
    %1016 = vmatprep.subr.mxu0 0.0
    %1017 = vmatpush2.xpose.msra.mxu0 0.0
    %1018 = vmatprep.mubr.f32.mxu0 0.0
    %1019 = vmatmul.mubr.f32.gmra.mxu0 %v938
    %v1020 = vpop.f32.mrf.mxu0
    %v1021 = vadd.f32 %v172, %v1020
    %v1022 = vpop.f32.mrf.mxu0
    %1023 = vmatprep.mubr.f32.mxu0 0.0
    %1024 = vmatmul.mubr.f32.gmra.mxu0 %v940
    %v1025 = vpop.f32.mrf.mxu0
    %v1026 = vadd.f32 %v173, %v1025
    %v1027 = vpop.f32.mrf.mxu0
    %1028 = vmatprep.mubr.f32.mxu0 0.0
    %1029 = vmatmul.mubr.f32.gmra.mxu0 %v942
    %v1030 = vpop.f32.mrf.mxu0
    %v1031 = vadd.f32 %v174, %v1030
    %v1032 = vpop.f32.mrf.mxu0
    %1033 = vmatprep.mubr.f32.mxu0 0.0
    %1034 = vmatmul.mubr.f32.gmra.mxu0 %v944
    %v1035 = vpop.f32.mrf.mxu0
    %v1036 = vadd.f32 %v175, %v1035
    %v1037 = vpop.f32.mrf.mxu0
    %1038 = vdwg.mxu0
    %v1039 = vsel %vm178, %v1021, -inf
    %1040 = vmax.xlane.f32.xlu0 %v1039
    %v1041 = vpop.xlane.xlu0 %1040
    %v1042 = vsel %vm178, %v1026, -inf
    %1043 = vmax.xlane.f32.xlu0 %v1042
    %v1044 = vpop.xlane.xlu0 %1043
    %v1045 = vsel %vm178, %v1031, -inf
    %1046 = vmax.xlane.f32.xlu0 %v1045
    %v1047 = vpop.xlane.xlu0 %1046
    %v1048 = vsel %vm178, %v1036, -inf
    %1049 = vmax.xlane.f32.xlu0 %v1048
    %v1050 = vpop.xlane.xlu0 %1049
    %v1051 = vsub.f32 %v1021, %v1041
    %v1052 = vsub.f32 %v1026, %v1044
    %v1053 = vsub.f32 %v1031, %v1047
    %v1054 = vsub.f32 %v1036, %v1050
    %v1055 = vmul.f32 %v1051, 1.442695
    %v1056 = vpow.pop %v1055
    %v1057 = vmul.f32 %v1052, 1.442695
    %v1058 = vpow.pop %v1057
    %v1059 = vmul.f32 %v1053, 1.442695
    %v1060 = vpow.pop %v1059
    %v1061 = vmul.f32 %v1054, 1.442695
    %v1062 = vpow.pop %v1061
    %v1063 = vsel %vm178, %v1056, 0.0
    %1064 = vadd.xlane.f32.xlu0 %v1063
    %v1065 = vpop.xlane.xlu0 %1064
    %v1066 = vsel %vm178, %v1058, 0.0
    %1067 = vadd.xlane.f32.xlu0 %v1066
    %v1068 = vpop.xlane.xlu0 %1067
    %v1069 = vsel %vm178, %v1060, 0.0
    %1070 = vadd.xlane.f32.xlu0 %v1069
    %v1071 = vpop.xlane.xlu0 %1070
    %v1072 = vsel %vm178, %v1062, 0.0
    %1073 = vadd.xlane.f32.xlu0 %v1072
    %v1074 = vpop.xlane.xlu0 %1073
    %v1075 = vrcp.pop %v1065
    %v1076 = vrcp.pop %v1068
    %v1077 = vrcp.pop %v1071
    %v1078 = vrcp.pop %v1074
    %v1079 = vmul.f32 %v1056, %v1075
    %v1080 = vmul.f32 %v1058, %v1076
    %v1081 = vmul.f32 %v1060, %v1077
    %v1082 = vmul.f32 %v1062, %v1078
    %1083 = vrot.lane.b32.xlu0 %v342, 48
    %v1084 = vpop.permute.xlu0 %1083
    %1085 = vrot.lane.b32.xlu0 %v347, 48
    %v1086 = vpop.permute.xlu0 %1085
    %1087 = vrot.lane.b32.xlu0 %v352, 48
    %v1088 = vpop.permute.xlu0 %1087
    %1089 = vrot.lane.b32.xlu0 %v357, 48
    %v1090 = vpop.permute.xlu0 %1089
    %v1096 = vsel %vm178, %v1079, 0
    %v1099 = vsel %vm178, %v1080, 0
    %v1102 = vsel %vm178, %v1081, 0
    %v1105 = vsel %vm178, %v1082, 0
    %1107 = vmatprep.subr.mxu0 0.0
    %1108 = vmatpush1.msra.mxu0 0.0
    %1109 = vmatprep.subr.mxu0 0.0
    %1110 = vmatpush1.msra.mxu0 0.0
    %1111 = vmatprep.subr.mxu0 0.0
    %1112 = vmatpush1.msra.mxu0 0.0
    %1113 = vmatprep.subr.mxu0 0.0
    %1114 = vmatpush1.msra.mxu0 0.0
    %1115 = vmatprep.subr.mxu0 0.0
    %1116 = vmatpush1.msra.mxu0 0.0
    %1117 = vmatprep.subr.mxu0 0.0
    %1118 = vmatpush1.msra.mxu0 0.0
    %1119 = vmatprep.subr.mxu0 0.0
    %1120 = vmatpush1.msra.mxu0 0.0
    %1121 = vmatprep.subr.mxu0 0.0
    %1122 = vmatpush1.msra.mxu0 0.0
    %1123 = vmatprep.subr.mxu0 0.0
    %1124 = vmatpush1.msra.mxu0 0.0
    %1125 = vmatprep.subr.mxu0 0.0
    %1126 = vmatpush1.msra.mxu0 0.0
    %1127 = vmatprep.subr.mxu0 0.0
    %1128 = vmatpush1.msra.mxu0 0.0
    %1129 = vmatprep.subr.mxu0 0.0
    %1130 = vmatpush1.msra.mxu0 0.0
    %1131 = vmatprep.subr.mxu0 0.0
    %1132 = vmatpush1.msra.mxu0 %v1090
    %1133 = vmatprep.subr.mxu0 0.0
    %1134 = vmatpush1.msra.mxu0 %v1088
    %1135 = vmatprep.subr.mxu0 0.0
    %1136 = vmatpush1.msra.mxu0 %v1086
    %1137 = vmatprep.subr.mxu0 0.0
    %1138 = vmatpush1.msra.mxu0 %v1084
    %1139 = vmatprep.subr.mxu0 0.0
    %1140 = vmatpush2.msra.mxu0 0.0
    %1141 = vmatprep.subr.mxu0 0.0
    %1142 = vmatpush2.msra.mxu0 0.0
    %1143 = vmatprep.subr.mxu0 0.0
    %1144 = vmatpush2.msra.mxu0 0.0
    %1145 = vmatprep.subr.mxu0 0.0
    %1146 = vmatpush2.msra.mxu0 0.0
    %1147 = vmatprep.subr.mxu0 0.0
    %1148 = vmatpush2.msra.mxu0 0.0
    %1149 = vmatprep.subr.mxu0 0.0
    %1150 = vmatpush2.msra.mxu0 0.0
    %1151 = vmatprep.subr.mxu0 0.0
    %1152 = vmatpush2.msra.mxu0 0.0
    %1153 = vmatprep.subr.mxu0 0.0
    %1154 = vmatpush2.msra.mxu0 0.0
    %1155 = vmatprep.subr.mxu0 0.0
    %1156 = vmatpush2.msra.mxu0 0.0
    %1157 = vmatprep.subr.mxu0 0.0
    %1158 = vmatpush2.msra.mxu0 0.0
    %1159 = vmatprep.subr.mxu0 0.0
    %1160 = vmatpush2.msra.mxu0 0.0
    %1161 = vmatprep.subr.mxu0 0.0
    %1162 = vmatpush2.msra.mxu0 0.0
    %1163 = vmatprep.subr.mxu0 0.0
    %1164 = vmatpush2.msra.mxu0 0.0
    %1165 = vmatprep.subr.mxu0 0.0
    %1166 = vmatpush2.msra.mxu0 0.0
    %1167 = vmatprep.subr.mxu0 0.0
    %1168 = vmatpush2.msra.mxu0 0.0
    %1169 = vmatprep.subr.mxu0 0.0
    %1170 = vmatpush2.msra.mxu0 0.0
    %1171 = vmatprep.mubr.f32.mxu0 0.0
    %1172 = vmatmul.mubr.f32.gmra.mxu0 %v1096
    %v1173 = vpop.f32.mrf.mxu0
    %v1174 = vadd.f32 0.0, %v1173
    %v1175 = vpop.f32.mrf.mxu0
    %1176 = vmatprep.mubr.f32.mxu0 0.0
    %1177 = vmatmul.mubr.f32.gmra.mxu0 %v1099
    %v1178 = vpop.f32.mrf.mxu0
    %v1179 = vadd.f32 0.0, %v1178
    %v1180 = vpop.f32.mrf.mxu0
    %1181 = vmatprep.mubr.f32.mxu0 0.0
    %1182 = vmatmul.mubr.f32.gmra.mxu0 %v1102
    %v1183 = vpop.f32.mrf.mxu0
    %v1184 = vadd.f32 0.0, %v1183
    %v1185 = vpop.f32.mrf.mxu0
    %1186 = vmatprep.mubr.f32.mxu0 0.0
    %1187 = vmatmul.mubr.f32.gmra.mxu0 %v1105
    %v1188 = vpop.f32.mrf.mxu0
    %v1189 = vadd.f32 0.0, %v1188
    %v1190 = vpop.f32.mrf.mxu0
    %1191 = vdwg.mxu0
    %1196 = vrot.lane.b32.xlu0 %v1174, 16
    %v1197 = vpop.permute.xlu0 %1196
    %1198 = vrot.lane.b32.xlu0 %v1179, 16
    %v1199 = vpop.permute.xlu0 %1198
    %1200 = vrot.lane.b32.xlu0 %v1184, 16
    %v1201 = vpop.permute.xlu0 %1200
    %1202 = vrot.lane.b32.xlu0 %v1189, 16
    %v1203 = vpop.permute.xlu0 %1202
    %vm1208 = vcmask 195712
    %1209 = vst.msk [vmem:[#allocation2] sm:$0xff] %vm1208, %v1197
    %1210 = vst.msk [vmem:[#allocation2 + $0x8] sm:$0xff] %vm1208, %v1199
    %1211 = vst.msk [vmem:[#allocation2 + $0x10] sm:$0xff] %vm1208, %v1201
    %1212 = vst.msk [vmem:[#allocation2 + $0x18] sm:$0xff] %vm1208, %v1203
    %1213 = vrot.lane.b32.xlu0 %v342, 104
    %v1214 = vpop.permute.xlu0 %1213
    %1215 = vrot.lane.b32.xlu0 %v347, 104
    %v1216 = vpop.permute.xlu0 %1215
    %1217 = vrot.lane.b32.xlu0 %v352, 104
    %v1218 = vpop.permute.xlu0 %1217
    %1219 = vrot.lane.b32.xlu0 %v357, 104
    %v1220 = vpop.permute.xlu0 %1219
    %1221 = vrot.lane.b32.xlu0 %v342, 72
    %v1222 = vpop.permute.xlu0 %1221
    %1223 = vrot.lane.b32.xlu0 %v347, 72
    %v1224 = vpop.permute.xlu0 %1223
    %1225 = vrot.lane.b32.xlu0 %v352, 72
    %v1226 = vpop.permute.xlu0 %1225
    %1227 = vrot.lane.b32.xlu0 %v357, 72
    %v1228 = vpop.permute.xlu0 %1227
    %v1229 = vsel %vm372, %v1214, 0
    %v1231 = vsel %vm372, %v1216, 0
    %v1233 = vsel %vm372, %v1218, 0
    %v1235 = vsel %vm372, %v1220, 0
    %v1237 = vsel %vm372, %v1222, 0
    %v1239 = vsel %vm372, %v1224, 0
    %v1241 = vsel %vm372, %v1226, 0
    %v1243 = vsel %vm372, %v1228, 0
    %1245 = vmatprep.subr.mxu0 0.0
    %1246 = vmatpush1.xpose.msra.mxu0 0.0
    %1247 = vmatprep.subr.mxu0 0.0
    %1248 = vmatpush1.xpose.msra.mxu0 0.0
    %1249 = vmatprep.subr.mxu0 0.0
    %1250 = vmatpush1.xpose.msra.mxu0 0.0
    %1251 = vmatprep.subr.mxu0 0.0
    %1252 = vmatpush1.xpose.msra.mxu0 0.0
    %1253 = vmatprep.subr.mxu0 0.0
    %1254 = vmatpush1.xpose.msra.mxu0 0.0
    %1255 = vmatprep.subr.mxu0 0.0
    %1256 = vmatpush1.xpose.msra.mxu0 0.0
    %1257 = vmatprep.subr.mxu0 0.0
    %1258 = vmatpush1.xpose.msra.mxu0 0.0
    %1259 = vmatprep.subr.mxu0 0.0
    %1260 = vmatpush1.xpose.msra.mxu0 0.0
    %1261 = vmatprep.subr.mxu0 0.0
    %1262 = vmatpush1.xpose.msra.mxu0 0.0
    %1263 = vmatprep.subr.mxu0 0.0
    %1264 = vmatpush1.xpose.msra.mxu0 0.0
    %1265 = vmatprep.subr.mxu0 0.0
    %1266 = vmatpush1.xpose.msra.mxu0 0.0
    %1267 = vmatprep.subr.mxu0 0.0
    %1268 = vmatpush1.xpose.msra.mxu0 0.0
    %1269 = vmatprep.subr.mxu0 0.0
    %1270 = vmatpush1.xpose.msra.mxu0 %v1243
    %1271 = vmatprep.subr.mxu0 0.0
    %1272 = vmatpush1.xpose.msra.mxu0 %v1241
    %1273 = vmatprep.subr.mxu0 0.0
    %1274 = vmatpush1.xpose.msra.mxu0 %v1239
    %1275 = vmatprep.subr.mxu0 0.0
    %1276 = vmatpush1.xpose.msra.mxu0 %v1237
    %1277 = vmatprep.subr.mxu0 0.0
    %1278 = vmatpush2.xpose.msra.mxu0 0.0
    %1279 = vmatprep.subr.mxu0 0.0
    %1280 = vmatpush2.xpose.msra.mxu0 0.0
    %1281 = vmatprep.subr.mxu0 0.0
    %1282 = vmatpush2.xpose.msra.mxu0 0.0
    %1283 = vmatprep.subr.mxu0 0.0
    %1284 = vmatpush2.xpose.msra.mxu0 0.0
    %1285 = vmatprep.subr.mxu0 0.0
    %1286 = vmatpush2.xpose.msra.mxu0 0.0
    %1287 = vmatprep.subr.mxu0 0.0
    %1288 = vmatpush2.xpose.msra.mxu0 0.0
    %1289 = vmatprep.subr.mxu0 0.0
    %1290 = vmatpush2.xpose.msra.mxu0 0.0
    %1291 = vmatprep.subr.mxu0 0.0
    %1292 = vmatpush2.xpose.msra.mxu0 0.0
    %1293 = vmatprep.subr.mxu0 0.0
    %1294 = vmatpush2.xpose.msra.mxu0 0.0
    %1295 = vmatprep.subr.mxu0 0.0
    %1296 = vmatpush2.xpose.msra.mxu0 0.0
    %1297 = vmatprep.subr.mxu0 0.0
    %1298 = vmatpush2.xpose.msra.mxu0 0.0
    %1299 = vmatprep.subr.mxu0 0.0
    %1300 = vmatpush2.xpose.msra.mxu0 0.0
    %1301 = vmatprep.subr.mxu0 0.0
    %1302 = vmatpush2.xpose.msra.mxu0 0.0
    %1303 = vmatprep.subr.mxu0 0.0
    %1304 = vmatpush2.xpose.msra.mxu0 0.0
    %1305 = vmatprep.subr.mxu0 0.0
    %1306 = vmatpush2.xpose.msra.mxu0 0.0
    %1307 = vmatprep.subr.mxu0 0.0
    %1308 = vmatpush2.xpose.msra.mxu0 0.0
    %1309 = vmatprep.mubr.f32.mxu0 0.0
    %1310 = vmatmul.mubr.f32.gmra.mxu0 %v1229
    %v1311 = vpop.f32.mrf.mxu0
    %v1312 = vadd.f32 %v172, %v1311
    %v1313 = vpop.f32.mrf.mxu0
    %1314 = vmatprep.mubr.f32.mxu0 0.0
    %1315 = vmatmul.mubr.f32.gmra.mxu0 %v1231
    %v1316 = vpop.f32.mrf.mxu0
    %v1317 = vadd.f32 %v173, %v1316
    %v1318 = vpop.f32.mrf.mxu0
    %1319 = vmatprep.mubr.f32.mxu0 0.0
    %1320 = vmatmul.mubr.f32.gmra.mxu0 %v1233
    %v1321 = vpop.f32.mrf.mxu0
    %v1322 = vadd.f32 %v174, %v1321
    %v1323 = vpop.f32.mrf.mxu0
    %1324 = vmatprep.mubr.f32.mxu0 0.0
    %1325 = vmatmul.mubr.f32.gmra.mxu0 %v1235
    %v1326 = vpop.f32.mrf.mxu0
    %v1327 = vadd.f32 %v175, %v1326
    %v1328 = vpop.f32.mrf.mxu0
    %1329 = vdwg.mxu0
    %v1330 = vsel %vm178, %v1312, -inf
    %1331 = vmax.xlane.f32.xlu0 %v1330
    %v1332 = vpop.xlane.xlu0 %1331
    %v1333 = vsel %vm178, %v1317, -inf
    %1334 = vmax.xlane.f32.xlu0 %v1333
    %v1335 = vpop.xlane.xlu0 %1334
    %v1336 = vsel %vm178, %v1322, -inf
    %1337 = vmax.xlane.f32.xlu0 %v1336
    %v1338 = vpop.xlane.xlu0 %1337
    %v1339 = vsel %vm178, %v1327, -inf
    %1340 = vmax.xlane.f32.xlu0 %v1339
    %v1341 = vpop.xlane.xlu0 %1340
    %v1342 = vsub.f32 %v1312, %v1332
    %v1343 = vsub.f32 %v1317, %v1335
    %v1344 = vsub.f32 %v1322, %v1338
    %v1345 = vsub.f32 %v1327, %v1341
    %v1346 = vmul.f32 %v1342, 1.442695
    %v1347 = vpow.pop %v1346
    %v1348 = vmul.f32 %v1343, 1.442695
    %v1349 = vpow.pop %v1348
    %v1350 = vmul.f32 %v1344, 1.442695
    %v1351 = vpow.pop %v1350
    %v1352 = vmul.f32 %v1345, 1.442695
    %v1353 = vpow.pop %v1352
    %v1354 = vsel %vm178, %v1347, 0.0
    %1355 = vadd.xlane.f32.xlu0 %v1354
    %v1356 = vpop.xlane.xlu0 %1355
    %v1357 = vsel %vm178, %v1349, 0.0
    %1358 = vadd.xlane.f32.xlu0 %v1357
    %v1359 = vpop.xlane.xlu0 %1358
    %v1360 = vsel %vm178, %v1351, 0.0
    %1361 = vadd.xlane.f32.xlu0 %v1360
    %v1362 = vpop.xlane.xlu0 %1361
    %v1363 = vsel %vm178, %v1353, 0.0
    %1364 = vadd.xlane.f32.xlu0 %v1363
    %v1365 = vpop.xlane.xlu0 %1364
    %v1366 = vrcp.pop %v1356
    %v1367 = vrcp.pop %v1359
    %v1368 = vrcp.pop %v1362
    %v1369 = vrcp.pop %v1365
    %v1370 = vmul.f32 %v1347, %v1366
    %v1371 = vmul.f32 %v1349, %v1367
    %v1372 = vmul.f32 %v1351, %v1368
    %v1373 = vmul.f32 %v1353, %v1369
    %1374 = vrot.lane.b32.xlu0 %v342, 40
    %v1375 = vpop.permute.xlu0 %1374
    %1376 = vrot.lane.b32.xlu0 %v347, 40
    %v1377 = vpop.permute.xlu0 %1376
    %1378 = vrot.lane.b32.xlu0 %v352, 40
    %v1379 = vpop.permute.xlu0 %1378
    %1380 = vrot.lane.b32.xlu0 %v357, 40
    %v1381 = vpop.permute.xlu0 %1380
    %v1387 = vsel %vm178, %v1370, 0
    %v1390 = vsel %vm178, %v1371, 0
    %v1393 = vsel %vm178, %v1372, 0
    %v1396 = vsel %vm178, %v1373, 0
    %1398 = vmatprep.subr.mxu0 0.0
    %1399 = vmatpush1.msra.mxu0 0.0
    %1400 = vmatprep.subr.mxu0 0.0
    %1401 = vmatpush1.msra.mxu0 0.0
    %1402 = vmatprep.subr.mxu0 0.0
    %1403 = vmatpush1.msra.mxu0 0.0
    %1404 = vmatprep.subr.mxu0 0.0
    %1405 = vmatpush1.msra.mxu0 0.0
    %1406 = vmatprep.subr.mxu0 0.0
    %1407 = vmatpush1.msra.mxu0 0.0
    %1408 = vmatprep.subr.mxu0 0.0
    %1409 = vmatpush1.msra.mxu0 0.0
    %1410 = vmatprep.subr.mxu0 0.0
    %1411 = vmatpush1.msra.mxu0 0.0
    %1412 = vmatprep.subr.mxu0 0.0
    %1413 = vmatpush1.msra.mxu0 0.0
    %1414 = vmatprep.subr.mxu0 0.0
    %1415 = vmatpush1.msra.mxu0 0.0
    %1416 = vmatprep.subr.mxu0 0.0
    %1417 = vmatpush1.msra.mxu0 0.0
    %1418 = vmatprep.subr.mxu0 0.0
    %1419 = vmatpush1.msra.mxu0 0.0
    %1420 = vmatprep.subr.mxu0 0.0
    %1421 = vmatpush1.msra.mxu0 0.0
    %1422 = vmatprep.subr.mxu0 0.0
    %1423 = vmatpush1.msra.mxu0 %v1381
    %1424 = vmatprep.subr.mxu0 0.0
    %1425 = vmatpush1.msra.mxu0 %v1379
    %1426 = vmatprep.subr.mxu0 0.0
    %1427 = vmatpush1.msra.mxu0 %v1377
    %1428 = vmatprep.subr.mxu0 0.0
    %1429 = vmatpush1.msra.mxu0 %v1375
    %1430 = vmatprep.subr.mxu0 0.0
    %1431 = vmatpush2.msra.mxu0 0.0
    %1432 = vmatprep.subr.mxu0 0.0
    %1433 = vmatpush2.msra.mxu0 0.0
    %1434 = vmatprep.subr.mxu0 0.0
    %1435 = vmatpush2.msra.mxu0 0.0
    %1436 = vmatprep.subr.mxu0 0.0
    %1437 = vmatpush2.msra.mxu0 0.0
    %1438 = vmatprep.subr.mxu0 0.0
    %1439 = vmatpush2.msra.mxu0 0.0
    %1440 = vmatprep.subr.mxu0 0.0
    %1441 = vmatpush2.msra.mxu0 0.0
    %1442 = vmatprep.subr.mxu0 0.0
    %1443 = vmatpush2.msra.mxu0 0.0
    %1444 = vmatprep.subr.mxu0 0.0
    %1445 = vmatpush2.msra.mxu0 0.0
    %1446 = vmatprep.subr.mxu0 0.0
    %1447 = vmatpush2.msra.mxu0 0.0
    %1448 = vmatprep.subr.mxu0 0.0
    %1449 = vmatpush2.msra.mxu0 0.0
    %1450 = vmatprep.subr.mxu0 0.0
    %1451 = vmatpush2.msra.mxu0 0.0
    %1452 = vmatprep.subr.mxu0 0.0
    %1453 = vmatpush2.msra.mxu0 0.0
    %1454 = vmatprep.subr.mxu0 0.0
    %1455 = vmatpush2.msra.mxu0 0.0
    %1456 = vmatprep.subr.mxu0 0.0
    %1457 = vmatpush2.msra.mxu0 0.0
    %1458 = vmatprep.subr.mxu0 0.0
    %1459 = vmatpush2.msra.mxu0 0.0
    %1460 = vmatprep.subr.mxu0 0.0
    %1461 = vmatpush2.msra.mxu0 0.0
    %1462 = vmatprep.mubr.f32.mxu0 0.0
    %1463 = vmatmul.mubr.f32.gmra.mxu0 %v1387
    %v1464 = vpop.f32.mrf.mxu0
    %v1465 = vadd.f32 0.0, %v1464
    %v1466 = vpop.f32.mrf.mxu0
    %1467 = vmatprep.mubr.f32.mxu0 0.0
    %1468 = vmatmul.mubr.f32.gmra.mxu0 %v1390
    %v1469 = vpop.f32.mrf.mxu0
    %v1470 = vadd.f32 0.0, %v1469
    %v1471 = vpop.f32.mrf.mxu0
    %1472 = vmatprep.mubr.f32.mxu0 0.0
    %1473 = vmatmul.mubr.f32.gmra.mxu0 %v1393
    %v1474 = vpop.f32.mrf.mxu0
    %v1475 = vadd.f32 0.0, %v1474
    %v1476 = vpop.f32.mrf.mxu0
    %1477 = vmatprep.mubr.f32.mxu0 0.0
    %1478 = vmatmul.mubr.f32.gmra.mxu0 %v1396
    %v1479 = vpop.f32.mrf.mxu0
    %v1480 = vadd.f32 0.0, %v1479
    %v1481 = vpop.f32.mrf.mxu0
    %1482 = vdwg.mxu0
    %1487 = vrot.lane.b32.xlu0 %v1465, 24
    %v1488 = vpop.permute.xlu0 %1487
    %1489 = vrot.lane.b32.xlu0 %v1470, 24
    %v1490 = vpop.permute.xlu0 %1489
    %1491 = vrot.lane.b32.xlu0 %v1475, 24
    %v1492 = vpop.permute.xlu0 %1491
    %1493 = vrot.lane.b32.xlu0 %v1480, 24
    %v1494 = vpop.permute.xlu0 %1493
    %vm1499 = vcmask 261312
    %1500 = vst.msk [vmem:[#allocation2] sm:$0xff] %vm1499, %v1488
    %1501 = vst.msk [vmem:[#allocation2 + $0x8] sm:$0xff] %vm1499, %v1490
    %1502 = vst.msk [vmem:[#allocation2 + $0x10] sm:$0xff] %vm1499, %v1492
    %1503 = vst.msk [vmem:[#allocation2 + $0x18] sm:$0xff] %vm1499, %v1494
    %v1504 = vld [vmem:[#allocation2] sm:$0xff]
    %v1505 = vld [vmem:[#allocation2 + $0x8] sm:$0xff]
    %v1506 = vld [vmem:[#allocation2 + $0x10] sm:$0xff]
    %v1507 = vld [vmem:[#allocation2 + $0x18] sm:$0xff]
    %v1508 = vld [vmem:[%s8] sm:$0xff]
    %v1509 = vld [vmem:[%s8 + $0x8] sm:$0xff]
    %v1510 = vld [vmem:[%s8 + $0x10] sm:$0xff]
    %v1511 = vld [vmem:[%s8 + $0x18] sm:$0xff]
    %v1512 = vld [vmem:[%s9] sm:$0x1]
    %v1514 = vlaneseq
    %v1515 = vshrl.u32 %v1514, 7
    %v1516 = vsub.s32 0, %v1515
    %v1517 = vrot.slane %v1512, %v1516
    %v1520 = vsel %vm178, %v1504, 0
    %v1523 = vsel %vm178, %v1505, 0
    %v1526 = vsel %vm178, %v1506, 0
    %v1529 = vsel %vm178, %v1507, 0
    %1531 = vmatprep.subr.mxu0 0.0
    %1532 = vmatpush1.msra.mxu0 0.0
    %1533 = vmatprep.subr.mxu0 0.0
    %1534 = vmatpush1.msra.mxu0 0.0
    %1535 = vmatprep.subr.mxu0 0.0
    %1536 = vmatpush1.msra.mxu0 0.0
    %1537 = vmatprep.subr.mxu0 0.0
    %1538 = vmatpush1.msra.mxu0 0.0
    %1539 = vmatprep.subr.mxu0 0.0
    %1540 = vmatpush1.msra.mxu0 0.0
    %1541 = vmatprep.subr.mxu0 0.0
    %1542 = vmatpush1.msra.mxu0 0.0
    %1543 = vmatprep.subr.mxu0 0.0
    %1544 = vmatpush1.msra.mxu0 0.0
    %1545 = vmatprep.subr.mxu0 0.0
    %1546 = vmatpush1.msra.mxu0 0.0
    %1547 = vmatprep.subr.mxu0 0.0
    %1548 = vmatpush1.msra.mxu0 0.0
    %1549 = vmatprep.subr.mxu0 0.0
    %1550 = vmatpush1.msra.mxu0 0.0
    %1551 = vmatprep.subr.mxu0 0.0
    %1552 = vmatpush1.msra.mxu0 0.0
    %1553 = vmatprep.subr.mxu0 0.0
    %1554 = vmatpush1.msra.mxu0 0.0
    %1555 = vmatprep.subr.mxu0 0.0
    %1556 = vmatpush1.msra.mxu0 %v1511
    %1557 = vmatprep.subr.mxu0 0.0
    %1558 = vmatpush1.msra.mxu0 %v1510
    %1559 = vmatprep.subr.mxu0 0.0
    %1560 = vmatpush1.msra.mxu0 %v1509
    %1561 = vmatprep.subr.mxu0 0.0
    %1562 = vmatpush1.msra.mxu0 %v1508
    %1563 = vmatprep.subr.mxu0 0.0
    %1564 = vmatpush2.msra.mxu0 0.0
    %1565 = vmatprep.subr.mxu0 0.0
    %1566 = vmatpush2.msra.mxu0 0.0
    %1567 = vmatprep.subr.mxu0 0.0
    %1568 = vmatpush2.msra.mxu0 0.0
    %1569 = vmatprep.subr.mxu0 0.0
    %1570 = vmatpush2.msra.mxu0 0.0
    %1571 = vmatprep.subr.mxu0 0.0
    %1572 = vmatpush2.msra.mxu0 0.0
    %1573 = vmatprep.subr.mxu0 0.0
    %1574 = vmatpush2.msra.mxu0 0.0
    %1575 = vmatprep.subr.mxu0 0.0
    %1576 = vmatpush2.msra.mxu0 0.0
    %1577 = vmatprep.subr.mxu0 0.0
    %1578 = vmatpush2.msra.mxu0 0.0
    %1579 = vmatprep.subr.mxu0 0.0
    %1580 = vmatpush2.msra.mxu0 0.0
    %1581 = vmatprep.subr.mxu0 0.0
    %1582 = vmatpush2.msra.mxu0 0.0
    %1583 = vmatprep.subr.mxu0 0.0
    %1584 = vmatpush2.msra.mxu0 0.0
    %1585 = vmatprep.subr.mxu0 0.0
    %1586 = vmatpush2.msra.mxu0 0.0
    %1587 = vmatprep.subr.mxu0 0.0
    %1588 = vmatpush2.msra.mxu0 0.0
    %1589 = vmatprep.subr.mxu0 0.0
    %1590 = vmatpush2.msra.mxu0 0.0
    %1591 = vmatprep.subr.mxu0 0.0
    %1592 = vmatpush2.msra.mxu0 0.0
    %1593 = vmatprep.subr.mxu0 0.0
    %1594 = vmatpush2.msra.mxu0 0.0
    %1595 = vmatprep.mubr.f32.mxu0 0.0
    %1596 = vmatmul.mubr.f32.gmra.mxu0 %v1520
    %v1597 = vpop.f32.mrf.mxu0
    %v1598 = vadd.f32 %v1517, %v1597
    %v1599 = vpop.f32.mrf.mxu0
    %1600 = vmatprep.mubr.f32.mxu0 0.0
    %1601 = vmatmul.mubr.f32.gmra.mxu0 %v1523
    %v1602 = vpop.f32.mrf.mxu0
    %v1603 = vadd.f32 %v1517, %v1602
    %v1604 = vpop.f32.mrf.mxu0
    %1605 = vmatprep.mubr.f32.mxu0 0.0
    %1606 = vmatmul.mubr.f32.gmra.mxu0 %v1526
    %v1607 = vpop.f32.mrf.mxu0
    %v1608 = vadd.f32 %v1517, %v1607
    %v1609 = vpop.f32.mrf.mxu0
    %1610 = vmatprep.mubr.f32.mxu0 0.0
    %1611 = vmatmul.mubr.f32.gmra.mxu0 %v1529
    %v1612 = vpop.f32.mrf.mxu0
    %v1613 = vadd.f32 %v1517, %v1612
    %v1614 = vpop.f32.mrf.mxu0
    %1615 = vdwg.mxu0
    %v1616 = vadd.f32 %v1598, %v154
    %v1617 = vadd.f32 %v1603, %v159
    %v1618 = vadd.f32 %v1608, %v164
    %v1619 = vadd.f32 %v1613, %v169
    %v1620 = vld [vmem:[%s10] sm:$0x1]
    %v1621 = vld [vmem:[%s11] sm:$0x1]
    %v1622 = vsel %vm178, %v1616, 0.0
    %1623 = vadd.xlane.f32.xlu0 %v1622
    %v1624 = vpop.xlane.xlu0 %1623
    %v1625 = vsel %vm178, %v1617, 0.0
    %1626 = vadd.xlane.f32.xlu0 %v1625
    %v1627 = vpop.xlane.xlu0 %1626
    %v1628 = vsel %vm178, %v1618, 0.0
    %1629 = vadd.xlane.f32.xlu0 %v1628
    %v1630 = vpop.xlane.xlu0 %1629
    %v1631 = vsel %vm178, %v1619, 0.0
    %1632 = vadd.xlane.f32.xlu0 %v1631
    %v1633 = vpop.xlane.xlu0 %1632
    %v1634 = vmul.f32 %v1624, %v191
    %v1635 = vmul.f32 %v1627, %v191
    %v1636 = vmul.f32 %v1630, %v191
    %v1637 = vmul.f32 %v1633, %v191
    %v1638 = vsub.f32 %v1616, %v1634
    %v1639 = vsub.f32 %v1617, %v1635
    %v1640 = vsub.f32 %v1618, %v1636
    %v1641 = vsub.f32 %v1619, %v1637
    %v1642 = vmul.f32 %v1638, %v1638
    %v1643 = vmul.f32 %v1639, %v1639
    %v1644 = vmul.f32 %v1640, %v1640
    %v1645 = vmul.f32 %v1641, %v1641
    %v1646 = vsel %vm178, %v1642, 0.0
    %1647 = vadd.xlane.f32.xlu0 %v1646
    %v1648 = vpop.xlane.xlu0 %1647
    %v1649 = vsel %vm178, %v1643, 0.0
    %1650 = vadd.xlane.f32.xlu0 %v1649
    %v1651 = vpop.xlane.xlu0 %1650
    %v1652 = vsel %vm178, %v1644, 0.0
    %1653 = vadd.xlane.f32.xlu0 %v1652
    %v1654 = vpop.xlane.xlu0 %1653
    %v1655 = vsel %vm178, %v1645, 0.0
    %1656 = vadd.xlane.f32.xlu0 %v1655
    %v1657 = vpop.xlane.xlu0 %1656
    %v1658 = vmul.f32 %v1648, %v191
    %v1659 = vmul.f32 %v1651, %v191
    %v1660 = vmul.f32 %v1654, %v191
    %v1661 = vmul.f32 %v1657, %v191
    %v1662 = vadd.f32 %v1658, 1e-06
    %v1663 = vadd.f32 %v1659, 1e-06
    %v1664 = vadd.f32 %v1660, 1e-06
    %v1665 = vadd.f32 %v1661, 1e-06
    %v1666 = vrsqrt.pop %v1662
    %v1667 = vrsqrt.pop %v1663
    %v1668 = vrsqrt.pop %v1664
    %v1669 = vrsqrt.pop %v1665
    %v1670 = vmul.f32 %v1638, %v1666
    %v1671 = vmul.f32 %v1639, %v1667
    %v1672 = vmul.f32 %v1640, %v1668
    %v1673 = vmul.f32 %v1641, %v1669
    %v1675 = vlaneseq
    %v1676 = vshrl.u32 %v1675, 7
    %v1677 = vsub.s32 0, %v1676
    %v1678 = vrot.slane %v1620, %v1677
    %v1680 = vmul.f32 %v1670, %v1678
    %v1681 = vmul.f32 %v1671, %v1678
    %v1682 = vmul.f32 %v1672, %v1678
    %v1683 = vmul.f32 %v1673, %v1678
    %v1685 = vlaneseq
    %v1686 = vshrl.u32 %v1685, 7
    %v1687 = vsub.s32 0, %v1686
    %v1688 = vrot.slane %v1621, %v1687
    %v1690 = vadd.f32 %v1680, %v1688
    %v1691 = vadd.f32 %v1681, %v1688
    %v1692 = vadd.f32 %v1682, %v1688
    %v1693 = vadd.f32 %v1683, %v1688
    %v1694 = vld [vmem:[%s12] sm:$0xff]
    %v1695 = vld [vmem:[%s12 + $0x8] sm:$0xff]
    %v1696 = vld [vmem:[%s12 + $0x10] sm:$0xff]
    %v1697 = vld [vmem:[%s12 + $0x18] sm:$0xff]
    %v1698 = vld [vmem:[%s13] sm:$0x1]
    %v1700 = vlaneseq
    %v1701 = vshrl.u32 %v1700, 7
    %v1702 = vsub.s32 0, %v1701
    %v1703 = vrot.slane %v1698, %v1702
    %v1706 = vsel %vm178, %v1690, 0
    %v1709 = vsel %vm178, %v1691, 0
    %v1712 = vsel %vm178, %v1692, 0
    %v1715 = vsel %vm178, %v1693, 0
    %1717 = vmatprep.subr.mxu0 0.0
    %1718 = vmatpush1.msra.mxu0 0.0
    %1719 = vmatprep.subr.mxu0 0.0
    %1720 = vmatpush1.msra.mxu0 0.0
    %1721 = vmatprep.subr.mxu0 0.0
    %1722 = vmatpush1.msra.mxu0 0.0
    %1723 = vmatprep.subr.mxu0 0.0
    %1724 = vmatpush1.msra.mxu0 0.0
    %1725 = vmatprep.subr.mxu0 0.0
    %1726 = vmatpush1.msra.mxu0 0.0
    %1727 = vmatprep.subr.mxu0 0.0
    %1728 = vmatpush1.msra.mxu0 0.0
    %1729 = vmatprep.subr.mxu0 0.0
    %1730 = vmatpush1.msra.mxu0 0.0
    %1731 = vmatprep.subr.mxu0 0.0
    %1732 = vmatpush1.msra.mxu0 0.0
    %1733 = vmatprep.subr.mxu0 0.0
    %1734 = vmatpush1.msra.mxu0 0.0
    %1735 = vmatprep.subr.mxu0 0.0
    %1736 = vmatpush1.msra.mxu0 0.0
    %1737 = vmatprep.subr.mxu0 0.0
    %1738 = vmatpush1.msra.mxu0 0.0
    %1739 = vmatprep.subr.mxu0 0.0
    %1740 = vmatpush1.msra.mxu0 0.0
    %1741 = vmatprep.subr.mxu0 0.0
    %1742 = vmatpush1.msra.mxu0 %v1697
    %1743 = vmatprep.subr.mxu0 0.0
    %1744 = vmatpush1.msra.mxu0 %v1696
    %1745 = vmatprep.subr.mxu0 0.0
    %1746 = vmatpush1.msra.mxu0 %v1695
    %1747 = vmatprep.subr.mxu0 0.0
    %1748 = vmatpush1.msra.mxu0 %v1694
    %1749 = vmatprep.subr.mxu0 0.0
    %1750 = vmatpush2.msra.mxu0 0.0
    %1751 = vmatprep.subr.mxu0 0.0
    %1752 = vmatpush2.msra.mxu0 0.0
    %1753 = vmatprep.subr.mxu0 0.0
    %1754 = vmatpush2.msra.mxu0 0.0
    %1755 = vmatprep.subr.mxu0 0.0
    %1756 = vmatpush2.msra.mxu0 0.0
    %1757 = vmatprep.subr.mxu0 0.0
    %1758 = vmatpush2.msra.mxu0 0.0
    %1759 = vmatprep.subr.mxu0 0.0
    %1760 = vmatpush2.msra.mxu0 0.0
    %1761 = vmatprep.subr.mxu0 0.0
    %1762 = vmatpush2.msra.mxu0 0.0
    %1763 = vmatprep.subr.mxu0 0.0
    %1764 = vmatpush2.msra.mxu0 0.0
    %1765 = vmatprep.subr.mxu0 0.0
    %1766 = vmatpush2.msra.mxu0 0.0
    %1767 = vmatprep.subr.mxu0 0.0
    %1768 = vmatpush2.msra.mxu0 0.0
    %1769 = vmatprep.subr.mxu0 0.0
    %1770 = vmatpush2.msra.mxu0 0.0
    %1771 = vmatprep.subr.mxu0 0.0
    %1772 = vmatpush2.msra.mxu0 0.0
    %1773 = vmatprep.subr.mxu0 0.0
    %1774 = vmatpush2.msra.mxu0 0.0
    %1775 = vmatprep.subr.mxu0 0.0
    %1776 = vmatpush2.msra.mxu0 0.0
    %1777 = vmatprep.subr.mxu0 0.0
    %1778 = vmatpush2.msra.mxu0 0.0
    %1779 = vmatprep.subr.mxu0 0.0
    %1780 = vmatpush2.msra.mxu0 0.0
    %1781 = vmatprep.mubr.f32.mxu0 0.0
    %1782 = vmatmul.mubr.f32.gmra.mxu0 %v1706
    %v1783 = vpop.f32.mrf.mxu0
    %v1784 = vadd.f32 %v1703, %v1783
    %v1785 = vpop.f32.mrf.mxu0
    %1786 = vmatprep.mubr.f32.mxu0 0.0
    %1787 = vmatmul.mubr.f32.gmra.mxu0 %v1709
    %v1788 = vpop.f32.mrf.mxu0
    %v1789 = vadd.f32 %v1703, %v1788
    %v1790 = vpop.f32.mrf.mxu0
    %1791 = vmatprep.mubr.f32.mxu0 0.0
    %1792 = vmatmul.mubr.f32.gmra.mxu0 %v1712
    %v1793 = vpop.f32.mrf.mxu0
    %v1794 = vadd.f32 %v1703, %v1793
    %v1795 = vpop.f32.mrf.mxu0
    %1796 = vmatprep.mubr.f32.mxu0 0.0
    %1797 = vmatmul.mubr.f32.gmra.mxu0 %v1715
    %v1798 = vpop.f32.mrf.mxu0
    %v1799 = vadd.f32 %v1703, %v1798
    %v1800 = vpop.f32.mrf.mxu0
    %1801 = vdwg.mxu0
    %v1802 = vmul.f32 %v1784, 0.5
    %v1803 = vmul.f32 %v1789, 0.5
    %v1804 = vmul.f32 %v1794, 0.5
    %v1805 = vmul.f32 %v1799, 0.5
    %v1806 = vmul.f32 %v1784, 0.70710677
    %v1807 = vmul.f32 %v1789, 0.70710677
    %v1808 = vmul.f32 %v1794, 0.70710677
    %v1809 = vmul.f32 %v1799, 0.70710677
    %v1810 = verf.f32.pop %v1806
    %v1811 = verf.f32.pop %v1807
    %v1812 = verf.f32.pop %v1808
    %v1813 = verf.f32.pop %v1809
    %v1814 = vadd.f32 %v1810, 1.0
    %v1815 = vadd.f32 %v1811, 1.0
    %v1816 = vadd.f32 %v1812, 1.0
    %v1817 = vadd.f32 %v1813, 1.0
    %v1818 = vmul.f32 %v1802, %v1814
    %v1819 = vmul.f32 %v1803, %v1815
    %v1820 = vmul.f32 %v1804, %v1816
    %v1821 = vmul.f32 %v1805, %v1817
    %v1822 = vld [vmem:[%s14] sm:$0xff]
    %v1823 = vld [vmem:[%s14 + $0x8] sm:$0xff]
    %v1824 = vld [vmem:[%s14 + $0x10] sm:$0xff]
    %v1825 = vld [vmem:[%s14 + $0x18] sm:$0xff]
    %v1826 = vld [vmem:[%s14 + $0x20] sm:$0xff]
    %v1827 = vld [vmem:[%s14 + $0x28] sm:$0xff]
    %v1828 = vld [vmem:[%s14 + $0x30] sm:$0xff]
    %v1829 = vld [vmem:[%s14 + $0x38] sm:$0xff]
    %v1830 = vld [vmem:[%s15] sm:$0x1]
    %v1832 = vlaneseq
    %v1833 = vshrl.u32 %v1832, 7
    %v1834 = vsub.s32 0, %v1833
    %v1835 = vrot.slane %v1830, %v1834
    %vm1837 = vcmask 523264
    %v1839 = vsel %vm1837, %v1818, 0
    %v1842 = vsel %vm1837, %v1819, 0
    %v1845 = vsel %vm1837, %v1820, 0
    %v1848 = vsel %vm1837, %v1821, 0
    %1850 = vmatprep.subr.mxu0 0.0
    %1851 = vmatpush1.msra.mxu0 0.0
    %1852 = vmatprep.subr.mxu0 0.0
    %1853 = vmatpush1.msra.mxu0 0.0
    %1854 = vmatprep.subr.mxu0 0.0
    %1855 = vmatpush1.msra.mxu0 0.0
    %1856 = vmatprep.subr.mxu0 0.0
    %1857 = vmatpush1.msra.mxu0 0.0
    %1858 = vmatprep.subr.mxu0 0.0
    %1859 = vmatpush1.msra.mxu0 0.0
    %1860 = vmatprep.subr.mxu0 0.0
    %1861 = vmatpush1.msra.mxu0 0.0
    %1862 = vmatprep.subr.mxu0 0.0
    %1863 = vmatpush1.msra.mxu0 0.0
    %1864 = vmatprep.subr.mxu0 0.0
    %1865 = vmatpush1.msra.mxu0 0.0
    %1866 = vmatprep.subr.mxu0 0.0
    %1867 = vmatpush1.msra.mxu0 %v1829
    %1868 = vmatprep.subr.mxu0 0.0
    %1869 = vmatpush1.msra.mxu0 %v1828
    %1870 = vmatprep.subr.mxu0 0.0
    %1871 = vmatpush1.msra.mxu0 %v1827
    %1872 = vmatprep.subr.mxu0 0.0
    %1873 = vmatpush1.msra.mxu0 %v1826
    %1874 = vmatprep.subr.mxu0 0.0
    %1875 = vmatpush1.msra.mxu0 %v1825
    %1876 = vmatprep.subr.mxu0 0.0
    %1877 = vmatpush1.msra.mxu0 %v1824
    %1878 = vmatprep.subr.mxu0 0.0
    %1879 = vmatpush1.msra.mxu0 %v1823
    %1880 = vmatprep.subr.mxu0 0.0
    %1881 = vmatpush1.msra.mxu0 %v1822
    %1882 = vmatprep.subr.mxu0 0.0
    %1883 = vmatpush2.msra.mxu0 0.0
    %1884 = vmatprep.subr.mxu0 0.0
    %1885 = vmatpush2.msra.mxu0 0.0
    %1886 = vmatprep.subr.mxu0 0.0
    %1887 = vmatpush2.msra.mxu0 0.0
    %1888 = vmatprep.subr.mxu0 0.0
    %1889 = vmatpush2.msra.mxu0 0.0
    %1890 = vmatprep.subr.mxu0 0.0
    %1891 = vmatpush2.msra.mxu0 0.0
    %1892 = vmatprep.subr.mxu0 0.0
    %1893 = vmatpush2.msra.mxu0 0.0
    %1894 = vmatprep.subr.mxu0 0.0
    %1895 = vmatpush2.msra.mxu0 0.0
    %1896 = vmatprep.subr.mxu0 0.0
    %1897 = vmatpush2.msra.mxu0 0.0
    %1898 = vmatprep.subr.mxu0 0.0
    %1899 = vmatpush2.msra.mxu0 0.0
    %1900 = vmatprep.subr.mxu0 0.0
    %1901 = vmatpush2.msra.mxu0 0.0
    %1902 = vmatprep.subr.mxu0 0.0
    %1903 = vmatpush2.msra.mxu0 0.0
    %1904 = vmatprep.subr.mxu0 0.0
    %1905 = vmatpush2.msra.mxu0 0.0
    %1906 = vmatprep.subr.mxu0 0.0
    %1907 = vmatpush2.msra.mxu0 0.0
    %1908 = vmatprep.subr.mxu0 0.0
    %1909 = vmatpush2.msra.mxu0 0.0
    %1910 = vmatprep.subr.mxu0 0.0
    %1911 = vmatpush2.msra.mxu0 0.0
    %1912 = vmatprep.subr.mxu0 0.0
    %1913 = vmatpush2.msra.mxu0 0.0
    %1914 = vmatprep.mubr.f32.mxu0 0.0
    %1915 = vmatmul.mubr.f32.gmra.mxu0 %v1839
    %v1916 = vpop.f32.mrf.mxu0
    %v1917 = vadd.f32 %v1835, %v1916
    %v1918 = vpop.f32.mrf.mxu0
    %1919 = vmatprep.mubr.f32.mxu0 0.0
    %1920 = vmatmul.mubr.f32.gmra.mxu0 %v1842
    %v1921 = vpop.f32.mrf.mxu0
    %v1922 = vadd.f32 %v1835, %v1921
    %v1923 = vpop.f32.mrf.mxu0
    %1924 = vmatprep.mubr.f32.mxu0 0.0
    %1925 = vmatmul.mubr.f32.gmra.mxu0 %v1845
    %v1926 = vpop.f32.mrf.mxu0
    %v1927 = vadd.f32 %v1835, %v1926
    %v1928 = vpop.f32.mrf.mxu0
    %1929 = vmatprep.mubr.f32.mxu0 0.0
    %1930 = vmatmul.mubr.f32.gmra.mxu0 %v1848
    %v1931 = vpop.f32.mrf.mxu0
    %v1932 = vadd.f32 %v1835, %v1931
    %v1933 = vpop.f32.mrf.mxu0
    %1934 = vdwg.mxu0
    %v1935 = vadd.f32 %v1917, %v1616
    %v1936 = vadd.f32 %v1922, %v1617
    %v1937 = vadd.f32 %v1927, %v1618
    %v1938 = vadd.f32 %v1932, %v1619
    %s1939 = scalar_lea.vmem %s4, 1
    %v1940 = vld [vmem:[%s1939] sm:$0x1]
    %s1941 = scalar_lea.vmem %s5, 1
    %v1942 = vld [vmem:[%s1941] sm:$0x1]
    %v1943 = vsel %vm178, %v1935, 0.0
    %1944 = vadd.xlane.f32.xlu0 %v1943
    %v1945 = vpop.xlane.xlu0 %1944
    %v1946 = vsel %vm178, %v1936, 0.0
    %1947 = vadd.xlane.f32.xlu0 %v1946
    %v1948 = vpop.xlane.xlu0 %1947
    %v1949 = vsel %vm178, %v1937, 0.0
    %1950 = vadd.xlane.f32.xlu0 %v1949
    %v1951 = vpop.xlane.xlu0 %1950
    %v1952 = vsel %vm178, %v1938, 0.0
    %1953 = vadd.xlane.f32.xlu0 %v1952
    %v1954 = vpop.xlane.xlu0 %1953
    %v1955 = vmul.f32 %v1945, %v191
    %v1956 = vmul.f32 %v1948, %v191
    %v1957 = vmul.f32 %v1951, %v191
    %v1958 = vmul.f32 %v1954, %v191
    %v1959 = vsub.f32 %v1935, %v1955
    %v1960 = vsub.f32 %v1936, %v1956
    %v1961 = vsub.f32 %v1937, %v1957
    %v1962 = vsub.f32 %v1938, %v1958
    %v1963 = vmul.f32 %v1959, %v1959
    %v1964 = vmul.f32 %v1960, %v1960
    %v1965 = vmul.f32 %v1961, %v1961
    %v1966 = vmul.f32 %v1962, %v1962
    %v1967 = vsel %vm178, %v1963, 0.0
    %1968 = vadd.xlane.f32.xlu0 %v1967
    %v1969 = vpop.xlane.xlu0 %1968
    %v1970 = vsel %vm178, %v1964, 0.0
    %1971 = vadd.xlane.f32.xlu0 %v1970
    %v1972 = vpop.xlane.xlu0 %1971
    %v1973 = vsel %vm178, %v1965, 0.0
    %1974 = vadd.xlane.f32.xlu0 %v1973
    %v1975 = vpop.xlane.xlu0 %1974
    %v1976 = vsel %vm178, %v1966, 0.0
    %1977 = vadd.xlane.f32.xlu0 %v1976
    %v1978 = vpop.xlane.xlu0 %1977
    %v1979 = vmul.f32 %v1969, %v191
    %v1980 = vmul.f32 %v1972, %v191
    %v1981 = vmul.f32 %v1975, %v191
    %v1982 = vmul.f32 %v1978, %v191
    %v1983 = vadd.f32 %v1979, 1e-06
    %v1984 = vadd.f32 %v1980, 1e-06
    %v1985 = vadd.f32 %v1981, 1e-06
    %v1986 = vadd.f32 %v1982, 1e-06
    %v1987 = vrsqrt.pop %v1983
    %v1988 = vrsqrt.pop %v1984
    %v1989 = vrsqrt.pop %v1985
    %v1990 = vrsqrt.pop %v1986
    %v1991 = vmul.f32 %v1959, %v1987
    %v1992 = vmul.f32 %v1960, %v1988
    %v1993 = vmul.f32 %v1961, %v1989
    %v1994 = vmul.f32 %v1962, %v1990
    %v1996 = vlaneseq
    %v1997 = vshrl.u32 %v1996, 7
    %v1998 = vsub.s32 0, %v1997
    %v1999 = vrot.slane %v1940, %v1998
    %v2001 = vmul.f32 %v1991, %v1999
    %v2002 = vmul.f32 %v1992, %v1999
    %v2003 = vmul.f32 %v1993, %v1999
    %v2004 = vmul.f32 %v1994, %v1999
    %v2006 = vlaneseq
    %v2007 = vshrl.u32 %v2006, 7
    %v2008 = vsub.s32 0, %v2007
    %v2009 = vrot.slane %v1942, %v2008
    %v2011 = vadd.f32 %v2001, %v2009
    %v2012 = vadd.f32 %v2002, %v2009
    %v2013 = vadd.f32 %v2003, %v2009
    %v2014 = vadd.f32 %v2004, %v2009
    %s2015 = scalar_lea.vmem %s6, 32
    %v2016 = vld [vmem:[%s2015] sm:$0xff]
    %v2017 = vld [vmem:[%s2015 + $0x8] sm:$0xff]
    %v2018 = vld [vmem:[%s2015 + $0x10] sm:$0xff]
    %v2019 = vld [vmem:[%s2015 + $0x18] sm:$0xff]
    %s2020 = scalar_lea.vmem %s7, 1
    %v2021 = vld [vmem:[%s2020] sm:$0x1]
    %v2023 = vlaneseq
    %v2024 = vshrl.u32 %v2023, 7
    %v2025 = vsub.s32 0, %v2024
    %v2026 = vrot.slane %v2021, %v2025
    %v2029 = vsel %vm178, %v2011, 0
    %v2032 = vsel %vm178, %v2012, 0
    %v2035 = vsel %vm178, %v2013, 0
    %v2038 = vsel %vm178, %v2014, 0
    %2040 = vmatprep.subr.mxu0 0.0
    %2041 = vmatpush1.msra.mxu0 0.0
    %2042 = vmatprep.subr.mxu0 0.0
    %2043 = vmatpush1.msra.mxu0 0.0
    %2044 = vmatprep.subr.mxu0 0.0
    %2045 = vmatpush1.msra.mxu0 0.0
    %2046 = vmatprep.subr.mxu0 0.0
    %2047 = vmatpush1.msra.mxu0 0.0
    %2048 = vmatprep.subr.mxu0 0.0
    %2049 = vmatpush1.msra.mxu0 0.0
    %2050 = vmatprep.subr.mxu0 0.0
    %2051 = vmatpush1.msra.mxu0 0.0
    %2052 = vmatprep.subr.mxu0 0.0
    %2053 = vmatpush1.msra.mxu0 0.0
    %2054 = vmatprep.subr.mxu0 0.0
    %2055 = vmatpush1.msra.mxu0 0.0
    %2056 = vmatprep.subr.mxu0 0.0
    %2057 = vmatpush1.msra.mxu0 0.0
    %2058 = vmatprep.subr.mxu0 0.0
    %2059 = vmatpush1.msra.mxu0 0.0
    %2060 = vmatprep.subr.mxu0 0.0
    %2061 = vmatpush1.msra.mxu0 0.0
    %2062 = vmatprep.subr.mxu0 0.0
    %2063 = vmatpush1.msra.mxu0 0.0
    %2064 = vmatprep.subr.mxu0 0.0
    %2065 = vmatpush1.msra.mxu0 %v2019
    %2066 = vmatprep.subr.mxu0 0.0
    %2067 = vmatpush1.msra.mxu0 %v2018
    %2068 = vmatprep.subr.mxu0 0.0
    %2069 = vmatpush1.msra.mxu0 %v2017
    %2070 = vmatprep.subr.mxu0 0.0
    %2071 = vmatpush1.msra.mxu0 %v2016
    %2072 = vmatprep.subr.mxu0 0.0
    %2073 = vmatpush2.msra.mxu0 0.0
    %2074 = vmatprep.subr.mxu0 0.0
    %2075 = vmatpush2.msra.mxu0 0.0
    %2076 = vmatprep.subr.mxu0 0.0
    %2077 = vmatpush2.msra.mxu0 0.0
    %2078 = vmatprep.subr.mxu0 0.0
    %2079 = vmatpush2.msra.mxu0 0.0
    %2080 = vmatprep.subr.mxu0 0.0
    %2081 = vmatpush2.msra.mxu0 0.0
    %2082 = vmatprep.subr.mxu0 0.0
    %2083 = vmatpush2.msra.mxu0 0.0
    %2084 = vmatprep.subr.mxu0 0.0
    %2085 = vmatpush2.msra.mxu0 0.0
    %2086 = vmatprep.subr.mxu0 0.0
    %2087 = vmatpush2.msra.mxu0 0.0
    %2088 = vmatprep.subr.mxu0 0.0
    %2089 = vmatpush2.msra.mxu0 0.0
    %2090 = vmatprep.subr.mxu0 0.0
    %2091 = vmatpush2.msra.mxu0 0.0
    %2092 = vmatprep.subr.mxu0 0.0
    %2093 = vmatpush2.msra.mxu0 0.0
    %2094 = vmatprep.subr.mxu0 0.0
    %2095 = vmatpush2.msra.mxu0 0.0
    %2096 = vmatprep.subr.mxu0 0.0
    %2097 = vmatpush2.msra.mxu0 0.0
    %2098 = vmatprep.subr.mxu0 0.0
    %2099 = vmatpush2.msra.mxu0 0.0
    %2100 = vmatprep.subr.mxu0 0.0
    %2101 = vmatpush2.msra.mxu0 0.0
    %2102 = vmatprep.subr.mxu0 0.0
    %2103 = vmatpush2.msra.mxu0 0.0
    %2104 = vmatprep.mubr.f32.mxu0 0.0
    %2105 = vmatmul.mubr.f32.gmra.mxu0 %v2029
    %v2106 = vpop.f32.mrf.mxu0
    %v2107 = vadd.f32 %v2026, %v2106
    %v2108 = vpop.f32.mrf.mxu0
    %2109 = vmatprep.mubr.f32.mxu0 0.0
    %2110 = vmatmul.mubr.f32.gmra.mxu0 %v2032
    %v2111 = vpop.f32.mrf.mxu0
    %v2112 = vadd.f32 %v2026, %v2111
    %v2113 = vpop.f32.mrf.mxu0
    %2114 = vmatprep.mubr.f32.mxu0 0.0
    %2115 = vmatmul.mubr.f32.gmra.mxu0 %v2035
    %v2116 = vpop.f32.mrf.mxu0
    %v2117 = vadd.f32 %v2026, %v2116
    %v2118 = vpop.f32.mrf.mxu0
    %2119 = vmatprep.mubr.f32.mxu0 0.0
    %2120 = vmatmul.mubr.f32.gmra.mxu0 %v2038
    %v2121 = vpop.f32.mrf.mxu0
    %v2122 = vadd.f32 %v2026, %v2121
    %v2123 = vpop.f32.mrf.mxu0
    %2124 = vdwg.mxu0
    %2129 = vrot.lane.b32.xlu0 %v2107, 96
    %v2130 = vpop.permute.xlu0 %2129
    %2131 = vrot.lane.b32.xlu0 %v2112, 96
    %v2132 = vpop.permute.xlu0 %2131
    %2133 = vrot.lane.b32.xlu0 %v2117, 96
    %v2134 = vpop.permute.xlu0 %2133
    %2135 = vrot.lane.b32.xlu0 %v2122, 96
    %v2136 = vpop.permute.xlu0 %2135
    %v2137 = vsel %vm372, %v2107, 0
    %v2139 = vsel %vm372, %v2112, 0
    %v2141 = vsel %vm372, %v2117, 0
    %v2143 = vsel %vm372, %v2122, 0
    %v2145 = vsel %vm372, %v2130, 0
    %v2147 = vsel %vm372, %v2132, 0
    %v2149 = vsel %vm372, %v2134, 0
    %v2151 = vsel %vm372, %v2136, 0
    %2153 = vmatprep.subr.mxu0 0.0
    %2154 = vmatpush1.xpose.msra.mxu0 0.0
    %2155 = vmatprep.subr.mxu0 0.0
    %2156 = vmatpush1.xpose.msra.mxu0 0.0
    %2157 = vmatprep.subr.mxu0 0.0
    %2158 = vmatpush1.xpose.msra.mxu0 0.0
    %2159 = vmatprep.subr.mxu0 0.0
    %2160 = vmatpush1.xpose.msra.mxu0 0.0
    %2161 = vmatprep.subr.mxu0 0.0
    %2162 = vmatpush1.xpose.msra.mxu0 0.0
    %2163 = vmatprep.subr.mxu0 0.0
    %2164 = vmatpush1.xpose.msra.mxu0 0.0
    %2165 = vmatprep.subr.mxu0 0.0
    %2166 = vmatpush1.xpose.msra.mxu0 0.0
    %2167 = vmatprep.subr.mxu0 0.0
    %2168 = vmatpush1.xpose.msra.mxu0 0.0
    %2169 = vmatprep.subr.mxu0 0.0
    %2170 = vmatpush1.xpose.msra.mxu0 0.0
    %2171 = vmatprep.subr.mxu0 0.0
    %2172 = vmatpush1.xpose.msra.mxu0 0.0
    %2173 = vmatprep.subr.mxu0 0.0
    %2174 = vmatpush1.xpose.msra.mxu0 0.0
    %2175 = vmatprep.subr.mxu0 0.0
    %2176 = vmatpush1.xpose.msra.mxu0 0.0
    %2177 = vmatprep.subr.mxu0 0.0
    %2178 = vmatpush1.xpose.msra.mxu0 %v2151
    %2179 = vmatprep.subr.mxu0 0.0
    %2180 = vmatpush1.xpose.msra.mxu0 %v2149
    %2181 = vmatprep.subr.mxu0 0.0
    %2182 = vmatpush1.xpose.msra.mxu0 %v2147
    %2183 = vmatprep.subr.mxu0 0.0
    %2184 = vmatpush1.xpose.msra.mxu0 %v2145
    %2185 = vmatprep.subr.mxu0 0.0
    %2186 = vmatpush2.xpose.msra.mxu0 0.0
    %2187 = vmatprep.subr.mxu0 0.0
    %2188 = vmatpush2.xpose.msra.mxu0 0.0
    %2189 = vmatprep.subr.mxu0 0.0
    %2190 = vmatpush2.xpose.msra.mxu0 0.0
    %2191 = vmatprep.subr.mxu0 0.0
    %2192 = vmatpush2.xpose.msra.mxu0 0.0
    %2193 = vmatprep.subr.mxu0 0.0
    %2194 = vmatpush2.xpose.msra.mxu0 0.0
    %2195 = vmatprep.subr.mxu0 0.0
    %2196 = vmatpush2.xpose.msra.mxu0 0.0
    %2197 = vmatprep.subr.mxu0 0.0
    %2198 = vmatpush2.xpose.msra.mxu0 0.0
    %2199 = vmatprep.subr.mxu0 0.0
    %2200 = vmatpush2.xpose.msra.mxu0 0.0
    %2201 = vmatprep.subr.mxu0 0.0
    %2202 = vmatpush2.xpose.msra.mxu0 0.0
    %2203 = vmatprep.subr.mxu0 0.0
    %2204 = vmatpush2.xpose.msra.mxu0 0.0
    %2205 = vmatprep.subr.mxu0 0.0
    %2206 = vmatpush2.xpose.msra.mxu0 0.0
    %2207 = vmatprep.subr.mxu0 0.0
    %2208 = vmatpush2.xpose.msra.mxu0 0.0
    %2209 = vmatprep.subr.mxu0 0.0
    %2210 = vmatpush2.xpose.msra.mxu0 0.0
    %2211 = vmatprep.subr.mxu0 0.0
    %2212 = vmatpush2.xpose.msra.mxu0 0.0
    %2213 = vmatprep.subr.mxu0 0.0
    %2214 = vmatpush2.xpose.msra.mxu0 0.0
    %2215 = vmatprep.subr.mxu0 0.0
    %2216 = vmatpush2.xpose.msra.mxu0 0.0
    %2217 = vmatprep.mubr.f32.mxu0 0.0
    %2218 = vmatmul.mubr.f32.gmra.mxu0 %v2137
    %v2219 = vpop.f32.mrf.mxu0
    %v2220 = vadd.f32 %v172, %v2219
    %v2221 = vpop.f32.mrf.mxu0
    %2222 = vmatprep.mubr.f32.mxu0 0.0
    %2223 = vmatmul.mubr.f32.gmra.mxu0 %v2139
    %v2224 = vpop.f32.mrf.mxu0
    %v2225 = vadd.f32 %v173, %v2224
    %v2226 = vpop.f32.mrf.mxu0
    %2227 = vmatprep.mubr.f32.mxu0 0.0
    %2228 = vmatmul.mubr.f32.gmra.mxu0 %v2141
    %v2229 = vpop.f32.mrf.mxu0
    %v2230 = vadd.f32 %v174, %v2229
    %v2231 = vpop.f32.mrf.mxu0
    %2232 = vmatprep.mubr.f32.mxu0 0.0
    %2233 = vmatmul.mubr.f32.gmra.mxu0 %v2143
    %v2234 = vpop.f32.mrf.mxu0
    %v2235 = vadd.f32 %v175, %v2234
    %v2236 = vpop.f32.mrf.mxu0
    %2237 = vdwg.mxu0
    %v2238 = vsel %vm178, %v2220, -inf
    %2239 = vmax.xlane.f32.xlu0 %v2238
    %v2240 = vpop.xlane.xlu0 %2239
    %v2241 = vsel %vm178, %v2225, -inf
    %2242 = vmax.xlane.f32.xlu0 %v2241
    %v2243 = vpop.xlane.xlu0 %2242
    %v2244 = vsel %vm178, %v2230, -inf
    %2245 = vmax.xlane.f32.xlu0 %v2244
    %v2246 = vpop.xlane.xlu0 %2245
    %v2247 = vsel %vm178, %v2235, -inf
    %2248 = vmax.xlane.f32.xlu0 %v2247
    %v2249 = vpop.xlane.xlu0 %2248
    %v2250 = vsub.f32 %v2220, %v2240
    %v2251 = vsub.f32 %v2225, %v2243
    %v2252 = vsub.f32 %v2230, %v2246
    %v2253 = vsub.f32 %v2235, %v2249
    %v2254 = vmul.f32 %v2250, 1.442695
    %v2255 = vpow.pop %v2254
    %v2256 = vmul.f32 %v2251, 1.442695
    %v2257 = vpow.pop %v2256
    %v2258 = vmul.f32 %v2252, 1.442695
    %v2259 = vpow.pop %v2258
    %v2260 = vmul.f32 %v2253, 1.442695
    %v2261 = vpow.pop %v2260
    %v2262 = vsel %vm178, %v2255, 0.0
    %2263 = vadd.xlane.f32.xlu0 %v2262
    %v2264 = vpop.xlane.xlu0 %2263
    %v2265 = vsel %vm178, %v2257, 0.0
    %2266 = vadd.xlane.f32.xlu0 %v2265
    %v2267 = vpop.xlane.xlu0 %2266
    %v2268 = vsel %vm178, %v2259, 0.0
    %2269 = vadd.xlane.f32.xlu0 %v2268
    %v2270 = vpop.xlane.xlu0 %2269
    %v2271 = vsel %vm178, %v2261, 0.0
    %2272 = vadd.xlane.f32.xlu0 %v2271
    %v2273 = vpop.xlane.xlu0 %2272
    %v2274 = vrcp.pop %v2264
    %v2275 = vrcp.pop %v2267
    %v2276 = vrcp.pop %v2270
    %v2277 = vrcp.pop %v2273
    %v2278 = vmul.f32 %v2255, %v2274
    %v2279 = vmul.f32 %v2257, %v2275
    %v2280 = vmul.f32 %v2259, %v2276
    %v2281 = vmul.f32 %v2261, %v2277
    %2282 = vrot.lane.b32.xlu0 %v2107, 64
    %v2283 = vpop.permute.xlu0 %2282
    %2284 = vrot.lane.b32.xlu0 %v2112, 64
    %v2285 = vpop.permute.xlu0 %2284
    %2286 = vrot.lane.b32.xlu0 %v2117, 64
    %v2287 = vpop.permute.xlu0 %2286
    %2288 = vrot.lane.b32.xlu0 %v2122, 64
    %v2289 = vpop.permute.xlu0 %2288
    %v2295 = vsel %vm178, %v2278, 0
    %v2298 = vsel %vm178, %v2279, 0
    %v2301 = vsel %vm178, %v2280, 0
    %v2304 = vsel %vm178, %v2281, 0
    %2306 = vmatprep.subr.mxu0 0.0
    %2307 = vmatpush1.msra.mxu0 0.0
    %2308 = vmatprep.subr.mxu0 0.0
    %2309 = vmatpush1.msra.mxu0 0.0
    %2310 = vmatprep.subr.mxu0 0.0
    %2311 = vmatpush1.msra.mxu0 0.0
    %2312 = vmatprep.subr.mxu0 0.0
    %2313 = vmatpush1.msra.mxu0 0.0
    %2314 = vmatprep.subr.mxu0 0.0
    %2315 = vmatpush1.msra.mxu0 0.0
    %2316 = vmatprep.subr.mxu0 0.0
    %2317 = vmatpush1.msra.mxu0 0.0
    %2318 = vmatprep.subr.mxu0 0.0
    %2319 = vmatpush1.msra.mxu0 0.0
    %2320 = vmatprep.subr.mxu0 0.0
    %2321 = vmatpush1.msra.mxu0 0.0
    %2322 = vmatprep.subr.mxu0 0.0
    %2323 = vmatpush1.msra.mxu0 0.0
    %2324 = vmatprep.subr.mxu0 0.0
    %2325 = vmatpush1.msra.mxu0 0.0
    %2326 = vmatprep.subr.mxu0 0.0
    %2327 = vmatpush1.msra.mxu0 0.0
    %2328 = vmatprep.subr.mxu0 0.0
    %2329 = vmatpush1.msra.mxu0 0.0
    %2330 = vmatprep.subr.mxu0 0.0
    %2331 = vmatpush1.msra.mxu0 %v2289
    %2332 = vmatprep.subr.mxu0 0.0
    %2333 = vmatpush1.msra.mxu0 %v2287
    %2334 = vmatprep.subr.mxu0 0.0
    %2335 = vmatpush1.msra.mxu0 %v2285
    %2336 = vmatprep.subr.mxu0 0.0
    %2337 = vmatpush1.msra.mxu0 %v2283
    %2338 = vmatprep.subr.mxu0 0.0
    %2339 = vmatpush2.msra.mxu0 0.0
    %2340 = vmatprep.subr.mxu0 0.0
    %2341 = vmatpush2.msra.mxu0 0.0
    %2342 = vmatprep.subr.mxu0 0.0
    %2343 = vmatpush2.msra.mxu0 0.0
    %2344 = vmatprep.subr.mxu0 0.0
    %2345 = vmatpush2.msra.mxu0 0.0
    %2346 = vmatprep.subr.mxu0 0.0
    %2347 = vmatpush2.msra.mxu0 0.0
    %2348 = vmatprep.subr.mxu0 0.0
    %2349 = vmatpush2.msra.mxu0 0.0
    %2350 = vmatprep.subr.mxu0 0.0
    %2351 = vmatpush2.msra.mxu0 0.0
    %2352 = vmatprep.subr.mxu0 0.0
    %2353 = vmatpush2.msra.mxu0 0.0
    %2354 = vmatprep.subr.mxu0 0.0
    %2355 = vmatpush2.msra.mxu0 0.0
    %2356 = vmatprep.subr.mxu0 0.0
    %2357 = vmatpush2.msra.mxu0 0.0
    %2358 = vmatprep.subr.mxu0 0.0
    %2359 = vmatpush2.msra.mxu0 0.0
    %2360 = vmatprep.subr.mxu0 0.0
    %2361 = vmatpush2.msra.mxu0 0.0
    %2362 = vmatprep.subr.mxu0 0.0
    %2363 = vmatpush2.msra.mxu0 0.0
    %2364 = vmatprep.subr.mxu0 0.0
    %2365 = vmatpush2.msra.mxu0 0.0
    %2366 = vmatprep.subr.mxu0 0.0
    %2367 = vmatpush2.msra.mxu0 0.0
    %2368 = vmatprep.subr.mxu0 0.0
    %2369 = vmatpush2.msra.mxu0 0.0
    %2370 = vmatprep.mubr.f32.mxu0 0.0
    %2371 = vmatmul.mubr.f32.gmra.mxu0 %v2295
    %v2372 = vpop.f32.mrf.mxu0
    %v2373 = vadd.f32 0.0, %v2372
    %v2374 = vpop.f32.mrf.mxu0
    %2375 = vmatprep.mubr.f32.mxu0 0.0
    %2376 = vmatmul.mubr.f32.gmra.mxu0 %v2298
    %v2377 = vpop.f32.mrf.mxu0
    %v2378 = vadd.f32 0.0, %v2377
    %v2379 = vpop.f32.mrf.mxu0
    %2380 = vmatprep.mubr.f32.mxu0 0.0
    %2381 = vmatmul.mubr.f32.gmra.mxu0 %v2301
    %v2382 = vpop.f32.mrf.mxu0
    %v2383 = vadd.f32 0.0, %v2382
    %v2384 = vpop.f32.mrf.mxu0
    %2385 = vmatprep.mubr.f32.mxu0 0.0
    %2386 = vmatmul.mubr.f32.gmra.mxu0 %v2304
    %v2387 = vpop.f32.mrf.mxu0
    %v2388 = vadd.f32 0.0, %v2387
    %v2389 = vpop.f32.mrf.mxu0
    %2390 = vdwg.mxu0
    %2391 = vst.msk [vmem:[#allocation2] sm:$0xff] %vm372, %v2373
    %2392 = vst.msk [vmem:[#allocation2 + $0x8] sm:$0xff] %vm372, %v2378
    %2393 = vst.msk [vmem:[#allocation2 + $0x10] sm:$0xff] %vm372, %v2383
    %2394 = vst.msk [vmem:[#allocation2 + $0x18] sm:$0xff] %vm372, %v2388
    %2395 = vrot.lane.b32.xlu0 %v2107, 120
    %v2396 = vpop.permute.xlu0 %2395
    %2397 = vrot.lane.b32.xlu0 %v2112, 120
    %v2398 = vpop.permute.xlu0 %2397
    %2399 = vrot.lane.b32.xlu0 %v2117, 120
    %v2400 = vpop.permute.xlu0 %2399
    %2401 = vrot.lane.b32.xlu0 %v2122, 120
    %v2402 = vpop.permute.xlu0 %2401
    %2403 = vrot.lane.b32.xlu0 %v2107, 88
    %v2404 = vpop.permute.xlu0 %2403
    %2405 = vrot.lane.b32.xlu0 %v2112, 88
    %v2406 = vpop.permute.xlu0 %2405
    %2407 = vrot.lane.b32.xlu0 %v2117, 88
    %v2408 = vpop.permute.xlu0 %2407
    %2409 = vrot.lane.b32.xlu0 %v2122, 88
    %v2410 = vpop.permute.xlu0 %2409
    %v2411 = vsel %vm372, %v2396, 0
    %v2413 = vsel %vm372, %v2398, 0
    %v2415 = vsel %vm372, %v2400, 0
    %v2417 = vsel %vm372, %v2402, 0
    %v2419 = vsel %vm372, %v2404, 0
    %v2421 = vsel %vm372, %v2406, 0
    %v2423 = vsel %vm372, %v2408, 0
    %v2425 = vsel %vm372, %v2410, 0
    %2427 = vmatprep.subr.mxu0 0.0
    %2428 = vmatpush1.xpose.msra.mxu0 0.0
    %2429 = vmatprep.subr.mxu0 0.0
    %2430 = vmatpush1.xpose.msra.mxu0 0.0
    %2431 = vmatprep.subr.mxu0 0.0
    %2432 = vmatpush1.xpose.msra.mxu0 0.0
    %2433 = vmatprep.subr.mxu0 0.0
    %2434 = vmatpush1.xpose.msra.mxu0 0.0
    %2435 = vmatprep.subr.mxu0 0.0
    %2436 = vmatpush1.xpose.msra.mxu0 0.0
    %2437 = vmatprep.subr.mxu0 0.0
    %2438 = vmatpush1.xpose.msra.mxu0 0.0
    %2439 = vmatprep.subr.mxu0 0.0
    %2440 = vmatpush1.xpose.msra.mxu0 0.0
    %2441 = vmatprep.subr.mxu0 0.0
    %2442 = vmatpush1.xpose.msra.mxu0 0.0
    %2443 = vmatprep.subr.mxu0 0.0
    %2444 = vmatpush1.xpose.msra.mxu0 0.0
    %2445 = vmatprep.subr.mxu0 0.0
    %2446 = vmatpush1.xpose.msra.mxu0 0.0
    %2447 = vmatprep.subr.mxu0 0.0
    %2448 = vmatpush1.xpose.msra.mxu0 0.0
    %2449 = vmatprep.subr.mxu0 0.0
    %2450 = vmatpush1.xpose.msra.mxu0 0.0
    %2451 = vmatprep.subr.mxu0 0.0
    %2452 = vmatpush1.xpose.msra.mxu0 %v2425
    %2453 = vmatprep.subr.mxu0 0.0
    %2454 = vmatpush1.xpose.msra.mxu0 %v2423
    %2455 = vmatprep.subr.mxu0 0.0
    %2456 = vmatpush1.xpose.msra.mxu0 %v2421
    %2457 = vmatprep.subr.mxu0 0.0
    %2458 = vmatpush1.xpose.msra.mxu0 %v2419
    %2459 = vmatprep.subr.mxu0 0.0
    %2460 = vmatpush2.xpose.msra.mxu0 0.0
    %2461 = vmatprep.subr.mxu0 0.0
    %2462 = vmatpush2.xpose.msra.mxu0 0.0
    %2463 = vmatprep.subr.mxu0 0.0
    %2464 = vmatpush2.xpose.msra.mxu0 0.0
    %2465 = vmatprep.subr.mxu0 0.0
    %2466 = vmatpush2.xpose.msra.mxu0 0.0
    %2467 = vmatprep.subr.mxu0 0.0
    %2468 = vmatpush2.xpose.msra.mxu0 0.0
    %2469 = vmatprep.subr.mxu0 0.0
    %2470 = vmatpush2.xpose.msra.mxu0 0.0
    %2471 = vmatprep.subr.mxu0 0.0
    %2472 = vmatpush2.xpose.msra.mxu0 0.0
    %2473 = vmatprep.subr.mxu0 0.0
    %2474 = vmatpush2.xpose.msra.mxu0 0.0
    %2475 = vmatprep.subr.mxu0 0.0
    %2476 = vmatpush2.xpose.msra.mxu0 0.0
    %2477 = vmatprep.subr.mxu0 0.0
    %2478 = vmatpush2.xpose.msra.mxu0 0.0
    %2479 = vmatprep.subr.mxu0 0.0
    %2480 = vmatpush2.xpose.msra.mxu0 0.0
    %2481 = vmatprep.subr.mxu0 0.0
    %2482 = vmatpush2.xpose.msra.mxu0 0.0
    %2483 = vmatprep.subr.mxu0 0.0
    %2484 = vmatpush2.xpose.msra.mxu0 0.0
    %2485 = vmatprep.subr.mxu0 0.0
    %2486 = vmatpush2.xpose.msra.mxu0 0.0
    %2487 = vmatprep.subr.mxu0 0.0
    %2488 = vmatpush2.xpose.msra.mxu0 0.0
    %2489 = vmatprep.subr.mxu0 0.0
    %2490 = vmatpush2.xpose.msra.mxu0 0.0
    %2491 = vmatprep.mubr.f32.mxu0 0.0
    %2492 = vmatmul.mubr.f32.gmra.mxu0 %v2411
    %v2493 = vpop.f32.mrf.mxu0
    %v2494 = vadd.f32 %v172, %v2493
    %v2495 = vpop.f32.mrf.mxu0
    %2496 = vmatprep.mubr.f32.mxu0 0.0
    %2497 = vmatmul.mubr.f32.gmra.mxu0 %v2413
    %v2498 = vpop.f32.mrf.mxu0
    %v2499 = vadd.f32 %v173, %v2498
    %v2500 = vpop.f32.mrf.mxu0
    %2501 = vmatprep.mubr.f32.mxu0 0.0
    %2502 = vmatmul.mubr.f32.gmra.mxu0 %v2415
    %v2503 = vpop.f32.mrf.mxu0
    %v2504 = vadd.f32 %v174, %v2503
    %v2505 = vpop.f32.mrf.mxu0
    %2506 = vmatprep.mubr.f32.mxu0 0.0
    %2507 = vmatmul.mubr.f32.gmra.mxu0 %v2417
    %v2508 = vpop.f32.mrf.mxu0
    %v2509 = vadd.f32 %v175, %v2508
    %v2510 = vpop.f32.mrf.mxu0
    %2511 = vdwg.mxu0
    %v2512 = vsel %vm178, %v2494, -inf
    %2513 = vmax.xlane.f32.xlu0 %v2512
    %v2514 = vpop.xlane.xlu0 %2513
    %v2515 = vsel %vm178, %v2499, -inf
    %2516 = vmax.xlane.f32.xlu0 %v2515
    %v2517 = vpop.xlane.xlu0 %2516
    %v2518 = vsel %vm178, %v2504, -inf
    %2519 = vmax.xlane.f32.xlu0 %v2518
    %v2520 = vpop.xlane.xlu0 %2519
    %v2521 = vsel %vm178, %v2509, -inf
    %2522 = vmax.xlane.f32.xlu0 %v2521
    %v2523 = vpop.xlane.xlu0 %2522
    %v2524 = vsub.f32 %v2494, %v2514
    %v2525 = vsub.f32 %v2499, %v2517
    %v2526 = vsub.f32 %v2504, %v2520
    %v2527 = vsub.f32 %v2509, %v2523
    %v2528 = vmul.f32 %v2524, 1.442695
    %v2529 = vpow.pop %v2528
    %v2530 = vmul.f32 %v2525, 1.442695
    %v2531 = vpow.pop %v2530
    %v2532 = vmul.f32 %v2526, 1.442695
    %v2533 = vpow.pop %v2532
    %v2534 = vmul.f32 %v2527, 1.442695
    %v2535 = vpow.pop %v2534
    %v2536 = vsel %vm178, %v2529, 0.0
    %2537 = vadd.xlane.f32.xlu0 %v2536
    %v2538 = vpop.xlane.xlu0 %2537
    %v2539 = vsel %vm178, %v2531, 0.0
    %2540 = vadd.xlane.f32.xlu0 %v2539
    %v2541 = vpop.xlane.xlu0 %2540
    %v2542 = vsel %vm178, %v2533, 0.0
    %2543 = vadd.xlane.f32.xlu0 %v2542
    %v2544 = vpop.xlane.xlu0 %2543
    %v2545 = vsel %vm178, %v2535, 0.0
    %2546 = vadd.xlane.f32.xlu0 %v2545
    %v2547 = vpop.xlane.xlu0 %2546
    %v2548 = vrcp.pop %v2538
    %v2549 = vrcp.pop %v2541
    %v2550 = vrcp.pop %v2544
    %v2551 = vrcp.pop %v2547
    %v2552 = vmul.f32 %v2529, %v2548
    %v2553 = vmul.f32 %v2531, %v2549
    %v2554 = vmul.f32 %v2533, %v2550
    %v2555 = vmul.f32 %v2535, %v2551
    %2556 = vrot.lane.b32.xlu0 %v2107, 56
    %v2557 = vpop.permute.xlu0 %2556
    %2558 = vrot.lane.b32.xlu0 %v2112, 56
    %v2559 = vpop.permute.xlu0 %2558
    %2560 = vrot.lane.b32.xlu0 %v2117, 56
    %v2561 = vpop.permute.xlu0 %2560
    %2562 = vrot.lane.b32.xlu0 %v2122, 56
    %v2563 = vpop.permute.xlu0 %2562
    %v2569 = vsel %vm178, %v2552, 0
    %v2572 = vsel %vm178, %v2553, 0
    %v2575 = vsel %vm178, %v2554, 0
    %v2578 = vsel %vm178, %v2555, 0
    %2580 = vmatprep.subr.mxu0 0.0
    %2581 = vmatpush1.msra.mxu0 0.0
    %2582 = vmatprep.subr.mxu0 0.0
    %2583 = vmatpush1.msra.mxu0 0.0
    %2584 = vmatprep.subr.mxu0 0.0
    %2585 = vmatpush1.msra.mxu0 0.0
    %2586 = vmatprep.subr.mxu0 0.0
    %2587 = vmatpush1.msra.mxu0 0.0
    %2588 = vmatprep.subr.mxu0 0.0
    %2589 = vmatpush1.msra.mxu0 0.0
    %2590 = vmatprep.subr.mxu0 0.0
    %2591 = vmatpush1.msra.mxu0 0.0
    %2592 = vmatprep.subr.mxu0 0.0
    %2593 = vmatpush1.msra.mxu0 0.0
    %2594 = vmatprep.subr.mxu0 0.0
    %2595 = vmatpush1.msra.mxu0 0.0
    %2596 = vmatprep.subr.mxu0 0.0
    %2597 = vmatpush1.msra.mxu0 0.0
    %2598 = vmatprep.subr.mxu0 0.0
    %2599 = vmatpush1.msra.mxu0 0.0
    %2600 = vmatprep.subr.mxu0 0.0
    %2601 = vmatpush1.msra.mxu0 0.0
    %2602 = vmatprep.subr.mxu0 0.0
    %2603 = vmatpush1.msra.mxu0 0.0
    %2604 = vmatprep.subr.mxu0 0.0
    %2605 = vmatpush1.msra.mxu0 %v2563
    %2606 = vmatprep.subr.mxu0 0.0
    %2607 = vmatpush1.msra.mxu0 %v2561
    %2608 = vmatprep.subr.mxu0 0.0
    %2609 = vmatpush1.msra.mxu0 %v2559
    %2610 = vmatprep.subr.mxu0 0.0
    %2611 = vmatpush1.msra.mxu0 %v2557
    %2612 = vmatprep.subr.mxu0 0.0
    %2613 = vmatpush2.msra.mxu0 0.0
    %2614 = vmatprep.subr.mxu0 0.0
    %2615 = vmatpush2.msra.mxu0 0.0
    %2616 = vmatprep.subr.mxu0 0.0
    %2617 = vmatpush2.msra.mxu0 0.0
    %2618 = vmatprep.subr.mxu0 0.0
    %2619 = vmatpush2.msra.mxu0 0.0
    %2620 = vmatprep.subr.mxu0 0.0
    %2621 = vmatpush2.msra.mxu0 0.0
    %2622 = vmatprep.subr.mxu0 0.0
    %2623 = vmatpush2.msra.mxu0 0.0
    %2624 = vmatprep.subr.mxu0 0.0
    %2625 = vmatpush2.msra.mxu0 0.0
    %2626 = vmatprep.subr.mxu0 0.0
    %2627 = vmatpush2.msra.mxu0 0.0
    %2628 = vmatprep.subr.mxu0 0.0
    %2629 = vmatpush2.msra.mxu0 0.0
    %2630 = vmatprep.subr.mxu0 0.0
    %2631 = vmatpush2.msra.mxu0 0.0
    %2632 = vmatprep.subr.mxu0 0.0
    %2633 = vmatpush2.msra.mxu0 0.0
    %2634 = vmatprep.subr.mxu0 0.0
    %2635 = vmatpush2.msra.mxu0 0.0
    %2636 = vmatprep.subr.mxu0 0.0
    %2637 = vmatpush2.msra.mxu0 0.0
    %2638 = vmatprep.subr.mxu0 0.0
    %2639 = vmatpush2.msra.mxu0 0.0
    %2640 = vmatprep.subr.mxu0 0.0
    %2641 = vmatpush2.msra.mxu0 0.0
    %2642 = vmatprep.subr.mxu0 0.0
    %2643 = vmatpush2.msra.mxu0 0.0
    %2644 = vmatprep.mubr.f32.mxu0 0.0
    %2645 = vmatmul.mubr.f32.gmra.mxu0 %v2569
    %v2646 = vpop.f32.mrf.mxu0
    %v2647 = vadd.f32 0.0, %v2646
    %v2648 = vpop.f32.mrf.mxu0
    %2649 = vmatprep.mubr.f32.mxu0 0.0
    %2650 = vmatmul.mubr.f32.gmra.mxu0 %v2572
    %v2651 = vpop.f32.mrf.mxu0
    %v2652 = vadd.f32 0.0, %v2651
    %v2653 = vpop.f32.mrf.mxu0
    %2654 = vmatprep.mubr.f32.mxu0 0.0
    %2655 = vmatmul.mubr.f32.gmra.mxu0 %v2575
    %v2656 = vpop.f32.mrf.mxu0
    %v2657 = vadd.f32 0.0, %v2656
    %v2658 = vpop.f32.mrf.mxu0
    %2659 = vmatprep.mubr.f32.mxu0 0.0
    %2660 = vmatmul.mubr.f32.gmra.mxu0 %v2578
    %v2661 = vpop.f32.mrf.mxu0
    %v2662 = vadd.f32 0.0, %v2661
    %v2663 = vpop.f32.mrf.mxu0
    %2664 = vdwg.mxu0
    %2669 = vrot.lane.b32.xlu0 %v2647, 8
    %v2670 = vpop.permute.xlu0 %2669
    %2671 = vrot.lane.b32.xlu0 %v2652, 8
    %v2672 = vpop.permute.xlu0 %2671
    %2673 = vrot.lane.b32.xlu0 %v2657, 8
    %v2674 = vpop.permute.xlu0 %2673
    %2675 = vrot.lane.b32.xlu0 %v2662, 8
    %v2676 = vpop.permute.xlu0 %2675
    %2681 = vst.msk [vmem:[#allocation2] sm:$0xff] %vm917, %v2670
    %2682 = vst.msk [vmem:[#allocation2 + $0x8] sm:$0xff] %vm917, %v2672
    %2683 = vst.msk [vmem:[#allocation2 + $0x10] sm:$0xff] %vm917, %v2674
    %2684 = vst.msk [vmem:[#allocation2 + $0x18] sm:$0xff] %vm917, %v2676
    %2685 = vrot.lane.b32.xlu0 %v2107, 112
    %v2686 = vpop.permute.xlu0 %2685
    %2687 = vrot.lane.b32.xlu0 %v2112, 112
    %v2688 = vpop.permute.xlu0 %2687
    %2689 = vrot.lane.b32.xlu0 %v2117, 112
    %v2690 = vpop.permute.xlu0 %2689
    %2691 = vrot.lane.b32.xlu0 %v2122, 112
    %v2692 = vpop.permute.xlu0 %2691
    %2693 = vrot.lane.b32.xlu0 %v2107, 80
    %v2694 = vpop.permute.xlu0 %2693
    %2695 = vrot.lane.b32.xlu0 %v2112, 80
    %v2696 = vpop.permute.xlu0 %2695
    %2697 = vrot.lane.b32.xlu0 %v2117, 80
    %v2698 = vpop.permute.xlu0 %2697
    %2699 = vrot.lane.b32.xlu0 %v2122, 80
    %v2700 = vpop.permute.xlu0 %2699
    %v2701 = vsel %vm372, %v2686, 0
    %v2703 = vsel %vm372, %v2688, 0
    %v2705 = vsel %vm372, %v2690, 0
    %v2707 = vsel %vm372, %v2692, 0
    %v2709 = vsel %vm372, %v2694, 0
    %v2711 = vsel %vm372, %v2696, 0
    %v2713 = vsel %vm372, %v2698, 0
    %v2715 = vsel %vm372, %v2700, 0
    %2717 = vmatprep.subr.mxu0 0.0
    %2718 = vmatpush1.xpose.msra.mxu0 0.0
    %2719 = vmatprep.subr.mxu0 0.0
    %2720 = vmatpush1.xpose.msra.mxu0 0.0
    %2721 = vmatprep.subr.mxu0 0.0
    %2722 = vmatpush1.xpose.msra.mxu0 0.0
    %2723 = vmatprep.subr.mxu0 0.0
    %2724 = vmatpush1.xpose.msra.mxu0 0.0
    %2725 = vmatprep.subr.mxu0 0.0
    %2726 = vmatpush1.xpose.msra.mxu0 0.0
    %2727 = vmatprep.subr.mxu0 0.0
    %2728 = vmatpush1.xpose.msra.mxu0 0.0
    %2729 = vmatprep.subr.mxu0 0.0
    %2730 = vmatpush1.xpose.msra.mxu0 0.0
    %2731 = vmatprep.subr.mxu0 0.0
    %2732 = vmatpush1.xpose.msra.mxu0 0.0
    %2733 = vmatprep.subr.mxu0 0.0
    %2734 = vmatpush1.xpose.msra.mxu0 0.0
    %2735 = vmatprep.subr.mxu0 0.0
    %2736 = vmatpush1.xpose.msra.mxu0 0.0
    %2737 = vmatprep.subr.mxu0 0.0
    %2738 = vmatpush1.xpose.msra.mxu0 0.0
    %2739 = vmatprep.subr.mxu0 0.0
    %2740 = vmatpush1.xpose.msra.mxu0 0.0
    %2741 = vmatprep.subr.mxu0 0.0
    %2742 = vmatpush1.xpose.msra.mxu0 %v2715
    %2743 = vmatprep.subr.mxu0 0.0
    %2744 = vmatpush1.xpose.msra.mxu0 %v2713
    %2745 = vmatprep.subr.mxu0 0.0
    %2746 = vmatpush1.xpose.msra.mxu0 %v2711
    %2747 = vmatprep.subr.mxu0 0.0
    %2748 = vmatpush1.xpose.msra.mxu0 %v2709
    %2749 = vmatprep.subr.mxu0 0.0
    %2750 = vmatpush2.xpose.msra.mxu0 0.0
    %2751 = vmatprep.subr.mxu0 0.0
    %2752 = vmatpush2.xpose.msra.mxu0 0.0
    %2753 = vmatprep.subr.mxu0 0.0
    %2754 = vmatpush2.xpose.msra.mxu0 0.0
    %2755 = vmatprep.subr.mxu0 0.0
    %2756 = vmatpush2.xpose.msra.mxu0 0.0
    %2757 = vmatprep.subr.mxu0 0.0
    %2758 = vmatpush2.xpose.msra.mxu0 0.0
    %2759 = vmatprep.subr.mxu0 0.0
    %2760 = vmatpush2.xpose.msra.mxu0 0.0
    %2761 = vmatprep.subr.mxu0 0.0
    %2762 = vmatpush2.xpose.msra.mxu0 0.0
    %2763 = vmatprep.subr.mxu0 0.0
    %2764 = vmatpush2.xpose.msra.mxu0 0.0
    %2765 = vmatprep.subr.mxu0 0.0
    %2766 = vmatpush2.xpose.msra.mxu0 0.0
    %2767 = vmatprep.subr.mxu0 0.0
    %2768 = vmatpush2.xpose.msra.mxu0 0.0
    %2769 = vmatprep.subr.mxu0 0.0
    %2770 = vmatpush2.xpose.msra.mxu0 0.0
    %2771 = vmatprep.subr.mxu0 0.0
    %2772 = vmatpush2.xpose.msra.mxu0 0.0
    %2773 = vmatprep.subr.mxu0 0.0
    %2774 = vmatpush2.xpose.msra.mxu0 0.0
    %2775 = vmatprep.subr.mxu0 0.0
    %2776 = vmatpush2.xpose.msra.mxu0 0.0
    %2777 = vmatprep.subr.mxu0 0.0
    %2778 = vmatpush2.xpose.msra.mxu0 0.0
    %2779 = vmatprep.subr.mxu0 0.0
    %2780 = vmatpush2.xpose.msra.mxu0 0.0
    %2781 = vmatprep.mubr.f32.mxu0 0.0
    %2782 = vmatmul.mubr.f32.gmra.mxu0 %v2701
    %v2783 = vpop.f32.mrf.mxu0
    %v2784 = vadd.f32 %v172, %v2783
    %v2785 = vpop.f32.mrf.mxu0
    %2786 = vmatprep.mubr.f32.mxu0 0.0
    %2787 = vmatmul.mubr.f32.gmra.mxu0 %v2703
    %v2788 = vpop.f32.mrf.mxu0
    %v2789 = vadd.f32 %v173, %v2788
    %v2790 = vpop.f32.mrf.mxu0
    %2791 = vmatprep.mubr.f32.mxu0 0.0
    %2792 = vmatmul.mubr.f32.gmra.mxu0 %v2705
    %v2793 = vpop.f32.mrf.mxu0
    %v2794 = vadd.f32 %v174, %v2793
    %v2795 = vpop.f32.mrf.mxu0
    %2796 = vmatprep.mubr.f32.mxu0 0.0
    %2797 = vmatmul.mubr.f32.gmra.mxu0 %v2707
    %v2798 = vpop.f32.mrf.mxu0
    %v2799 = vadd.f32 %v175, %v2798
    %v2800 = vpop.f32.mrf.mxu0
    %2801 = vdwg.mxu0
    %v2802 = vsel %vm178, %v2784, -inf
    %2803 = vmax.xlane.f32.xlu0 %v2802
    %v2804 = vpop.xlane.xlu0 %2803
    %v2805 = vsel %vm178, %v2789, -inf
    %2806 = vmax.xlane.f32.xlu0 %v2805
    %v2807 = vpop.xlane.xlu0 %2806
    %v2808 = vsel %vm178, %v2794, -inf
    %2809 = vmax.xlane.f32.xlu0 %v2808
    %v2810 = vpop.xlane.xlu0 %2809
    %v2811 = vsel %vm178, %v2799, -inf
    %2812 = vmax.xlane.f32.xlu0 %v2811
    %v2813 = vpop.xlane.xlu0 %2812
    %v2814 = vsub.f32 %v2784, %v2804
    %v2815 = vsub.f32 %v2789, %v2807
    %v2816 = vsub.f32 %v2794, %v2810
    %v2817 = vsub.f32 %v2799, %v2813
    %v2818 = vmul.f32 %v2814, 1.442695
    %v2819 = vpow.pop %v2818
    %v2820 = vmul.f32 %v2815, 1.442695
    %v2821 = vpow.pop %v2820
    %v2822 = vmul.f32 %v2816, 1.442695
    %v2823 = vpow.pop %v2822
    %v2824 = vmul.f32 %v2817, 1.442695
    %v2825 = vpow.pop %v2824
    %v2826 = vsel %vm178, %v2819, 0.0
    %2827 = vadd.xlane.f32.xlu0 %v2826
    %v2828 = vpop.xlane.xlu0 %2827
    %v2829 = vsel %vm178, %v2821, 0.0
    %2830 = vadd.xlane.f32.xlu0 %v2829
    %v2831 = vpop.xlane.xlu0 %2830
    %v2832 = vsel %vm178, %v2823, 0.0
    %2833 = vadd.xlane.f32.xlu0 %v2832
    %v2834 = vpop.xlane.xlu0 %2833
    %v2835 = vsel %vm178, %v2825, 0.0
    %2836 = vadd.xlane.f32.xlu0 %v2835
    %v2837 = vpop.xlane.xlu0 %2836
    %v2838 = vrcp.pop %v2828
    %v2839 = vrcp.pop %v2831
    %v2840 = vrcp.pop %v2834
    %v2841 = vrcp.pop %v2837
    %v2842 = vmul.f32 %v2819, %v2838
    %v2843 = vmul.f32 %v2821, %v2839
    %v2844 = vmul.f32 %v2823, %v2840
    %v2845 = vmul.f32 %v2825, %v2841
    %2846 = vrot.lane.b32.xlu0 %v2107, 48
    %v2847 = vpop.permute.xlu0 %2846
    %2848 = vrot.lane.b32.xlu0 %v2112, 48
    %v2849 = vpop.permute.xlu0 %2848
    %2850 = vrot.lane.b32.xlu0 %v2117, 48
    %v2851 = vpop.permute.xlu0 %2850
    %2852 = vrot.lane.b32.xlu0 %v2122, 48
    %v2853 = vpop.permute.xlu0 %2852
    %v2859 = vsel %vm178, %v2842, 0
    %v2862 = vsel %vm178, %v2843, 0
    %v2865 = vsel %vm178, %v2844, 0
    %v2868 = vsel %vm178, %v2845, 0
    %2870 = vmatprep.subr.mxu0 0.0
    %2871 = vmatpush1.msra.mxu0 0.0
    %2872 = vmatprep.subr.mxu0 0.0
    %2873 = vmatpush1.msra.mxu0 0.0
    %2874 = vmatprep.subr.mxu0 0.0
    %2875 = vmatpush1.msra.mxu0 0.0
    %2876 = vmatprep.subr.mxu0 0.0
    %2877 = vmatpush1.msra.mxu0 0.0
    %2878 = vmatprep.subr.mxu0 0.0
    %2879 = vmatpush1.msra.mxu0 0.0
    %2880 = vmatprep.subr.mxu0 0.0
    %2881 = vmatpush1.msra.mxu0 0.0
    %2882 = vmatprep.subr.mxu0 0.0
    %2883 = vmatpush1.msra.mxu0 0.0
    %2884 = vmatprep.subr.mxu0 0.0
    %2885 = vmatpush1.msra.mxu0 0.0
    %2886 = vmatprep.subr.mxu0 0.0
    %2887 = vmatpush1.msra.mxu0 0.0
    %2888 = vmatprep.subr.mxu0 0.0
    %2889 = vmatpush1.msra.mxu0 0.0
    %2890 = vmatprep.subr.mxu0 0.0
    %2891 = vmatpush1.msra.mxu0 0.0
    %2892 = vmatprep.subr.mxu0 0.0
    %2893 = vmatpush1.msra.mxu0 0.0
    %2894 = vmatprep.subr.mxu0 0.0
    %2895 = vmatpush1.msra.mxu0 %v2853
    %2896 = vmatprep.subr.mxu0 0.0
    %2897 = vmatpush1.msra.mxu0 %v2851
    %2898 = vmatprep.subr.mxu0 0.0
    %2899 = vmatpush1.msra.mxu0 %v2849
    %2900 = vmatprep.subr.mxu0 0.0
    %2901 = vmatpush1.msra.mxu0 %v2847
    %2902 = vmatprep.subr.mxu0 0.0
    %2903 = vmatpush2.msra.mxu0 0.0
    %2904 = vmatprep.subr.mxu0 0.0
    %2905 = vmatpush2.msra.mxu0 0.0
    %2906 = vmatprep.subr.mxu0 0.0
    %2907 = vmatpush2.msra.mxu0 0.0
    %2908 = vmatprep.subr.mxu0 0.0
    %2909 = vmatpush2.msra.mxu0 0.0
    %2910 = vmatprep.subr.mxu0 0.0
    %2911 = vmatpush2.msra.mxu0 0.0
    %2912 = vmatprep.subr.mxu0 0.0
    %2913 = vmatpush2.msra.mxu0 0.0
    %2914 = vmatprep.subr.mxu0 0.0
    %2915 = vmatpush2.msra.mxu0 0.0
    %2916 = vmatprep.subr.mxu0 0.0
    %2917 = vmatpush2.msra.mxu0 0.0
    %2918 = vmatprep.subr.mxu0 0.0
    %2919 = vmatpush2.msra.mxu0 0.0
    %2920 = vmatprep.subr.mxu0 0.0
    %2921 = vmatpush2.msra.mxu0 0.0
    %2922 = vmatprep.subr.mxu0 0.0
    %2923 = vmatpush2.msra.mxu0 0.0
    %2924 = vmatprep.subr.mxu0 0.0
    %2925 = vmatpush2.msra.mxu0 0.0
    %2926 = vmatprep.subr.mxu0 0.0
    %2927 = vmatpush2.msra.mxu0 0.0
    %2928 = vmatprep.subr.mxu0 0.0
    %2929 = vmatpush2.msra.mxu0 0.0
    %2930 = vmatprep.subr.mxu0 0.0
    %2931 = vmatpush2.msra.mxu0 0.0
    %2932 = vmatprep.subr.mxu0 0.0
    %2933 = vmatpush2.msra.mxu0 0.0
    %2934 = vmatprep.mubr.f32.mxu0 0.0
    %2935 = vmatmul.mubr.f32.gmra.mxu0 %v2859
    %v2936 = vpop.f32.mrf.mxu0
    %v2937 = vadd.f32 0.0, %v2936
    %v2938 = vpop.f32.mrf.mxu0
    %2939 = vmatprep.mubr.f32.mxu0 0.0
    %2940 = vmatmul.mubr.f32.gmra.mxu0 %v2862
    %v2941 = vpop.f32.mrf.mxu0
    %v2942 = vadd.f32 0.0, %v2941
    %v2943 = vpop.f32.mrf.mxu0
    %2944 = vmatprep.mubr.f32.mxu0 0.0
    %2945 = vmatmul.mubr.f32.gmra.mxu0 %v2865
    %v2946 = vpop.f32.mrf.mxu0
    %v2947 = vadd.f32 0.0, %v2946
    %v2948 = vpop.f32.mrf.mxu0
    %2949 = vmatprep.mubr.f32.mxu0 0.0
    %2950 = vmatmul.mubr.f32.gmra.mxu0 %v2868
    %v2951 = vpop.f32.mrf.mxu0
    %v2952 = vadd.f32 0.0, %v2951
    %v2953 = vpop.f32.mrf.mxu0
    %2954 = vdwg.mxu0
    %2959 = vrot.lane.b32.xlu0 %v2937, 16
    %v2960 = vpop.permute.xlu0 %2959
    %2961 = vrot.lane.b32.xlu0 %v2942, 16
    %v2962 = vpop.permute.xlu0 %2961
    %2963 = vrot.lane.b32.xlu0 %v2947, 16
    %v2964 = vpop.permute.xlu0 %2963
    %2965 = vrot.lane.b32.xlu0 %v2952, 16
    %v2966 = vpop.permute.xlu0 %2965
    %2971 = vst.msk [vmem:[#allocation2] sm:$0xff] %vm1208, %v2960
    %2972 = vst.msk [vmem:[#allocation2 + $0x8] sm:$0xff] %vm1208, %v2962
    %2973 = vst.msk [vmem:[#allocation2 + $0x10] sm:$0xff] %vm1208, %v2964
    %2974 = vst.msk [vmem:[#allocation2 + $0x18] sm:$0xff] %vm1208, %v2966
    %2975 = vrot.lane.b32.xlu0 %v2107, 104
    %v2976 = vpop.permute.xlu0 %2975
    %2977 = vrot.lane.b32.xlu0 %v2112, 104
    %v2978 = vpop.permute.xlu0 %2977
    %2979 = vrot.lane.b32.xlu0 %v2117, 104
    %v2980 = vpop.permute.xlu0 %2979
    %2981 = vrot.lane.b32.xlu0 %v2122, 104
    %v2982 = vpop.permute.xlu0 %2981
    %2983 = vrot.lane.b32.xlu0 %v2107, 72
    %v2984 = vpop.permute.xlu0 %2983
    %2985 = vrot.lane.b32.xlu0 %v2112, 72
    %v2986 = vpop.permute.xlu0 %2985
    %2987 = vrot.lane.b32.xlu0 %v2117, 72
    %v2988 = vpop.permute.xlu0 %2987
    %2989 = vrot.lane.b32.xlu0 %v2122, 72
    %v2990 = vpop.permute.xlu0 %2989
    %v2991 = vsel %vm372, %v2976, 0
    %v2993 = vsel %vm372, %v2978, 0
    %v2995 = vsel %vm372, %v2980, 0
    %v2997 = vsel %vm372, %v2982, 0
    %v2999 = vsel %vm372, %v2984, 0
    %v3001 = vsel %vm372, %v2986, 0
    %v3003 = vsel %vm372, %v2988, 0
    %v3005 = vsel %vm372, %v2990, 0
    %3007 = vmatprep.subr.mxu0 0.0
    %3008 = vmatpush1.xpose.msra.mxu0 0.0
    %3009 = vmatprep.subr.mxu0 0.0
    %3010 = vmatpush1.xpose.msra.mxu0 0.0
    %3011 = vmatprep.subr.mxu0 0.0
    %3012 = vmatpush1.xpose.msra.mxu0 0.0
    %3013 = vmatprep.subr.mxu0 0.0
    %3014 = vmatpush1.xpose.msra.mxu0 0.0
    %3015 = vmatprep.subr.mxu0 0.0
    %3016 = vmatpush1.xpose.msra.mxu0 0.0
    %3017 = vmatprep.subr.mxu0 0.0
    %3018 = vmatpush1.xpose.msra.mxu0 0.0
    %3019 = vmatprep.subr.mxu0 0.0
    %3020 = vmatpush1.xpose.msra.mxu0 0.0
    %3021 = vmatprep.subr.mxu0 0.0
    %3022 = vmatpush1.xpose.msra.mxu0 0.0
    %3023 = vmatprep.subr.mxu0 0.0
    %3024 = vmatpush1.xpose.msra.mxu0 0.0
    %3025 = vmatprep.subr.mxu0 0.0
    %3026 = vmatpush1.xpose.msra.mxu0 0.0
    %3027 = vmatprep.subr.mxu0 0.0
    %3028 = vmatpush1.xpose.msra.mxu0 0.0
    %3029 = vmatprep.subr.mxu0 0.0
    %3030 = vmatpush1.xpose.msra.mxu0 0.0
    %3031 = vmatprep.subr.mxu0 0.0
    %3032 = vmatpush1.xpose.msra.mxu0 %v3005
    %3033 = vmatprep.subr.mxu0 0.0
    %3034 = vmatpush1.xpose.msra.mxu0 %v3003
    %3035 = vmatprep.subr.mxu0 0.0
    %3036 = vmatpush1.xpose.msra.mxu0 %v3001
    %3037 = vmatprep.subr.mxu0 0.0
    %3038 = vmatpush1.xpose.msra.mxu0 %v2999
    %3039 = vmatprep.subr.mxu0 0.0
    %3040 = vmatpush2.xpose.msra.mxu0 0.0
    %3041 = vmatprep.subr.mxu0 0.0
    %3042 = vmatpush2.xpose.msra.mxu0 0.0
    %3043 = vmatprep.subr.mxu0 0.0
    %3044 = vmatpush2.xpose.msra.mxu0 0.0
    %3045 = vmatprep.subr.mxu0 0.0
    %3046 = vmatpush2.xpose.msra.mxu0 0.0
    %3047 = vmatprep.subr.mxu0 0.0
    %3048 = vmatpush2.xpose.msra.mxu0 0.0
    %3049 = vmatprep.subr.mxu0 0.0
    %3050 = vmatpush2.xpose.msra.mxu0 0.0
    %3051 = vmatprep.subr.mxu0 0.0
    %3052 = vmatpush2.xpose.msra.mxu0 0.0
    %3053 = vmatprep.subr.mxu0 0.0
    %3054 = vmatpush2.xpose.msra.mxu0 0.0
    %3055 = vmatprep.subr.mxu0 0.0
    %3056 = vmatpush2.xpose.msra.mxu0 0.0
    %3057 = vmatprep.subr.mxu0 0.0
    %3058 = vmatpush2.xpose.msra.mxu0 0.0
    %3059 = vmatprep.subr.mxu0 0.0
    %3060 = vmatpush2.xpose.msra.mxu0 0.0
    %3061 = vmatprep.subr.mxu0 0.0
    %3062 = vmatpush2.xpose.msra.mxu0 0.0
    %3063 = vmatprep.subr.mxu0 0.0
    %3064 = vmatpush2.xpose.msra.mxu0 0.0
    %3065 = vmatprep.subr.mxu0 0.0
    %3066 = vmatpush2.xpose.msra.mxu0 0.0
    %3067 = vmatprep.subr.mxu0 0.0
    %3068 = vmatpush2.xpose.msra.mxu0 0.0
    %3069 = vmatprep.subr.mxu0 0.0
    %3070 = vmatpush2.xpose.msra.mxu0 0.0
    %3071 = vmatprep.mubr.f32.mxu0 0.0
    %3072 = vmatmul.mubr.f32.gmra.mxu0 %v2991
    %v3073 = vpop.f32.mrf.mxu0
    %v3074 = vadd.f32 %v172, %v3073
    %v3075 = vpop.f32.mrf.mxu0
    %3076 = vmatprep.mubr.f32.mxu0 0.0
    %3077 = vmatmul.mubr.f32.gmra.mxu0 %v2993
    %v3078 = vpop.f32.mrf.mxu0
    %v3079 = vadd.f32 %v173, %v3078
    %v3080 = vpop.f32.mrf.mxu0
    %3081 = vmatprep.mubr.f32.mxu0 0.0
    %3082 = vmatmul.mubr.f32.gmra.mxu0 %v2995
    %v3083 = vpop.f32.mrf.mxu0
    %v3084 = vadd.f32 %v174, %v3083
    %v3085 = vpop.f32.mrf.mxu0
    %3086 = vmatprep.mubr.f32.mxu0 0.0
    %3087 = vmatmul.mubr.f32.gmra.mxu0 %v2997
    %v3088 = vpop.f32.mrf.mxu0
    %v3089 = vadd.f32 %v175, %v3088
    %v3090 = vpop.f32.mrf.mxu0
    %3091 = vdwg.mxu0
    %v3092 = vsel %vm178, %v3074, -inf
    %3093 = vmax.xlane.f32.xlu0 %v3092
    %v3094 = vpop.xlane.xlu0 %3093
    %v3095 = vsel %vm178, %v3079, -inf
    %3096 = vmax.xlane.f32.xlu0 %v3095
    %v3097 = vpop.xlane.xlu0 %3096
    %v3098 = vsel %vm178, %v3084, -inf
    %3099 = vmax.xlane.f32.xlu0 %v3098
    %v3100 = vpop.xlane.xlu0 %3099
    %v3101 = vsel %vm178, %v3089, -inf
    %3102 = vmax.xlane.f32.xlu0 %v3101
    %v3103 = vpop.xlane.xlu0 %3102
    %v3104 = vsub.f32 %v3074, %v3094
    %v3105 = vsub.f32 %v3079, %v3097
    %v3106 = vsub.f32 %v3084, %v3100
    %v3107 = vsub.f32 %v3089, %v3103
    %v3108 = vmul.f32 %v3104, 1.442695
    %v3109 = vpow.pop %v3108
    %v3110 = vmul.f32 %v3105, 1.442695
    %v3111 = vpow.pop %v3110
    %v3112 = vmul.f32 %v3106, 1.442695
    %v3113 = vpow.pop %v3112
    %v3114 = vmul.f32 %v3107, 1.442695
    %v3115 = vpow.pop %v3114
    %v3116 = vsel %vm178, %v3109, 0.0
    %3117 = vadd.xlane.f32.xlu0 %v3116
    %v3118 = vpop.xlane.xlu0 %3117
    %v3119 = vsel %vm178, %v3111, 0.0
    %3120 = vadd.xlane.f32.xlu0 %v3119
    %v3121 = vpop.xlane.xlu0 %3120
    %v3122 = vsel %vm178, %v3113, 0.0
    %3123 = vadd.xlane.f32.xlu0 %v3122
    %v3124 = vpop.xlane.xlu0 %3123
    %v3125 = vsel %vm178, %v3115, 0.0
    %3126 = vadd.xlane.f32.xlu0 %v3125
    %v3127 = vpop.xlane.xlu0 %3126
    %v3128 = vrcp.pop %v3118
    %v3129 = vrcp.pop %v3121
    %v3130 = vrcp.pop %v3124
    %v3131 = vrcp.pop %v3127
    %v3132 = vmul.f32 %v3109, %v3128
    %v3133 = vmul.f32 %v3111, %v3129
    %v3134 = vmul.f32 %v3113, %v3130
    %v3135 = vmul.f32 %v3115, %v3131
    %3136 = vrot.lane.b32.xlu0 %v2107, 40
    %v3137 = vpop.permute.xlu0 %3136
    %3138 = vrot.lane.b32.xlu0 %v2112, 40
    %v3139 = vpop.permute.xlu0 %3138
    %3140 = vrot.lane.b32.xlu0 %v2117, 40
    %v3141 = vpop.permute.xlu0 %3140
    %3142 = vrot.lane.b32.xlu0 %v2122, 40
    %v3143 = vpop.permute.xlu0 %3142
    %v3149 = vsel %vm178, %v3132, 0
    %v3152 = vsel %vm178, %v3133, 0
    %v3155 = vsel %vm178, %v3134, 0
    %v3158 = vsel %vm178, %v3135, 0
    %3160 = vmatprep.subr.mxu0 0.0
    %3161 = vmatpush1.msra.mxu0 0.0
    %3162 = vmatprep.subr.mxu0 0.0
    %3163 = vmatpush1.msra.mxu0 0.0
    %3164 = vmatprep.subr.mxu0 0.0
    %3165 = vmatpush1.msra.mxu0 0.0
    %3166 = vmatprep.subr.mxu0 0.0
    %3167 = vmatpush1.msra.mxu0 0.0
    %3168 = vmatprep.subr.mxu0 0.0
    %3169 = vmatpush1.msra.mxu0 0.0
    %3170 = vmatprep.subr.mxu0 0.0
    %3171 = vmatpush1.msra.mxu0 0.0
    %3172 = vmatprep.subr.mxu0 0.0
    %3173 = vmatpush1.msra.mxu0 0.0
    %3174 = vmatprep.subr.mxu0 0.0
    %3175 = vmatpush1.msra.mxu0 0.0
    %3176 = vmatprep.subr.mxu0 0.0
    %3177 = vmatpush1.msra.mxu0 0.0
    %3178 = vmatprep.subr.mxu0 0.0
    %3179 = vmatpush1.msra.mxu0 0.0
    %3180 = vmatprep.subr.mxu0 0.0
    %3181 = vmatpush1.msra.mxu0 0.0
    %3182 = vmatprep.subr.mxu0 0.0
    %3183 = vmatpush1.msra.mxu0 0.0
    %3184 = vmatprep.subr.mxu0 0.0
    %3185 = vmatpush1.msra.mxu0 %v3143
    %3186 = vmatprep.subr.mxu0 0.0
    %3187 = vmatpush1.msra.mxu0 %v3141
    %3188 = vmatprep.subr.mxu0 0.0
    %3189 = vmatpush1.msra.mxu0 %v3139
    %3190 = vmatprep.subr.mxu0 0.0
    %3191 = vmatpush1.msra.mxu0 %v3137
    %3192 = vmatprep.subr.mxu0 0.0
    %3193 = vmatpush2.msra.mxu0 0.0
    %3194 = vmatprep.subr.mxu0 0.0
    %3195 = vmatpush2.msra.mxu0 0.0
    %3196 = vmatprep.subr.mxu0 0.0
    %3197 = vmatpush2.msra.mxu0 0.0
    %3198 = vmatprep.subr.mxu0 0.0
    %3199 = vmatpush2.msra.mxu0 0.0
    %3200 = vmatprep.subr.mxu0 0.0
    %3201 = vmatpush2.msra.mxu0 0.0
    %3202 = vmatprep.subr.mxu0 0.0
    %3203 = vmatpush2.msra.mxu0 0.0
    %3204 = vmatprep.subr.mxu0 0.0
    %3205 = vmatpush2.msra.mxu0 0.0
    %3206 = vmatprep.subr.mxu0 0.0
    %3207 = vmatpush2.msra.mxu0 0.0
    %3208 = vmatprep.subr.mxu0 0.0
    %3209 = vmatpush2.msra.mxu0 0.0
    %3210 = vmatprep.subr.mxu0 0.0
    %3211 = vmatpush2.msra.mxu0 0.0
    %3212 = vmatprep.subr.mxu0 0.0
    %3213 = vmatpush2.msra.mxu0 0.0
    %3214 = vmatprep.subr.mxu0 0.0
    %3215 = vmatpush2.msra.mxu0 0.0
    %3216 = vmatprep.subr.mxu0 0.0
    %3217 = vmatpush2.msra.mxu0 0.0
    %3218 = vmatprep.subr.mxu0 0.0
    %3219 = vmatpush2.msra.mxu0 0.0
    %3220 = vmatprep.subr.mxu0 0.0
    %3221 = vmatpush2.msra.mxu0 0.0
    %3222 = vmatprep.subr.mxu0 0.0
    %3223 = vmatpush2.msra.mxu0 0.0
    %3224 = vmatprep.mubr.f32.mxu0 0.0
    %3225 = vmatmul.mubr.f32.gmra.mxu0 %v3149
    %v3226 = vpop.f32.mrf.mxu0
    %v3227 = vadd.f32 0.0, %v3226
    %v3228 = vpop.f32.mrf.mxu0
    %3229 = vmatprep.mubr.f32.mxu0 0.0
    %3230 = vmatmul.mubr.f32.gmra.mxu0 %v3152
    %v3231 = vpop.f32.mrf.mxu0
    %v3232 = vadd.f32 0.0, %v3231
    %v3233 = vpop.f32.mrf.mxu0
    %3234 = vmatprep.mubr.f32.mxu0 0.0
    %3235 = vmatmul.mubr.f32.gmra.mxu0 %v3155
    %v3236 = vpop.f32.mrf.mxu0
    %v3237 = vadd.f32 0.0, %v3236
    %v3238 = vpop.f32.mrf.mxu0
    %3239 = vmatprep.mubr.f32.mxu0 0.0
    %3240 = vmatmul.mubr.f32.gmra.mxu0 %v3158
    %v3241 = vpop.f32.mrf.mxu0
    %v3242 = vadd.f32 0.0, %v3241
    %v3243 = vpop.f32.mrf.mxu0
    %3244 = vdwg.mxu0
    %3249 = vrot.lane.b32.xlu0 %v3227, 24
    %v3250 = vpop.permute.xlu0 %3249
    %3251 = vrot.lane.b32.xlu0 %v3232, 24
    %v3252 = vpop.permute.xlu0 %3251
    %3253 = vrot.lane.b32.xlu0 %v3237, 24
    %v3254 = vpop.permute.xlu0 %3253
    %3255 = vrot.lane.b32.xlu0 %v3242, 24
    %v3256 = vpop.permute.xlu0 %3255
    %3261 = vst.msk [vmem:[#allocation2] sm:$0xff] %vm1499, %v3250
    %3262 = vst.msk [vmem:[#allocation2 + $0x8] sm:$0xff] %vm1499, %v3252
    %3263 = vst.msk [vmem:[#allocation2 + $0x10] sm:$0xff] %vm1499, %v3254
    %3264 = vst.msk [vmem:[#allocation2 + $0x18] sm:$0xff] %vm1499, %v3256
    %v3265 = vld [vmem:[#allocation2] sm:$0xff]
    %v3266 = vld [vmem:[#allocation2 + $0x8] sm:$0xff]
    %v3267 = vld [vmem:[#allocation2 + $0x10] sm:$0xff]
    %v3268 = vld [vmem:[#allocation2 + $0x18] sm:$0xff]
    %s3269 = scalar_lea.vmem %s8, 32
    %v3270 = vld [vmem:[%s3269] sm:$0xff]
    %v3271 = vld [vmem:[%s3269 + $0x8] sm:$0xff]
    %v3272 = vld [vmem:[%s3269 + $0x10] sm:$0xff]
    %v3273 = vld [vmem:[%s3269 + $0x18] sm:$0xff]
    %s3274 = scalar_lea.vmem %s9, 1
    %v3275 = vld [vmem:[%s3274] sm:$0x1]
    %v3277 = vlaneseq
    %v3278 = vshrl.u32 %v3277, 7
    %v3279 = vsub.s32 0, %v3278
    %v3280 = vrot.slane %v3275, %v3279
    %v3283 = vsel %vm178, %v3265, 0
    %v3286 = vsel %vm178, %v3266, 0
    %v3289 = vsel %vm178, %v3267, 0
    %v3292 = vsel %vm178, %v3268, 0
    %3294 = vmatprep.subr.mxu0 0.0
    %3295 = vmatpush1.msra.mxu0 0.0
    %3296 = vmatprep.subr.mxu0 0.0
    %3297 = vmatpush1.msra.mxu0 0.0
    %3298 = vmatprep.subr.mxu0 0.0
    %3299 = vmatpush1.msra.mxu0 0.0
    %3300 = vmatprep.subr.mxu0 0.0
    %3301 = vmatpush1.msra.mxu0 0.0
    %3302 = vmatprep.subr.mxu0 0.0
    %3303 = vmatpush1.msra.mxu0 0.0
    %3304 = vmatprep.subr.mxu0 0.0
    %3305 = vmatpush1.msra.mxu0 0.0
    %3306 = vmatprep.subr.mxu0 0.0
    %3307 = vmatpush1.msra.mxu0 0.0
    %3308 = vmatprep.subr.mxu0 0.0
    %3309 = vmatpush1.msra.mxu0 0.0
    %3310 = vmatprep.subr.mxu0 0.0
    %3311 = vmatpush1.msra.mxu0 0.0
    %3312 = vmatprep.subr.mxu0 0.0
    %3313 = vmatpush1.msra.mxu0 0.0
    %3314 = vmatprep.subr.mxu0 0.0
    %3315 = vmatpush1.msra.mxu0 0.0
    %3316 = vmatprep.subr.mxu0 0.0
    %3317 = vmatpush1.msra.mxu0 0.0
    %3318 = vmatprep.subr.mxu0 0.0
    %3319 = vmatpush1.msra.mxu0 %v3273
    %3320 = vmatprep.subr.mxu0 0.0
    %3321 = vmatpush1.msra.mxu0 %v3272
    %3322 = vmatprep.subr.mxu0 0.0
    %3323 = vmatpush1.msra.mxu0 %v3271
    %3324 = vmatprep.subr.mxu0 0.0
    %3325 = vmatpush1.msra.mxu0 %v3270
    %3326 = vmatprep.subr.mxu0 0.0
    %3327 = vmatpush2.msra.mxu0 0.0
    %3328 = vmatprep.subr.mxu0 0.0
    %3329 = vmatpush2.msra.mxu0 0.0
    %3330 = vmatprep.subr.mxu0 0.0
    %3331 = vmatpush2.msra.mxu0 0.0
    %3332 = vmatprep.subr.mxu0 0.0
    %3333 = vmatpush2.msra.mxu0 0.0
    %3334 = vmatprep.subr.mxu0 0.0
    %3335 = vmatpush2.msra.mxu0 0.0
    %3336 = vmatprep.subr.mxu0 0.0
    %3337 = vmatpush2.msra.mxu0 0.0
    %3338 = vmatprep.subr.mxu0 0.0
    %3339 = vmatpush2.msra.mxu0 0.0
    %3340 = vmatprep.subr.mxu0 0.0
    %3341 = vmatpush2.msra.mxu0 0.0
    %3342 = vmatprep.subr.mxu0 0.0
    %3343 = vmatpush2.msra.mxu0 0.0
    %3344 = vmatprep.subr.mxu0 0.0
    %3345 = vmatpush2.msra.mxu0 0.0
    %3346 = vmatprep.subr.mxu0 0.0
    %3347 = vmatpush2.msra.mxu0 0.0
    %3348 = vmatprep.subr.mxu0 0.0
    %3349 = vmatpush2.msra.mxu0 0.0
    %3350 = vmatprep.subr.mxu0 0.0
    %3351 = vmatpush2.msra.mxu0 0.0
    %3352 = vmatprep.subr.mxu0 0.0
    %3353 = vmatpush2.msra.mxu0 0.0
    %3354 = vmatprep.subr.mxu0 0.0
    %3355 = vmatpush2.msra.mxu0 0.0
    %3356 = vmatprep.subr.mxu0 0.0
    %3357 = vmatpush2.msra.mxu0 0.0
    %3358 = vmatprep.mubr.f32.mxu0 0.0
    %3359 = vmatmul.mubr.f32.gmra.mxu0 %v3283
    %v3360 = vpop.f32.mrf.mxu0
    %v3361 = vadd.f32 %v3280, %v3360
    %v3362 = vpop.f32.mrf.mxu0
    %3363 = vmatprep.mubr.f32.mxu0 0.0
    %3364 = vmatmul.mubr.f32.gmra.mxu0 %v3286
    %v3365 = vpop.f32.mrf.mxu0
    %v3366 = vadd.f32 %v3280, %v3365
    %v3367 = vpop.f32.mrf.mxu0
    %3368 = vmatprep.mubr.f32.mxu0 0.0
    %3369 = vmatmul.mubr.f32.gmra.mxu0 %v3289
    %v3370 = vpop.f32.mrf.mxu0
    %v3371 = vadd.f32 %v3280, %v3370
    %v3372 = vpop.f32.mrf.mxu0
    %3373 = vmatprep.mubr.f32.mxu0 0.0
    %3374 = vmatmul.mubr.f32.gmra.mxu0 %v3292
    %v3375 = vpop.f32.mrf.mxu0
    %v3376 = vadd.f32 %v3280, %v3375
    %v3377 = vpop.f32.mrf.mxu0
    %3378 = vdwg.mxu0
    %v3379 = vadd.f32 %v3361, %v1935
    %v3380 = vadd.f32 %v3366, %v1936
    %v3381 = vadd.f32 %v3371, %v1937
    %v3382 = vadd.f32 %v3376, %v1938
    %s3383 = scalar_lea.vmem %s10, 1
    %v3384 = vld [vmem:[%s3383] sm:$0x1]
    %s3385 = scalar_lea.vmem %s11, 1
    %v3386 = vld [vmem:[%s3385] sm:$0x1]
    %v3387 = vsel %vm178, %v3379, 0.0
    %3388 = vadd.xlane.f32.xlu0 %v3387
    %v3389 = vpop.xlane.xlu0 %3388
    %v3390 = vsel %vm178, %v3380, 0.0
    %3391 = vadd.xlane.f32.xlu0 %v3390
    %v3392 = vpop.xlane.xlu0 %3391
    %v3393 = vsel %vm178, %v3381, 0.0
    %3394 = vadd.xlane.f32.xlu0 %v3393
    %v3395 = vpop.xlane.xlu0 %3394
    %v3396 = vsel %vm178, %v3382, 0.0
    %3397 = vadd.xlane.f32.xlu0 %v3396
    %v3398 = vpop.xlane.xlu0 %3397
    %v3399 = vmul.f32 %v3389, %v191
    %v3400 = vmul.f32 %v3392, %v191
    %v3401 = vmul.f32 %v3395, %v191
    %v3402 = vmul.f32 %v3398, %v191
    %v3403 = vsub.f32 %v3379, %v3399
    %v3404 = vsub.f32 %v3380, %v3400
    %v3405 = vsub.f32 %v3381, %v3401
    %v3406 = vsub.f32 %v3382, %v3402
    %v3407 = vmul.f32 %v3403, %v3403
    %v3408 = vmul.f32 %v3404, %v3404
    %v3409 = vmul.f32 %v3405, %v3405
    %v3410 = vmul.f32 %v3406, %v3406
    %v3411 = vsel %vm178, %v3407, 0.0
    %3412 = vadd.xlane.f32.xlu0 %v3411
    %v3413 = vpop.xlane.xlu0 %3412
    %v3414 = vsel %vm178, %v3408, 0.0
    %3415 = vadd.xlane.f32.xlu0 %v3414
    %v3416 = vpop.xlane.xlu0 %3415
    %v3417 = vsel %vm178, %v3409, 0.0
    %3418 = vadd.xlane.f32.xlu0 %v3417
    %v3419 = vpop.xlane.xlu0 %3418
    %v3420 = vsel %vm178, %v3410, 0.0
    %3421 = vadd.xlane.f32.xlu0 %v3420
    %v3422 = vpop.xlane.xlu0 %3421
    %v3423 = vmul.f32 %v3413, %v191
    %v3424 = vmul.f32 %v3416, %v191
    %v3425 = vmul.f32 %v3419, %v191
    %v3426 = vmul.f32 %v3422, %v191
    %v3427 = vadd.f32 %v3423, 1e-06
    %v3428 = vadd.f32 %v3424, 1e-06
    %v3429 = vadd.f32 %v3425, 1e-06
    %v3430 = vadd.f32 %v3426, 1e-06
    %v3431 = vrsqrt.pop %v3427
    %v3432 = vrsqrt.pop %v3428
    %v3433 = vrsqrt.pop %v3429
    %v3434 = vrsqrt.pop %v3430
    %v3435 = vmul.f32 %v3403, %v3431
    %v3436 = vmul.f32 %v3404, %v3432
    %v3437 = vmul.f32 %v3405, %v3433
    %v3438 = vmul.f32 %v3406, %v3434
    %v3440 = vlaneseq
    %v3441 = vshrl.u32 %v3440, 7
    %v3442 = vsub.s32 0, %v3441
    %v3443 = vrot.slane %v3384, %v3442
    %v3445 = vmul.f32 %v3435, %v3443
    %v3446 = vmul.f32 %v3436, %v3443
    %v3447 = vmul.f32 %v3437, %v3443
    %v3448 = vmul.f32 %v3438, %v3443
    %v3450 = vlaneseq
    %v3451 = vshrl.u32 %v3450, 7
    %v3452 = vsub.s32 0, %v3451
    %v3453 = vrot.slane %v3386, %v3452
    %v3455 = vadd.f32 %v3445, %v3453
    %v3456 = vadd.f32 %v3446, %v3453
    %v3457 = vadd.f32 %v3447, %v3453
    %v3458 = vadd.f32 %v3448, %v3453
    %s3459 = scalar_lea.vmem %s12, 32
    %v3460 = vld [vmem:[%s3459] sm:$0xff]
    %v3461 = vld [vmem:[%s3459 + $0x8] sm:$0xff]
    %v3462 = vld [vmem:[%s3459 + $0x10] sm:$0xff]
    %v3463 = vld [vmem:[%s3459 + $0x18] sm:$0xff]
    %s3464 = scalar_lea.vmem %s13, 1
    %v3465 = vld [vmem:[%s3464] sm:$0x1]
    %v3467 = vlaneseq
    %v3468 = vshrl.u32 %v3467, 7
    %v3469 = vsub.s32 0, %v3468
    %v3470 = vrot.slane %v3465, %v3469
    %v3473 = vsel %vm178, %v3455, 0
    %v3476 = vsel %vm178, %v3456, 0
    %v3479 = vsel %vm178, %v3457, 0
    %v3482 = vsel %vm178, %v3458, 0
    %3484 = vmatprep.subr.mxu0 0.0
    %3485 = vmatpush1.msra.mxu0 0.0
    %3486 = vmatprep.subr.mxu0 0.0
    %3487 = vmatpush1.msra.mxu0 0.0
    %3488 = vmatprep.subr.mxu0 0.0
    %3489 = vmatpush1.msra.mxu0 0.0
    %3490 = vmatprep.subr.mxu0 0.0
    %3491 = vmatpush1.msra.mxu0 0.0
    %3492 = vmatprep.subr.mxu0 0.0
    %3493 = vmatpush1.msra.mxu0 0.0
    %3494 = vmatprep.subr.mxu0 0.0
    %3495 = vmatpush1.msra.mxu0 0.0
    %3496 = vmatprep.subr.mxu0 0.0
    %3497 = vmatpush1.msra.mxu0 0.0
    %3498 = vmatprep.subr.mxu0 0.0
    %3499 = vmatpush1.msra.mxu0 0.0
    %3500 = vmatprep.subr.mxu0 0.0
    %3501 = vmatpush1.msra.mxu0 0.0
    %3502 = vmatprep.subr.mxu0 0.0
    %3503 = vmatpush1.msra.mxu0 0.0
    %3504 = vmatprep.subr.mxu0 0.0
    %3505 = vmatpush1.msra.mxu0 0.0
    %3506 = vmatprep.subr.mxu0 0.0
    %3507 = vmatpush1.msra.mxu0 0.0
    %3508 = vmatprep.subr.mxu0 0.0
    %3509 = vmatpush1.msra.mxu0 %v3463
    %3510 = vmatprep.subr.mxu0 0.0
    %3511 = vmatpush1.msra.mxu0 %v3462
    %3512 = vmatprep.subr.mxu0 0.0
    %3513 = vmatpush1.msra.mxu0 %v3461
    %3514 = vmatprep.subr.mxu0 0.0
    %3515 = vmatpush1.msra.mxu0 %v3460
    %3516 = vmatprep.subr.mxu0 0.0
    %3517 = vmatpush2.msra.mxu0 0.0
    %3518 = vmatprep.subr.mxu0 0.0
    %3519 = vmatpush2.msra.mxu0 0.0
    %3520 = vmatprep.subr.mxu0 0.0
    %3521 = vmatpush2.msra.mxu0 0.0
    %3522 = vmatprep.subr.mxu0 0.0
    %3523 = vmatpush2.msra.mxu0 0.0
    %3524 = vmatprep.subr.mxu0 0.0
    %3525 = vmatpush2.msra.mxu0 0.0
    %3526 = vmatprep.subr.mxu0 0.0
    %3527 = vmatpush2.msra.mxu0 0.0
    %3528 = vmatprep.subr.mxu0 0.0
    %3529 = vmatpush2.msra.mxu0 0.0
    %3530 = vmatprep.subr.mxu0 0.0
    %3531 = vmatpush2.msra.mxu0 0.0
    %3532 = vmatprep.subr.mxu0 0.0
    %3533 = vmatpush2.msra.mxu0 0.0
    %3534 = vmatprep.subr.mxu0 0.0
    %3535 = vmatpush2.msra.mxu0 0.0
    %3536 = vmatprep.subr.mxu0 0.0
    %3537 = vmatpush2.msra.mxu0 0.0
    %3538 = vmatprep.subr.mxu0 0.0
    %3539 = vmatpush2.msra.mxu0 0.0
    %3540 = vmatprep.subr.mxu0 0.0
    %3541 = vmatpush2.msra.mxu0 0.0
    %3542 = vmatprep.subr.mxu0 0.0
    %3543 = vmatpush2.msra.mxu0 0.0
    %3544 = vmatprep.subr.mxu0 0.0
    %3545 = vmatpush2.msra.mxu0 0.0
    %3546 = vmatprep.subr.mxu0 0.0
    %3547 = vmatpush2.msra.mxu0 0.0
    %3548 = vmatprep.mubr.f32.mxu0 0.0
    %3549 = vmatmul.mubr.f32.gmra.mxu0 %v3473
    %v3550 = vpop.f32.mrf.mxu0
    %v3551 = vadd.f32 %v3470, %v3550
    %v3552 = vpop.f32.mrf.mxu0
    %3553 = vmatprep.mubr.f32.mxu0 0.0
    %3554 = vmatmul.mubr.f32.gmra.mxu0 %v3476
    %v3555 = vpop.f32.mrf.mxu0
    %v3556 = vadd.f32 %v3470, %v3555
    %v3557 = vpop.f32.mrf.mxu0
    %3558 = vmatprep.mubr.f32.mxu0 0.0
    %3559 = vmatmul.mubr.f32.gmra.mxu0 %v3479
    %v3560 = vpop.f32.mrf.mxu0
    %v3561 = vadd.f32 %v3470, %v3560
    %v3562 = vpop.f32.mrf.mxu0
    %3563 = vmatprep.mubr.f32.mxu0 0.0
    %3564 = vmatmul.mubr.f32.gmra.mxu0 %v3482
    %v3565 = vpop.f32.mrf.mxu0
    %v3566 = vadd.f32 %v3470, %v3565
    %v3567 = vpop.f32.mrf.mxu0
    %3568 = vdwg.mxu0
    %v3569 = vmul.f32 %v3551, 0.5
    %v3570 = vmul.f32 %v3556, 0.5
    %v3571 = vmul.f32 %v3561, 0.5
    %v3572 = vmul.f32 %v3566, 0.5
    %v3573 = vmul.f32 %v3551, 0.70710677
    %v3574 = vmul.f32 %v3556, 0.70710677
    %v3575 = vmul.f32 %v3561, 0.70710677
    %v3576 = vmul.f32 %v3566, 0.70710677
    %v3577 = verf.f32.pop %v3573
    %v3578 = verf.f32.pop %v3574
    %v3579 = verf.f32.pop %v3575
    %v3580 = verf.f32.pop %v3576
    %v3581 = vadd.f32 %v3577, 1.0
    %v3582 = vadd.f32 %v3578, 1.0
    %v3583 = vadd.f32 %v3579, 1.0
    %v3584 = vadd.f32 %v3580, 1.0
    %v3585 = vmul.f32 %v3569, %v3581
    %v3586 = vmul.f32 %v3570, %v3582
    %v3587 = vmul.f32 %v3571, %v3583
    %v3588 = vmul.f32 %v3572, %v3584
    %s3589 = scalar_lea.vmem %s14, 64
    %v3590 = vld [vmem:[%s3589] sm:$0xff]
    %v3591 = vld [vmem:[%s3589 + $0x8] sm:$0xff]
    %v3592 = vld [vmem:[%s3589 + $0x10] sm:$0xff]
    %v3593 = vld [vmem:[%s3589 + $0x18] sm:$0xff]
    %v3594 = vld [vmem:[%s3589 + $0x20] sm:$0xff]
    %v3595 = vld [vmem:[%s3589 + $0x28] sm:$0xff]
    %v3596 = vld [vmem:[%s3589 + $0x30] sm:$0xff]
    %v3597 = vld [vmem:[%s3589 + $0x38] sm:$0xff]
    %s3598 = scalar_lea.vmem %s15, 1
    %v3599 = vld [vmem:[%s3598] sm:$0x1]
    %v3601 = vlaneseq
    %v3602 = vshrl.u32 %v3601, 7
    %v3603 = vsub.s32 0, %v3602
    %v3604 = vrot.slane %v3599, %v3603
    %v3607 = vsel %vm1837, %v3585, 0
    %v3610 = vsel %vm1837, %v3586, 0
    %v3613 = vsel %vm1837, %v3587, 0
    %v3616 = vsel %vm1837, %v3588, 0
    %3618 = vmatprep.subr.mxu0 0.0
    %3619 = vmatpush1.msra.mxu0 0.0
    %3620 = vmatprep.subr.mxu0 0.0
    %3621 = vmatpush1.msra.mxu0 0.0
    %3622 = vmatprep.subr.mxu0 0.0
    %3623 = vmatpush1.msra.mxu0 0.0
    %3624 = vmatprep.subr.mxu0 0.0
    %3625 = vmatpush1.msra.mxu0 0.0
    %3626 = vmatprep.subr.mxu0 0.0
    %3627 = vmatpush1.msra.mxu0 0.0
    %3628 = vmatprep.subr.mxu0 0.0
    %3629 = vmatpush1.msra.mxu0 0.0
    %3630 = vmatprep.subr.mxu0 0.0
    %3631 = vmatpush1.msra.mxu0 0.0
    %3632 = vmatprep.subr.mxu0 0.0
    %3633 = vmatpush1.msra.mxu0 0.0
    %3634 = vmatprep.subr.mxu0 0.0
    %3635 = vmatpush1.msra.mxu0 %v3597
    %3636 = vmatprep.subr.mxu0 0.0
    %3637 = vmatpush1.msra.mxu0 %v3596
    %3638 = vmatprep.subr.mxu0 0.0
    %3639 = vmatpush1.msra.mxu0 %v3595
    %3640 = vmatprep.subr.mxu0 0.0
    %3641 = vmatpush1.msra.mxu0 %v3594
    %3642 = vmatprep.subr.mxu0 0.0
    %3643 = vmatpush1.msra.mxu0 %v3593
    %3644 = vmatprep.subr.mxu0 0.0
    %3645 = vmatpush1.msra.mxu0 %v3592
    %3646 = vmatprep.subr.mxu0 0.0
    %3647 = vmatpush1.msra.mxu0 %v3591
    %3648 = vmatprep.subr.mxu0 0.0
    %3649 = vmatpush1.msra.mxu0 %v3590
    %3650 = vmatprep.subr.mxu0 0.0
    %3651 = vmatpush2.msra.mxu0 0.0
    %3652 = vmatprep.subr.mxu0 0.0
    %3653 = vmatpush2.msra.mxu0 0.0
    %3654 = vmatprep.subr.mxu0 0.0
    %3655 = vmatpush2.msra.mxu0 0.0
    %3656 = vmatprep.subr.mxu0 0.0
    %3657 = vmatpush2.msra.mxu0 0.0
    %3658 = vmatprep.subr.mxu0 0.0
    %3659 = vmatpush2.msra.mxu0 0.0
    %3660 = vmatprep.subr.mxu0 0.0
    %3661 = vmatpush2.msra.mxu0 0.0
    %3662 = vmatprep.subr.mxu0 0.0
    %3663 = vmatpush2.msra.mxu0 0.0
    %3664 = vmatprep.subr.mxu0 0.0
    %3665 = vmatpush2.msra.mxu0 0.0
    %3666 = vmatprep.subr.mxu0 0.0
    %3667 = vmatpush2.msra.mxu0 0.0
    %3668 = vmatprep.subr.mxu0 0.0
    %3669 = vmatpush2.msra.mxu0 0.0
    %3670 = vmatprep.subr.mxu0 0.0
    %3671 = vmatpush2.msra.mxu0 0.0
    %3672 = vmatprep.subr.mxu0 0.0
    %3673 = vmatpush2.msra.mxu0 0.0
    %3674 = vmatprep.subr.mxu0 0.0
    %3675 = vmatpush2.msra.mxu0 0.0
    %3676 = vmatprep.subr.mxu0 0.0
    %3677 = vmatpush2.msra.mxu0 0.0
    %3678 = vmatprep.subr.mxu0 0.0
    %3679 = vmatpush2.msra.mxu0 0.0
    %3680 = vmatprep.subr.mxu0 0.0
    %3681 = vmatpush2.msra.mxu0 0.0
    %3682 = vmatprep.mubr.f32.mxu0 0.0
    %3683 = vmatmul.mubr.f32.gmra.mxu0 %v3607
    %v3684 = vpop.f32.mrf.mxu0
    %v3685 = vadd.f32 %v3604, %v3684
    %v3686 = vpop.f32.mrf.mxu0
    %3687 = vmatprep.mubr.f32.mxu0 0.0
    %3688 = vmatmul.mubr.f32.gmra.mxu0 %v3610
    %v3689 = vpop.f32.mrf.mxu0
    %v3690 = vadd.f32 %v3604, %v3689
    %v3691 = vpop.f32.mrf.mxu0
    %3692 = vmatprep.mubr.f32.mxu0 0.0
    %3693 = vmatmul.mubr.f32.gmra.mxu0 %v3613
    %v3694 = vpop.f32.mrf.mxu0
    %v3695 = vadd.f32 %v3604, %v3694
    %v3696 = vpop.f32.mrf.mxu0
    %3697 = vmatprep.mubr.f32.mxu0 0.0
    %3698 = vmatmul.mubr.f32.gmra.mxu0 %v3616
    %v3699 = vpop.f32.mrf.mxu0
    %v3700 = vadd.f32 %v3604, %v3699
    %v3701 = vpop.f32.mrf.mxu0
    %3702 = vdwg.mxu0
    %v3703 = vadd.f32 %v3685, %v3379
    %v3704 = vadd.f32 %v3690, %v3380
    %v3705 = vadd.f32 %v3695, %v3381
    %v3706 = vadd.f32 %v3700, %v3382
    %v3707 = vld [vmem:[%s16] sm:$0x1]
    %v3708 = vld [vmem:[%s17] sm:$0x1]
    %v3709 = vsel %vm178, %v3703, 0.0
    %3710 = vadd.xlane.f32.xlu0 %v3709
    %v3711 = vpop.xlane.xlu0 %3710
    %v3712 = vsel %vm178, %v3704, 0.0
    %3713 = vadd.xlane.f32.xlu0 %v3712
    %v3714 = vpop.xlane.xlu0 %3713
    %v3715 = vsel %vm178, %v3705, 0.0
    %3716 = vadd.xlane.f32.xlu0 %v3715
    %v3717 = vpop.xlane.xlu0 %3716
    %v3718 = vsel %vm178, %v3706, 0.0
    %3719 = vadd.xlane.f32.xlu0 %v3718
    %v3720 = vpop.xlane.xlu0 %3719
    %v3721 = vmul.f32 %v3711, %v191
    %v3722 = vmul.f32 %v3714, %v191
    %v3723 = vmul.f32 %v3717, %v191
    %v3724 = vmul.f32 %v3720, %v191
    %v3725 = vsub.f32 %v3703, %v3721
    %v3726 = vsub.f32 %v3704, %v3722
    %v3727 = vsub.f32 %v3705, %v3723
    %v3728 = vsub.f32 %v3706, %v3724
    %v3729 = vmul.f32 %v3725, %v3725
    %v3730 = vmul.f32 %v3726, %v3726
    %v3731 = vmul.f32 %v3727, %v3727
    %v3732 = vmul.f32 %v3728, %v3728
    %v3733 = vsel %vm178, %v3729, 0.0
    %3734 = vadd.xlane.f32.xlu0 %v3733
    %v3735 = vpop.xlane.xlu0 %3734
    %v3736 = vsel %vm178, %v3730, 0.0
    %3737 = vadd.xlane.f32.xlu0 %v3736
    %v3738 = vpop.xlane.xlu0 %3737
    %v3739 = vsel %vm178, %v3731, 0.0
    %3740 = vadd.xlane.f32.xlu0 %v3739
    %v3741 = vpop.xlane.xlu0 %3740
    %v3742 = vsel %vm178, %v3732, 0.0
    %3743 = vadd.xlane.f32.xlu0 %v3742
    %v3744 = vpop.xlane.xlu0 %3743
    %v3745 = vmul.f32 %v3735, %v191
    %v3746 = vmul.f32 %v3738, %v191
    %v3747 = vmul.f32 %v3741, %v191
    %v3748 = vmul.f32 %v3744, %v191
    %v3749 = vadd.f32 %v3745, 1e-06
    %v3750 = vadd.f32 %v3746, 1e-06
    %v3751 = vadd.f32 %v3747, 1e-06
    %v3752 = vadd.f32 %v3748, 1e-06
    %v3753 = vrsqrt.pop %v3749
    %v3754 = vrsqrt.pop %v3750
    %v3755 = vrsqrt.pop %v3751
    %v3756 = vrsqrt.pop %v3752
    %v3757 = vmul.f32 %v3725, %v3753
    %v3758 = vmul.f32 %v3726, %v3754
    %v3759 = vmul.f32 %v3727, %v3755
    %v3760 = vmul.f32 %v3728, %v3756
    %v3762 = vlaneseq
    %v3763 = vshrl.u32 %v3762, 7
    %v3764 = vsub.s32 0, %v3763
    %v3765 = vrot.slane %v3707, %v3764
    %v3767 = vmul.f32 %v3757, %v3765
    %v3768 = vmul.f32 %v3758, %v3765
    %v3769 = vmul.f32 %v3759, %v3765
    %v3770 = vmul.f32 %v3760, %v3765
    %v3772 = vlaneseq
    %v3773 = vshrl.u32 %v3772, 7
    %v3774 = vsub.s32 0, %v3773
    %v3775 = vrot.slane %v3708, %v3774
    %v3777 = vadd.f32 %v3767, %v3775
    %v3778 = vadd.f32 %v3768, %v3775
    %v3779 = vadd.f32 %v3769, %v3775
    %v3780 = vadd.f32 %v3770, %v3775
    %3781 = vst.msk [vmem:[#allocation3] sm:$0xff] %vm178, %v3777
    %3782 = vst.msk [vmem:[#allocation3 + $0x8] sm:$0xff] %vm178, %v3778
    %3783 = vst.msk [vmem:[#allocation3 + $0x10] sm:$0xff] %vm178, %v3779
    %3784 = vst.msk [vmem:[#allocation3 + $0x18] sm:$0xff] %vm178, %v3780
    // Predicated region
    $region74: #{transformer_forward.1} parent=1 // pred_check
      _
    $region75: #{transformer_forward.1} parent=1 // pred_check_branch
      %3786 = sbr.rel (0) target = $region77
    $region76: #{transformer_forward.1} parent=1 // pred_region
      %s3788 = ssub.s32 512, 512
      %3789 = vsyncadd [#allocation4], %s3788
      %s3790 = sshll.u32 [#allocation3], 4
      %s3791 = int_to_ptr.vmem [resolvable:$true] %s3790
      %3796 = dma.vmem_to_hbm [thread:$0]  %s3791, 512, %s18, [#allocation4], 128, 128, 8
    $region77: #{transformer_forward.1} parent=1 // pred_fallthru
      _
    // Predicated region
    $region78: #{transformer_forward.1} parent=1 // pred_check
      _
    $region79: #{transformer_forward.1} parent=1 // pred_check_branch
      %3798 = sbr.rel (0) target = $region81
    $region80: #{transformer_forward.1} parent=1 // pred_region
      %3799 = dma.done [#allocation4], 512
    $region81: #{transformer_forward.1} parent=1 // pred_fallthru
      _
    %3800 = vsyncpa [#allocation4], 1

</llo_original>
